<compile_context>
chip_gen: v7x
topology: tpu7x:2x2x1
jax: 0.10.0
libtpu: 0.0.40
codegen_flags: <defaults>
</compile_context>

<pallas_src>
import math
import jax
import jax.numpy as jnp
from jax.experimental import pallas as pl
from jax.experimental.pallas import tpu as pltpu


def _round_up(v, m):
    return (v + m - 1) // m * m


# ----------------------------------------------------------------------------
# Fused Pallas kernel
# ----------------------------------------------------------------------------
def _make_gt_kernel(hc1, hc2, hc3, scale1, scale2, scale3):
    f32 = jnp.float32
    bf16 = jnp.bfloat16

    def kernel(x_ref, ea_ref, ssrc_ref, sdst_ref, pool_ref,
               w1, b1, we1, hs1, he1,
               w2, b2, we2, hs2, he2,
               w3, b3, we3, hs3, he3,
               g1, bt1, g2, bt2,
               fw1, fb1, fw2, fb2,
               out_ref, a1_ref, a2_ref, a3_ref):
        x0 = x_ref[...]                                   # (Np, Fin) f32
        ea = ea_ref[...]                                  # (Ep, 1)   f32
        src = ssrc_ref[...]                               # (Ep, Np)  bf16
        dst = sdst_ref[...]                               # (Ep, Np)  bf16
        # transpose ONCE (f32 transpose is the safest lowering), reused by all
        # three layers -- replaces the duplicated sdst_t HBM input.
        dst_t = dst.astype(f32).T.astype(bf16)            # (Np, Ep)  bf16

        def conv(x, wall, ball, wedge, hsum, hexp, hc, scale, alpha_ref):
            # fused [k | v | q | skip] projection: one wide MXU matmul
            proj = jnp.dot(x, wall[...], preferred_element_type=f32) + ball[...]
            kv = proj[:, :2 * hc]
            q = proj[:, 2 * hc:3 * hc]
            skip = proj[:, 3 * hc:4 * hc]
            # edge embedding: VPU broadcast outer product (no K=1 matmul)
            e_kv = ea * wedge[...]                                           # (Ep, 2hc)
            # fused gather of [k|v] via source one-hot (bf16 MXU, f32 accum)
            kvj = jnp.dot(src, kv.astype(bf16), preferred_element_type=f32) + e_kv
            qi = jnp.dot(dst, q.astype(bf16), preferred_element_type=f32)    # (Ep, hc)
            kj = kvj[:, :hc]
            vj = kvj[:, hc:2 * hc]
            # per-head dot products -> lane-dense (Ep, 128) padded logits
            logits = jnp.dot(qi * kj, hsum[...], preferred_element_type=f32) * scale
            m = jnp.max(logits, axis=0, keepdims=True)     # global per-head max
            el = jnp.exp(logits - m)
            # segment-softmax denominator: scatter-add over destinations
            denom = jnp.dot(dst_t, el.astype(bf16), preferred_element_type=f32)   # (Np,128)
            # epsilon clamp avoids 0-division / underflow NaNs (empty segments,
            # segments far below the global max); reciprocal on the small node
            # tensor runs on the EUP slot.
            inv = pl.reciprocal(jnp.maximum(denom, 1e-9), approx=True)
            inv_e = jnp.dot(dst, inv.astype(bf16), preferred_element_type=f32)    # (Ep,128)
            alpha = el * inv_e
            alpha_ref[...] = alpha                         # lane-dense (Ep, 128) store
            # weighted messages + scatter-add to destination nodes
            msg = vj * jnp.dot(alpha, hexp[...], preferred_element_type=f32)      # (Ep, hc)
            agg = jnp.dot(dst_t, msg.astype(bf16), preferred_element_type=f32)    # (Np, hc)
            return agg + skip

        def ln_relu(v, g, b):
            mean = jnp.mean(v, axis=-1, keepdims=True)
            d = v - mean
            var = jnp.mean(d * d, axis=-1, keepdims=True)
            y = d * jax.lax.rsqrt(var + 1e-5) * g[...] + b[...]
            return jnp.maximum(y, 0.0)

        x1 = ln_relu(conv(x0, w1, b1, we1, hs1, he1, hc1, scale1, a1_ref), g1, bt1)
        x2 = ln_relu(conv(x1, w2, b2, we2, hs2, he2, hc2, scale2, a2_ref), g2, bt2)
        x3 = conv(x2, w3, b3, we3, hs3, he3, hc3, scale3, a3_ref)

        # residual + global mean pool + MLP head (fc2 output padded to 128 lanes)
        x_res = x0 + jnp.maximum(x3, 0.0)
        pooled = jnp.dot(pool_ref[...], x_res, preferred_element_type=f32)        # (Gp, Fin)
        h = jnp.maximum(jnp.dot(pooled, fw1[...], preferred_element_type=f32) + fb1[...], 0.0)
        out_ref[...] = jnp.dot(h, fw2[...], preferred_element_type=f32) + fb2[...]

    return kernel


# ----------------------------------------------------------------------------
# Parameter init (shapes dictated by GT.__init__); weights pre-fused host-side.
# ----------------------------------------------------------------------------
def _init_linear(key, fan_in, fan_out, bias=True):
    kw, kb = jax.random.split(key)
    w = jax.random.normal(kw, (fan_in, fan_out), jnp.float32) / math.sqrt(fan_in)
    b = (jax.random.normal(kb, (1, fan_out), jnp.float32) * 0.05) if bias else None
    return w, b


def _init_conv(key, fin, out_per_head, heads):
    hc = heads * out_per_head
    ks = jax.random.split(key, 5)
    wq, bq = _init_linear(ks[0], fin, hc)
    wk, bk = _init_linear(ks[1], fin, hc)
    wv, bv = _init_linear(ks[2], fin, hc)
    we, _ = _init_linear(ks[3], 1, hc, bias=False)     # lin_edge (no bias in PyG)
    ws, bs = _init_linear(ks[4], fin, hc)              # lin_skip
    # fused [k|v|q|skip] weight/bias; edge weight duplicated for the [k|v] block
    wall = jnp.concatenate([wk, wv, wq, ws], axis=1)   # (fin, 4*hc)
    ball = jnp.concatenate([bk, bv, bq, bs], axis=1)   # (1, 4*hc)
    we2 = jnp.concatenate([we, we], axis=1)            # (1, 2*hc)
    # per-head sum / expand matrices, padded to 128 head-lanes
    hsum = jnp.repeat(jnp.eye(heads, dtype=jnp.float32), out_per_head, axis=0)   # (hc, H)
    hsum_pad = jnp.pad(hsum, ((0, 0), (0, 128 - heads)))                         # (hc, 128)
    hexp_pad = jnp.pad(hsum.T, ((0, 128 - heads), (0, 0)))                       # (128, hc)
    return dict(wall=wall, ball=ball, we2=we2, hsum=hsum_pad, hexp=hexp_pad)


def init_gt_params(key, in_channels, h1, h2, h3, out_channels):
    ks = jax.random.split(key, 5)
    p = {}
    p["conv1"] = _init_conv(ks[0], in_channels, h1, 4)
    p["conv2"] = _init_conv(ks[1], h1 * 4, h2, 4)
    p["conv3"] = _init_conv(ks[2], h2 * 4, h3, 6)
    p["ln1"] = (jnp.ones((1, h1 * 4), jnp.float32), jnp.zeros((1, h1 * 4), jnp.float32))
    p["ln2"] = (jnp.ones((1, h2 * 4), jnp.float32), jnp.zeros((1, h2 * 4), jnp.float32))
    p["fc1"] = _init_linear(ks[3], h3 * 6, 32)
    w2, b2 = _init_linear(ks[4], 32, out_channels)
    # pad fc2 output to 128 lanes so the final store is lane-dense
    p["fc2_pad"] = (jnp.pad(w2, ((0, 0), (0, 128 - out_channels))),
                    jnp.pad(b2, ((0, 0), (0, 128 - out_channels))))
    return p


# ----------------------------------------------------------------------------
# GT forward (host-side glue: padding, one-hot construction, pallas_call)
# ----------------------------------------------------------------------------
def gt_forward(params, x, edge_index, edge_attr, batch, num_graphs,
               h1, h2, h3, out_channels, heads12=4, heads3=6):
    n, fin = x.shape
    e = edge_index.shape[1]
    hc1, hc2, hc3 = heads12 * h1, heads12 * h2, heads3 * h3

    np_ = _round_up(n, 128)       # nodes padded to lane-dense width
    ep = _round_up(e, 128)        # edges padded (aligned sublanes / lanes)
    gp = _round_up(num_graphs, 8)

    # reproduce the module's `edge_index += 1`
    ei = edge_index + 1
    pad_idx = jnp.full((ep - e,), np_, dtype=ei.dtype)       # OOB -> all-zero one-hot row
    src_idx = jnp.concatenate([ei[0], pad_idx])
    dst_idx = jnp.concatenate([ei[1], pad_idx])
    ssrc = jax.nn.one_hot(src_idx, np_, dtype=jnp.bfloat16)  # (Ep, Np) bf16
    sdst = jax.nn.one_hot(dst_idx, np_, dtype=jnp.bfloat16)  # (Ep, Np) bf16

    x_p = jnp.zeros((np_, fin), jnp.float32).at[:n].set(x.astype(jnp.float32))
    ea_p = jnp.zeros((ep, 1), jnp.float32).at[:e].set(edge_attr.astype(jnp.float32))

    # global_mean_pool matrix (Gp, Np)
    onehot_b = jax.nn.one_hot(batch, num_graphs, dtype=jnp.float32).T    # (G, N)
    counts = jnp.maximum(jnp.sum(onehot_b, axis=1, keepdims=True), 1.0)
    pool = onehot_b / counts
    pool_p = jnp.zeros((gp, np_), jnp.float32).at[:num_graphs, :n].set(pool)

    kernel = _make_gt_kernel(hc1, hc2, hc3,
                             1.0 / math.sqrt(h1), 1.0 / math.sqrt(h2), 1.0 / math.sqrt(h3))

    out_shapes = (jax.ShapeDtypeStruct((gp, 128), jnp.float32),
                  jax.ShapeDtypeStruct((ep, 128), jnp.float32),
                  jax.ShapeDtypeStruct((ep, 128), jnp.float32),
                  jax.ShapeDtypeStruct((ep, 128), jnp.float32))

    c1, c2, c3 = params["conv1"], params["conv2"], params["conv3"]
    g1, bt1 = params["ln1"]
    g2, bt2 = params["ln2"]
    fw1, fb1 = params["fc1"]
    fw2, fb2 = params["fc2_pad"]

    out_p, a1_p, a2_p, a3_p = pl.pallas_call(
        kernel,
        out_shape=out_shapes,
        compiler_params=pltpu.CompilerParams(vmem_limit_bytes=32 * 1024 * 1024),
    )(x_p, ea_p, ssrc, sdst, pool_p,
      c1["wall"], c1["ball"], c1["we2"], c1["hsum"], c1["hexp"],
      c2["wall"], c2["ball"], c2["we2"], c2["hsum"], c2["hexp"],
      c3["wall"], c3["ball"], c3["we2"], c3["hsum"], c3["hexp"],
      g1, bt1, g2, bt2,
      fw1, fb1, fw2, fb2)

    out = out_p[:num_graphs, :out_channels]
    return (out,
            a1_p[:e, :heads12],
            a2_p[:e, :heads12],
            a3_p[:e, :heads3])


# ----------------------------------------------------------------------------
if __name__ == "__main__":
    # sizes: residual x + x3 requires in_channels == hidden3 * 6
    N, E, G = 16, 24, 2
    in_channels, h1, h2, h3, out_channels = 24, 8, 8, 4, 4

    key = jax.random.PRNGKey(0)
    kx, ke, ks, kd, kb, kp = jax.random.split(key, 6)

    x = jax.random.normal(kx, (N, in_channels), jnp.float32)
    edge_attr = jax.random.normal(ke, (E, 1), jnp.float32)
    # raw edge indices in [0, N-2]; the module adds 1 before message passing
    src = jax.random.randint(ks, (E,), 0, N - 1)
    dst = jax.random.randint(kd, (E,), 0, N - 1)
    edge_index = jnp.stack([src, dst]).astype(jnp.int32)    # (2, E)
    batch = jnp.sort(jax.random.randint(kb, (N,), 0, G)).astype(jnp.int32)

    params = init_gt_params(kp, in_channels, h1, h2, h3, out_channels)

    out, a1, a2, a3 = gt_forward(params, x, edge_index, edge_attr, batch, G,
                                 h1, h2, h3, out_channels)
    jax.block_until_ready((out, a1, a2, a3))

    assert out.shape == (G, out_channels)
    assert a1.shape == (E, 4) and a2.shape == (E, 4) and a3.shape == (E, 6)
    assert bool(jnp.all(jnp.isfinite(out)))
    assert bool(jnp.all(jnp.isfinite(a1))) and bool(jnp.all(jnp.isfinite(a3)))
    print("KERNEL_OK")
</pallas_src>

<mosaic_0001>
module attributes {stable_mosaic.version = 11 : i64} {
  func.func @kernel(%arg0: memref<128x24xf32, #tpu.memory_space<vmem>>, %arg1: memref<128x1xf32, #tpu.memory_space<vmem>>, %arg2: memref<128x128xbf16, #tpu.memory_space<vmem>>, %arg3: memref<128x128xbf16, #tpu.memory_space<vmem>>, %arg4: memref<8x128xf32, #tpu.memory_space<vmem>>, %arg5: memref<24x128xf32, #tpu.memory_space<vmem>>, %arg6: memref<1x128xf32, #tpu.memory_space<vmem>>, %arg7: memref<1x64xf32, #tpu.memory_space<vmem>>, %arg8: memref<32x128xf32, #tpu.memory_space<vmem>>, %arg9: memref<128x32xf32, #tpu.memory_space<vmem>>, %arg10: memref<32x128xf32, #tpu.memory_space<vmem>>, %arg11: memref<1x128xf32, #tpu.memory_space<vmem>>, %arg12: memref<1x64xf32, #tpu.memory_space<vmem>>, %arg13: memref<32x128xf32, #tpu.memory_space<vmem>>, %arg14: memref<128x32xf32, #tpu.memory_space<vmem>>, %arg15: memref<32x96xf32, #tpu.memory_space<vmem>>, %arg16: memref<1x96xf32, #tpu.memory_space<vmem>>, %arg17: memref<1x48xf32, #tpu.memory_space<vmem>>, %arg18: memref<24x128xf32, #tpu.memory_space<vmem>>, %arg19: memref<128x24xf32, #tpu.memory_space<vmem>>, %arg20: memref<1x32xf32, #tpu.memory_space<vmem>>, %arg21: memref<1x32xf32, #tpu.memory_space<vmem>>, %arg22: memref<1x32xf32, #tpu.memory_space<vmem>>, %arg23: memref<1x32xf32, #tpu.memory_space<vmem>>, %arg24: memref<24x32xf32, #tpu.memory_space<vmem>>, %arg25: memref<1x32xf32, #tpu.memory_space<vmem>>, %arg26: memref<32x128xf32, #tpu.memory_space<vmem>>, %arg27: memref<1x128xf32, #tpu.memory_space<vmem>>, %arg28: memref<8x128xf32, #tpu.memory_space<vmem>>, %arg29: memref<128x128xf32, #tpu.memory_space<vmem>>, %arg30: memref<128x128xf32, #tpu.memory_space<vmem>>, %arg31: memref<128x128xf32, #tpu.memory_space<vmem>>) attributes {dimension_semantics = [], scalar_prefetch = 0 : i64, scratch_operands = 0 : i64, tpu.core_type = #tpu.core_type<tc>} {
    %c0 = arith.constant 0 : index
    %c0_0 = arith.constant 0 : index
    %0 = vector.load %arg0[%c0, %c0_0] : memref<128x24xf32, #tpu.memory_space<vmem>>, vector<128x24xf32>
    %c0_1 = arith.constant 0 : index
    %c0_2 = arith.constant 0 : index
    %1 = vector.load %arg1[%c0_1, %c0_2] : memref<128x1xf32, #tpu.memory_space<vmem>>, vector<128x1xf32>
    %c0_3 = arith.constant 0 : index
    %c0_4 = arith.constant 0 : index
    %2 = vector.load %arg2[%c0_3, %c0_4] : memref<128x128xbf16, #tpu.memory_space<vmem>>, vector<128x128xbf16>
    %c0_5 = arith.constant 0 : index
    %c0_6 = arith.constant 0 : index
    %3 = vector.load %arg3[%c0_5, %c0_6] : memref<128x128xbf16, #tpu.memory_space<vmem>>, vector<128x128xbf16>
    %4 = arith.extf %3 : vector<128x128xbf16> to vector<128x128xf32>
    %5 = tpu.transpose %4, [1, 0] : vector<128x128xf32> -> vector<128x128xf32>
    %6 = arith.truncf %5 : vector<128x128xf32> to vector<128x128xbf16>
    %c0_7 = arith.constant 0 : index
    %c0_8 = arith.constant 0 : index
    %7 = vector.load %arg5[%c0_7, %c0_8] : memref<24x128xf32, #tpu.memory_space<vmem>>, vector<24x128xf32>
    %cst = arith.constant dense<0.000000e+00> : vector<128x128xf32>
    %8 = tpu.matmul %0, %7, %cst {dimension_numbers = #tpu.dot_dimension_numbers<[1], [0], [0], [1], [0, 0, 1, 1], [], []>} : vector<128x24xf32>, vector<24x128xf32>, vector<128x128xf32> -> vector<128x128xf32>
    %c0_9 = arith.constant 0 : index
    %c0_10 = arith.constant 0 : index
    %9 = vector.load %arg6[%c0_9, %c0_10] : memref<1x128xf32, #tpu.memory_space<vmem>>, vector<1x128xf32>
    %10 = vector.broadcast %9 : vector<1x128xf32> to vector<128x128xf32>
    %11 = arith.addf %8, %10 : vector<128x128xf32>
    %12 = vector.extract_strided_slice %11 {offsets = [0, 0], sizes = [128, 64], strides = [1, 1]} : vector<128x128xf32> to vector<128x64xf32>
    %13 = vector.extract_strided_slice %11 {offsets = [0, 64], sizes = [128, 32], strides = [1, 1]} : vector<128x128xf32> to vector<128x32xf32>
    %14 = vector.extract_strided_slice %11 {offsets = [0, 96], sizes = [128, 32], strides = [1, 1]} : vector<128x128xf32> to vector<128x32xf32>
    %c0_11 = arith.constant 0 : index
    %c0_12 = arith.constant 0 : index
    %15 = vector.load %arg7[%c0_11, %c0_12] : memref<1x64xf32, #tpu.memory_space<vmem>>, vector<1x64xf32>
    %16 = vector.broadcast %1 : vector<128x1xf32> to vector<128x64xf32>
    %17 = vector.broadcast %15 : vector<1x64xf32> to vector<128x64xf32>
    %18 = arith.mulf %16, %17 : vector<128x64xf32>
    %19 = arith.truncf %12 : vector<128x64xf32> to vector<128x64xbf16>
    %cst_13 = arith.constant dense<0.000000e+00> : vector<128x64xf32>
    %20 = tpu.matmul %2, %19, %cst_13 {dimension_numbers = #tpu.dot_dimension_numbers<[1], [0], [0], [1], [0, 0, 1, 1], [], []>} : vector<128x128xbf16>, vector<128x64xbf16>, vector<128x64xf32> -> vector<128x64xf32>
    %21 = arith.addf %20, %18 : vector<128x64xf32>
    %22 = arith.truncf %13 : vector<128x32xf32> to vector<128x32xbf16>
    %cst_14 = arith.constant dense<0.000000e+00> : vector<128x32xf32>
    %23 = tpu.matmul %3, %22, %cst_14 {dimension_numbers = #tpu.dot_dimension_numbers<[1], [0], [0], [1], [0, 0, 1, 1], [], []>} : vector<128x128xbf16>, vector<128x32xbf16>, vector<128x32xf32> -> vector<128x32xf32>
    %24 = vector.extract_strided_slice %21 {offsets = [0, 0], sizes = [128, 32], strides = [1, 1]} : vector<128x64xf32> to vector<128x32xf32>
    %25 = vector.extract_strided_slice %21 {offsets = [0, 32], sizes = [128, 32], strides = [1, 1]} : vector<128x64xf32> to vector<128x32xf32>
    %26 = arith.mulf %23, %24 : vector<128x32xf32>
    %c0_15 = arith.constant 0 : index
    %c0_16 = arith.constant 0 : index
    %27 = vector.load %arg8[%c0_15, %c0_16] : memref<32x128xf32, #tpu.memory_space<vmem>>, vector<32x128xf32>
    %cst_17 = arith.constant dense<0.000000e+00> : vector<128x128xf32>
    %28 = tpu.matmul %26, %27, %cst_17 {dimension_numbers = #tpu.dot_dimension_numbers<[1], [0], [0], [1], [0, 0, 1, 1], [], []>} : vector<128x32xf32>, vector<32x128xf32>, vector<128x128xf32> -> vector<128x128xf32>
    %cst_18 = arith.constant 0.353553385 : f32
    %29 = vector.broadcast %cst_18 : f32 to vector<128x128xf32>
    %30 = arith.mulf %28, %29 : vector<128x128xf32>
    %cst_19 = arith.constant dense<0xFF800000> : vector<128xf32>
    %31 = vector.multi_reduction <maximumf>, %30, %cst_19 [0] : vector<128x128xf32> to vector<128xf32>
    %32 = vector.shape_cast %31 : vector<128xf32> to vector<1x128xf32>
    %33 = vector.broadcast %32 : vector<1x128xf32> to vector<128x128xf32>
    %34 = arith.subf %30, %33 : vector<128x128xf32>
    %35 = math.exp %34 : vector<128x128xf32>
    %36 = arith.truncf %35 : vector<128x128xf32> to vector<128x128xbf16>
    %cst_20 = arith.constant dense<0.000000e+00> : vector<128x128xf32>
    %37 = tpu.matmul %6, %36, %cst_20 {dimension_numbers = #tpu.dot_dimension_numbers<[1], [0], [0], [1], [0, 0, 1, 1], [], []>} : vector<128x128xbf16>, vector<128x128xbf16>, vector<128x128xf32> -> vector<128x128xf32>
    %cst_21 = arith.constant 9.99999971E-10 : f32
    %38 = vector.broadcast %cst_21 : f32 to vector<128x128xf32>
    %39 = arith.maximumf %37, %38 : vector<128x128xf32>
    %40 = tpu.reciprocal %39 {approx = true} : vector<128x128xf32> -> vector<128x128xf32>
    %41 = arith.truncf %40 : vector<128x128xf32> to vector<128x128xbf16>
    %cst_22 = arith.constant dense<0.000000e+00> : vector<128x128xf32>
    %42 = tpu.matmul %3, %41, %cst_22 {dimension_numbers = #tpu.dot_dimension_numbers<[1], [0], [0], [1], [0, 0, 1, 1], [], []>} : vector<128x128xbf16>, vector<128x128xbf16>, vector<128x128xf32> -> vector<128x128xf32>
    %43 = arith.mulf %35, %42 : vector<128x128xf32>
    %c0_23 = arith.constant 0 : index
    %c0_24 = arith.constant 0 : index
    %44 = vector.load %arg29[%c0_23, %c0_24] : memref<128x128xf32, #tpu.memory_space<vmem>>, vector<128x128xf32>
    tpu.vector_store %arg29[%c0_23, %c0_24], %43 {strides = array<i32>} : memref<128x128xf32, #tpu.memory_space<vmem>>, vector<128x128xf32>,
    %c0_25 = arith.constant 0 : index
    %c0_26 = arith.constant 0 : index
    %45 = vector.load %arg9[%c0_25, %c0_26] : memref<128x32xf32, #tpu.memory_space<vmem>>, vector<128x32xf32>
    %cst_27 = arith.constant dense<0.000000e+00> : vector<128x32xf32>
    %46 = tpu.matmul %43, %45, %cst_27 {dimension_numbers = #tpu.dot_dimension_numbers<[1], [0], [0], [1], [0, 0, 1, 1], [], []>} : vector<128x128xf32>, vector<128x32xf32>, vector<128x32xf32> -> vector<128x32xf32>
    %47 = arith.mulf %25, %46 : vector<128x32xf32>
    %48 = arith.truncf %47 : vector<128x32xf32> to vector<128x32xbf16>
    %cst_28 = arith.constant dense<0.000000e+00> : vector<128x32xf32>
    %49 = tpu.matmul %6, %48, %cst_28 {dimension_numbers = #tpu.dot_dimension_numbers<[1], [0], [0], [1], [0, 0, 1, 1], [], []>} : vector<128x128xbf16>, vector<128x32xbf16>, vector<128x32xf32> -> vector<128x32xf32>
    %50 = arith.addf %49, %14 : vector<128x32xf32>
    %cst_29 = arith.constant dense<0.000000e+00> : vector<128xf32>
    %51 = vector.multi_reduction <add>, %50, %cst_29 [1] : vector<128x32xf32> to vector<128xf32>
    %52 = vector.shape_cast %51 : vector<128xf32> to vector<128x1xf32>
    %cst_30 = arith.constant 3.200000e+01 : f32
    %53 = vector.broadcast %cst_30 : f32 to vector<128x1xf32>
    %54 = arith.divf %52, %53 : vector<128x1xf32>
    %55 = vector.broadcast %54 : vector<128x1xf32> to vector<128x32xf32>
    %56 = arith.subf %50, %55 : vector<128x32xf32>
    %57 = arith.mulf %56, %56 : vector<128x32xf32>
    %cst_31 = arith.constant dense<0.000000e+00> : vector<128xf32>
    %58 = vector.multi_reduction <add>, %57, %cst_31 [1] : vector<128x32xf32> to vector<128xf32>
    %59 = vector.shape_cast %58 : vector<128xf32> to vector<128x1xf32>
    %cst_32 = arith.constant 3.200000e+01 : f32
    %60 = vector.broadcast %cst_32 : f32 to vector<128x1xf32>
    %61 = arith.divf %59, %60 : vector<128x1xf32>
    %cst_33 = arith.constant 9.99999974E-6 : f32
    %62 = vector.broadcast %cst_33 : f32 to vector<128x1xf32>
    %63 = arith.addf %61, %62 : vector<128x1xf32>
    %64 = math.rsqrt %63 : vector<128x1xf32>
    %65 = vector.broadcast %64 : vector<128x1xf32> to vector<128x32xf32>
    %66 = arith.mulf %56, %65 : vector<128x32xf32>
    %c0_34 = arith.constant 0 : index
    %c0_35 = arith.constant 0 : index
    %67 = vector.load %arg20[%c0_34, %c0_35] : memref<1x32xf32, #tpu.memory_space<vmem>>, vector<1x32xf32>
    %68 = vector.broadcast %67 : vector<1x32xf32> to vector<128x32xf32>
    %69 = arith.mulf %66, %68 : vector<128x32xf32>
    %c0_36 = arith.constant 0 : index
    %c0_37 = arith.constant 0 : index
    %70 = vector.load %arg21[%c0_36, %c0_37] : memref<1x32xf32, #tpu.memory_space<vmem>>, vector<1x32xf32>
    %71 = vector.broadcast %70 : vector<1x32xf32> to vector<128x32xf32>
    %72 = arith.addf %69, %71 : vector<128x32xf32>
    %cst_38 = arith.constant 0.000000e+00 : f32
    %73 = vector.broadcast %cst_38 : f32 to vector<128x32xf32>
    %74 = arith.maximumf %72, %73 : vector<128x32xf32>
    %c0_39 = arith.constant 0 : index
    %c0_40 = arith.constant 0 : index
    %75 = vector.load %arg10[%c0_39, %c0_40] : memref<32x128xf32, #tpu.memory_space<vmem>>, vector<32x128xf32>
    %cst_41 = arith.constant dense<0.000000e+00> : vector<128x128xf32>
    %76 = tpu.matmul %74, %75, %cst_41 {dimension_numbers = #tpu.dot_dimension_numbers<[1], [0], [0], [1], [0, 0, 1, 1], [], []>} : vector<128x32xf32>, vector<32x128xf32>, vector<128x128xf32> -> vector<128x128xf32>
    %c0_42 = arith.constant 0 : index
    %c0_43 = arith.constant 0 : index
    %77 = vector.load %arg11[%c0_42, %c0_43] : memref<1x128xf32, #tpu.memory_space<vmem>>, vector<1x128xf32>
    %78 = vector.broadcast %77 : vector<1x128xf32> to vector<128x128xf32>
    %79 = arith.addf %76, %78 : vector<128x128xf32>
    %80 = vector.extract_strided_slice %79 {offsets = [0, 0], sizes = [128, 64], strides = [1, 1]} : vector<128x128xf32> to vector<128x64xf32>
    %81 = vector.extract_strided_slice %79 {offsets = [0, 64], sizes = [128, 32], strides = [1, 1]} : vector<128x128xf32> to vector<128x32xf32>
    %82 = vector.extract_strided_slice %79 {offsets = [0, 96], sizes = [128, 32], strides = [1, 1]} : vector<128x128xf32> to vector<128x32xf32>
    %c0_44 = arith.constant 0 : index
    %c0_45 = arith.constant 0 : index
    %83 = vector.load %arg12[%c0_44, %c0_45] : memref<1x64xf32, #tpu.memory_space<vmem>>, vector<1x64xf32>
    %84 = vector.broadcast %1 : vector<128x1xf32> to vector<128x64xf32>
    %85 = vector.broadcast %83 : vector<1x64xf32> to vector<128x64xf32>
    %86 = arith.mulf %84, %85 : vector<128x64xf32>
    %87 = arith.truncf %80 : vector<128x64xf32> to vector<128x64xbf16>
    %cst_46 = arith.constant dense<0.000000e+00> : vector<128x64xf32>
    %88 = tpu.matmul %2, %87, %cst_46 {dimension_numbers = #tpu.dot_dimension_numbers<[1], [0], [0], [1], [0, 0, 1, 1], [], []>} : vector<128x128xbf16>, vector<128x64xbf16>, vector<128x64xf32> -> vector<128x64xf32>
    %89 = arith.addf %88, %86 : vector<128x64xf32>
    %90 = arith.truncf %81 : vector<128x32xf32> to vector<128x32xbf16>
    %cst_47 = arith.constant dense<0.000000e+00> : vector<128x32xf32>
    %91 = tpu.matmul %3, %90, %cst_47 {dimension_numbers = #tpu.dot_dimension_numbers<[1], [0], [0], [1], [0, 0, 1, 1], [], []>} : vector<128x128xbf16>, vector<128x32xbf16>, vector<128x32xf32> -> vector<128x32xf32>
    %92 = vector.extract_strided_slice %89 {offsets = [0, 0], sizes = [128, 32], strides = [1, 1]} : vector<128x64xf32> to vector<128x32xf32>
    %93 = vector.extract_strided_slice %89 {offsets = [0, 32], sizes = [128, 32], strides = [1, 1]} : vector<128x64xf32> to vector<128x32xf32>
    %94 = arith.mulf %91, %92 : vector<128x32xf32>
    %c0_48 = arith.constant 0 : index
    %c0_49 = arith.constant 0 : index
    %95 = vector.load %arg13[%c0_48, %c0_49] : memref<32x128xf32, #tpu.memory_space<vmem>>, vector<32x128xf32>
    %cst_50 = arith.constant dense<0.000000e+00> : vector<128x128xf32>
    %96 = tpu.matmul %94, %95, %cst_50 {dimension_numbers = #tpu.dot_dimension_numbers<[1], [0], [0], [1], [0, 0, 1, 1], [], []>} : vector<128x32xf32>, vector<32x128xf32>, vector<128x128xf32> -> vector<128x128xf32>
    %cst_51 = arith.constant 0.353553385 : f32
    %97 = vector.broadcast %cst_51 : f32 to vector<128x128xf32>
    %98 = arith.mulf %96, %97 : vector<128x128xf32>
    %cst_52 = arith.constant dense<0xFF800000> : vector<128xf32>
    %99 = vector.multi_reduction <maximumf>, %98, %cst_52 [0] : vector<128x128xf32> to vector<128xf32>
    %100 = vector.shape_cast %99 : vector<128xf32> to vector<1x128xf32>
    %101 = vector.broadcast %100 : vector<1x128xf32> to vector<128x128xf32>
    %102 = arith.subf %98, %101 : vector<128x128xf32>
    %103 = math.exp %102 : vector<128x128xf32>
    %104 = arith.truncf %103 : vector<128x128xf32> to vector<128x128xbf16>
    %cst_53 = arith.constant dense<0.000000e+00> : vector<128x128xf32>
    %105 = tpu.matmul %6, %104, %cst_53 {dimension_numbers = #tpu.dot_dimension_numbers<[1], [0], [0], [1], [0, 0, 1, 1], [], []>} : vector<128x128xbf16>, vector<128x128xbf16>, vector<128x128xf32> -> vector<128x128xf32>
    %cst_54 = arith.constant 9.99999971E-10 : f32
    %106 = vector.broadcast %cst_54 : f32 to vector<128x128xf32>
    %107 = arith.maximumf %105, %106 : vector<128x128xf32>
    %108 = tpu.reciprocal %107 {approx = true} : vector<128x128xf32> -> vector<128x128xf32>
    %109 = arith.truncf %108 : vector<128x128xf32> to vector<128x128xbf16>
    %cst_55 = arith.constant dense<0.000000e+00> : vector<128x128xf32>
    %110 = tpu.matmul %3, %109, %cst_55 {dimension_numbers = #tpu.dot_dimension_numbers<[1], [0], [0], [1], [0, 0, 1, 1], [], []>} : vector<128x128xbf16>, vector<128x128xbf16>, vector<128x128xf32> -> vector<128x128xf32>
    %111 = arith.mulf %103, %110 : vector<128x128xf32>
    %c0_56 = arith.constant 0 : index
    %c0_57 = arith.constant 0 : index
    %112 = vector.load %arg30[%c0_56, %c0_57] : memref<128x128xf32, #tpu.memory_space<vmem>>, vector<128x128xf32>
    tpu.vector_store %arg30[%c0_56, %c0_57], %111 {strides = array<i32>} : memref<128x128xf32, #tpu.memory_space<vmem>>, vector<128x128xf32>,
    %c0_58 = arith.constant 0 : index
    %c0_59 = arith.constant 0 : index
    %113 = vector.load %arg14[%c0_58, %c0_59] : memref<128x32xf32, #tpu.memory_space<vmem>>, vector<128x32xf32>
    %cst_60 = arith.constant dense<0.000000e+00> : vector<128x32xf32>
    %114 = tpu.matmul %111, %113, %cst_60 {dimension_numbers = #tpu.dot_dimension_numbers<[1], [0], [0], [1], [0, 0, 1, 1], [], []>} : vector<128x128xf32>, vector<128x32xf32>, vector<128x32xf32> -> vector<128x32xf32>
    %115 = arith.mulf %93, %114 : vector<128x32xf32>
    %116 = arith.truncf %115 : vector<128x32xf32> to vector<128x32xbf16>
    %cst_61 = arith.constant dense<0.000000e+00> : vector<128x32xf32>
    %117 = tpu.matmul %6, %116, %cst_61 {dimension_numbers = #tpu.dot_dimension_numbers<[1], [0], [0], [1], [0, 0, 1, 1], [], []>} : vector<128x128xbf16>, vector<128x32xbf16>, vector<128x32xf32> -> vector<128x32xf32>
    %118 = arith.addf %117, %82 : vector<128x32xf32>
    %cst_62 = arith.constant dense<0.000000e+00> : vector<128xf32>
    %119 = vector.multi_reduction <add>, %118, %cst_62 [1] : vector<128x32xf32> to vector<128xf32>
    %120 = vector.shape_cast %119 : vector<128xf32> to vector<128x1xf32>
    %cst_63 = arith.constant 3.200000e+01 : f32
    %121 = vector.broadcast %cst_63 : f32 to vector<128x1xf32>
    %122 = arith.divf %120, %121 : vector<128x1xf32>
    %123 = vector.broadcast %122 : vector<128x1xf32> to vector<128x32xf32>
    %124 = arith.subf %118, %123 : vector<128x32xf32>
    %125 = arith.mulf %124, %124 : vector<128x32xf32>
    %cst_64 = arith.constant dense<0.000000e+00> : vector<128xf32>
    %126 = vector.multi_reduction <add>, %125, %cst_64 [1] : vector<128x32xf32> to vector<128xf32>
    %127 = vector.shape_cast %126 : vector<128xf32> to vector<128x1xf32>
    %cst_65 = arith.constant 3.200000e+01 : f32
    %128 = vector.broadcast %cst_65 : f32 to vector<128x1xf32>
    %129 = arith.divf %127, %128 : vector<128x1xf32>
    %cst_66 = arith.constant 9.99999974E-6 : f32
    %130 = vector.broadcast %cst_66 : f32 to vector<128x1xf32>
    %131 = arith.addf %129, %130 : vector<128x1xf32>
    %132 = math.rsqrt %131 : vector<128x1xf32>
    %133 = vector.broadcast %132 : vector<128x1xf32> to vector<128x32xf32>
    %134 = arith.mulf %124, %133 : vector<128x32xf32>
    %c0_67 = arith.constant 0 : index
    %c0_68 = arith.constant 0 : index
    %135 = vector.load %arg22[%c0_67, %c0_68] : memref<1x32xf32, #tpu.memory_space<vmem>>, vector<1x32xf32>
    %136 = vector.broadcast %135 : vector<1x32xf32> to vector<128x32xf32>
    %137 = arith.mulf %134, %136 : vector<128x32xf32>
    %c0_69 = arith.constant 0 : index
    %c0_70 = arith.constant 0 : index
    %138 = vector.load %arg23[%c0_69, %c0_70] : memref<1x32xf32, #tpu.memory_space<vmem>>, vector<1x32xf32>
    %139 = vector.broadcast %138 : vector<1x32xf32> to vector<128x32xf32>
    %140 = arith.addf %137, %139 : vector<128x32xf32>
    %cst_71 = arith.constant 0.000000e+00 : f32
    %141 = vector.broadcast %cst_71 : f32 to vector<128x32xf32>
    %142 = arith.maximumf %140, %141 : vector<128x32xf32>
    %c0_72 = arith.constant 0 : index
    %c0_73 = arith.constant 0 : index
    %143 = vector.load %arg15[%c0_72, %c0_73] : memref<32x96xf32, #tpu.memory_space<vmem>>, vector<32x96xf32>
    %cst_74 = arith.constant dense<0.000000e+00> : vector<128x96xf32>
    %144 = tpu.matmul %142, %143, %cst_74 {dimension_numbers = #tpu.dot_dimension_numbers<[1], [0], [0], [1], [0, 0, 1, 1], [], []>} : vector<128x32xf32>, vector<32x96xf32>, vector<128x96xf32> -> vector<128x96xf32>
    %c0_75 = arith.constant 0 : index
    %c0_76 = arith.constant 0 : index
    %145 = vector.load %arg16[%c0_75, %c0_76] : memref<1x96xf32, #tpu.memory_space<vmem>>, vector<1x96xf32>
    %146 = vector.broadcast %145 : vector<1x96xf32> to vector<128x96xf32>
    %147 = arith.addf %144, %146 : vector<128x96xf32>
    %148 = vector.extract_strided_slice %147 {offsets = [0, 0], sizes = [128, 48], strides = [1, 1]} : vector<128x96xf32> to vector<128x48xf32>
    %149 = vector.extract_strided_slice %147 {offsets = [0, 48], sizes = [128, 24], strides = [1, 1]} : vector<128x96xf32> to vector<128x24xf32>
    %150 = vector.extract_strided_slice %147 {offsets = [0, 72], sizes = [128, 24], strides = [1, 1]} : vector<128x96xf32> to vector<128x24xf32>
    %c0_77 = arith.constant 0 : index
    %c0_78 = arith.constant 0 : index
    %151 = vector.load %arg17[%c0_77, %c0_78] : memref<1x48xf32, #tpu.memory_space<vmem>>, vector<1x48xf32>
    %152 = vector.broadcast %1 : vector<128x1xf32> to vector<128x48xf32>
    %153 = vector.broadcast %151 : vector<1x48xf32> to vector<128x48xf32>
    %154 = arith.mulf %152, %153 : vector<128x48xf32>
    %155 = arith.truncf %148 : vector<128x48xf32> to vector<128x48xbf16>
    %cst_79 = arith.constant dense<0.000000e+00> : vector<128x48xf32>
    %156 = tpu.matmul %2, %155, %cst_79 {dimension_numbers = #tpu.dot_dimension_numbers<[1], [0], [0], [1], [0, 0, 1, 1], [], []>} : vector<128x128xbf16>, vector<128x48xbf16>, vector<128x48xf32> -> vector<128x48xf32>
    %157 = arith.addf %156, %154 : vector<128x48xf32>
    %158 = arith.truncf %149 : vector<128x24xf32> to vector<128x24xbf16>
    %cst_80 = arith.constant dense<0.000000e+00> : vector<128x24xf32>
    %159 = tpu.matmul %3, %158, %cst_80 {dimension_numbers = #tpu.dot_dimension_numbers<[1], [0], [0], [1], [0, 0, 1, 1], [], []>} : vector<128x128xbf16>, vector<128x24xbf16>, vector<128x24xf32> -> vector<128x24xf32>
    %160 = vector.extract_strided_slice %157 {offsets = [0, 0], sizes = [128, 24], strides = [1, 1]} : vector<128x48xf32> to vector<128x24xf32>
    %161 = vector.extract_strided_slice %157 {offsets = [0, 24], sizes = [128, 24], strides = [1, 1]} : vector<128x48xf32> to vector<128x24xf32>
    %162 = arith.mulf %159, %160 : vector<128x24xf32>
    %c0_81 = arith.constant 0 : index
    %c0_82 = arith.constant 0 : index
    %163 = vector.load %arg18[%c0_81, %c0_82] : memref<24x128xf32, #tpu.memory_space<vmem>>, vector<24x128xf32>
    %cst_83 = arith.constant dense<0.000000e+00> : vector<128x128xf32>
    %164 = tpu.matmul %162, %163, %cst_83 {dimension_numbers = #tpu.dot_dimension_numbers<[1], [0], [0], [1], [0, 0, 1, 1], [], []>} : vector<128x24xf32>, vector<24x128xf32>, vector<128x128xf32> -> vector<128x128xf32>
    %cst_84 = arith.constant 5.000000e-01 : f32
    %165 = vector.broadcast %cst_84 : f32 to vector<128x128xf32>
    %166 = arith.mulf %164, %165 : vector<128x128xf32>
    %cst_85 = arith.constant dense<0xFF800000> : vector<128xf32>
    %167 = vector.multi_reduction <maximumf>, %166, %cst_85 [0] : vector<128x128xf32> to vector<128xf32>
    %168 = vector.shape_cast %167 : vector<128xf32> to vector<1x128xf32>
    %169 = vector.broadcast %168 : vector<1x128xf32> to vector<128x128xf32>
    %170 = arith.subf %166, %169 : vector<128x128xf32>
    %171 = math.exp %170 : vector<128x128xf32>
    %172 = arith.truncf %171 : vector<128x128xf32> to vector<128x128xbf16>
    %cst_86 = arith.constant dense<0.000000e+00> : vector<128x128xf32>
    %173 = tpu.matmul %6, %172, %cst_86 {dimension_numbers = #tpu.dot_dimension_numbers<[1], [0], [0], [1], [0, 0, 1, 1], [], []>} : vector<128x128xbf16>, vector<128x128xbf16>, vector<128x128xf32> -> vector<128x128xf32>
    %cst_87 = arith.constant 9.99999971E-10 : f32
    %174 = vector.broadcast %cst_87 : f32 to vector<128x128xf32>
    %175 = arith.maximumf %173, %174 : vector<128x128xf32>
    %176 = tpu.reciprocal %175 {approx = true} : vector<128x128xf32> -> vector<128x128xf32>
    %177 = arith.truncf %176 : vector<128x128xf32> to vector<128x128xbf16>
    %cst_88 = arith.constant dense<0.000000e+00> : vector<128x128xf32>
    %178 = tpu.matmul %3, %177, %cst_88 {dimension_numbers = #tpu.dot_dimension_numbers<[1], [0], [0], [1], [0, 0, 1, 1], [], []>} : vector<128x128xbf16>, vector<128x128xbf16>, vector<128x128xf32> -> vector<128x128xf32>
    %179 = arith.mulf %171, %178 : vector<128x128xf32>
    %c0_89 = arith.constant 0 : index
    %c0_90 = arith.constant 0 : index
    %180 = vector.load %arg31[%c0_89, %c0_90] : memref<128x128xf32, #tpu.memory_space<vmem>>, vector<128x128xf32>
    tpu.vector_store %arg31[%c0_89, %c0_90], %179 {strides = array<i32>} : memref<128x128xf32, #tpu.memory_space<vmem>>, vector<128x128xf32>,
    %c0_91 = arith.constant 0 : index
    %c0_92 = arith.constant 0 : index
    %181 = vector.load %arg19[%c0_91, %c0_92] : memref<128x24xf32, #tpu.memory_space<vmem>>, vector<128x24xf32>
    %cst_93 = arith.constant dense<0.000000e+00> : vector<128x24xf32>
    %182 = tpu.matmul %179, %181, %cst_93 {dimension_numbers = #tpu.dot_dimension_numbers<[1], [0], [0], [1], [0, 0, 1, 1], [], []>} : vector<128x128xf32>, vector<128x24xf32>, vector<128x24xf32> -> vector<128x24xf32>
    %183 = arith.mulf %161, %182 : vector<128x24xf32>
    %184 = arith.truncf %183 : vector<128x24xf32> to vector<128x24xbf16>
    %cst_94 = arith.constant dense<0.000000e+00> : vector<128x24xf32>
    %185 = tpu.matmul %6, %184, %cst_94 {dimension_numbers = #tpu.dot_dimension_numbers<[1], [0], [0], [1], [0, 0, 1, 1], [], []>} : vector<128x128xbf16>, vector<128x24xbf16>, vector<128x24xf32> -> vector<128x24xf32>
    %186 = arith.addf %185, %150 : vector<128x24xf32>
    %cst_95 = arith.constant 0.000000e+00 : f32
    %187 = vector.broadcast %cst_95 : f32 to vector<128x24xf32>
    %188 = arith.maximumf %186, %187 : vector<128x24xf32>
    %189 = arith.addf %0, %188 : vector<128x24xf32>
    %c0_96 = arith.constant 0 : index
    %c0_97 = arith.constant 0 : index
    %190 = vector.load %arg4[%c0_96, %c0_97] : memref<8x128xf32, #tpu.memory_space<vmem>>, vector<8x128xf32>
    %cst_98 = arith.constant dense<0.000000e+00> : vector<8x24xf32>
    %191 = tpu.matmul %190, %189, %cst_98 {dimension_numbers = #tpu.dot_dimension_numbers<[1], [0], [0], [1], [0, 0, 1, 1], [], []>} : vector<8x128xf32>, vector<128x24xf32>, vector<8x24xf32> -> vector<8x24xf32>
    %c0_99 = arith.constant 0 : index
    %c0_100 = arith.constant 0 : index
    %192 = vector.load %arg24[%c0_99, %c0_100] : memref<24x32xf32, #tpu.memory_space<vmem>>, vector<24x32xf32>
    %cst_101 = arith.constant dense<0.000000e+00> : vector<8x32xf32>
    %193 = tpu.matmul %191, %192, %cst_101 {dimension_numbers = #tpu.dot_dimension_numbers<[1], [0], [0], [1], [0, 0, 1, 1], [], []>} : vector<8x24xf32>, vector<24x32xf32>, vector<8x32xf32> -> vector<8x32xf32>
    %c0_102 = arith.constant 0 : index
    %c0_103 = arith.constant 0 : index
    %194 = vector.load %arg25[%c0_102, %c0_103] : memref<1x32xf32, #tpu.memory_space<vmem>>, vector<1x32xf32>
    %195 = vector.broadcast %194 : vector<1x32xf32> to vector<8x32xf32>
    %196 = arith.addf %193, %195 : vector<8x32xf32>
    %cst_104 = arith.constant 0.000000e+00 : f32
    %197 = vector.broadcast %cst_104 : f32 to vector<8x32xf32>
    %198 = arith.maximumf %196, %197 : vector<8x32xf32>
    %c0_105 = arith.constant 0 : index
    %c0_106 = arith.constant 0 : index
    %199 = vector.load %arg26[%c0_105, %c0_106] : memref<32x128xf32, #tpu.memory_space<vmem>>, vector<32x128xf32>
    %cst_107 = arith.constant dense<0.000000e+00> : vector<8x128xf32>
    %200 = tpu.matmul %198, %199, %cst_107 {dimension_numbers = #tpu.dot_dimension_numbers<[1], [0], [0], [1], [0, 0, 1, 1], [], []>} : vector<8x32xf32>, vector<32x128xf32>, vector<8x128xf32> -> vector<8x128xf32>
    %c0_108 = arith.constant 0 : index
    %c0_109 = arith.constant 0 : index
    %201 = vector.load %arg27[%c0_108, %c0_109] : memref<1x128xf32, #tpu.memory_space<vmem>>, vector<1x128xf32>
    %202 = vector.broadcast %201 : vector<1x128xf32> to vector<8x128xf32>
    %203 = arith.addf %200, %202 : vector<8x128xf32>
    %c0_110 = arith.constant 0 : index
    %c0_111 = arith.constant 0 : index
    %204 = vector.load %arg28[%c0_110, %c0_111] : memref<8x128xf32, #tpu.memory_space<vmem>>, vector<8x128xf32>
    tpu.vector_store %arg28[%c0_110, %c0_111], %203 {strides = array<i32>} : memref<8x128xf32, #tpu.memory_space<vmem>>, vector<8x128xf32>,
    return
  }
}

</mosaic_0001>

<llo_original>
// kernel: tpu_custom_call.1
$region0: #{tpu_custom_call.1}
  #allocation0 [shape = 'u32[]', space=smem, size = 0x4, offset = 0x4, fixed_abs, tag = 'smem constant byte address 0x4 - core index']
  #allocation1 [shape = 'u32[144,128]{1,0:T(1,128)}', space=vmem, size = 0x12000, scoped, tag = 'internal scratch']
  %s0 = inlined_call_operand.smem [shape: u32[32], index: -1, kind: input, shape index: {}]
  %s1 = sld [smem:[%s0]]
  %s2 = scalar_lea.smem %s0, 1
  %s3 = sld [smem:[%s2]]
  %s4 = scalar_lea.smem %s0, 2
  %s5 = sld [smem:[%s4]]
  %s6 = scalar_lea.smem %s0, 3
  %s7 = sld [smem:[%s6]]
  %s8 = scalar_lea.smem %s0, 4
  %s9 = sld [smem:[%s8]]
  %s10 = scalar_lea.smem %s0, 5
  %s11 = sld [smem:[%s10]]
  %s12 = scalar_lea.smem %s0, 6
  %s13 = sld [smem:[%s12]]
  %s14 = scalar_lea.smem %s0, 7
  %s15 = sld [smem:[%s14]]
  %s16 = scalar_lea.smem %s0, 8
  %s17 = sld [smem:[%s16]]
  %s18 = scalar_lea.smem %s0, 9
  %s19 = sld [smem:[%s18]]
  %s20 = scalar_lea.smem %s0, 10
  %s21 = sld [smem:[%s20]]
  %s22 = scalar_lea.smem %s0, 11
  %s23 = sld [smem:[%s22]]
  %s24 = scalar_lea.smem %s0, 12
  %s25 = sld [smem:[%s24]]
  %s26 = scalar_lea.smem %s0, 13
  %s27 = sld [smem:[%s26]]
  %s28 = scalar_lea.smem %s0, 14
  %s29 = sld [smem:[%s28]]
  %s30 = scalar_lea.smem %s0, 15
  %s31 = sld [smem:[%s30]]
  %s32 = scalar_lea.smem %s0, 16
  %s33 = sld [smem:[%s32]]
  %s34 = scalar_lea.smem %s0, 17
  %s35 = sld [smem:[%s34]]
  %s36 = scalar_lea.smem %s0, 18
  %s37 = sld [smem:[%s36]]
  %s38 = scalar_lea.smem %s0, 19
  %s39 = sld [smem:[%s38]]
  %s40 = scalar_lea.smem %s0, 20
  %s41 = sld [smem:[%s40]]
  %s42 = scalar_lea.smem %s0, 21
  %s43 = sld [smem:[%s42]]
  %s44 = scalar_lea.smem %s0, 22
  %s45 = sld [smem:[%s44]]
  %s46 = scalar_lea.smem %s0, 23
  %s47 = sld [smem:[%s46]]
  %s48 = scalar_lea.smem %s0, 24
  %s49 = sld [smem:[%s48]]
  %s50 = scalar_lea.smem %s0, 25
  %s51 = sld [smem:[%s50]]
  %s52 = scalar_lea.smem %s0, 26
  %s53 = sld [smem:[%s52]]
  %s54 = scalar_lea.smem %s0, 27
  %s55 = sld [smem:[%s54]]
  %s56 = scalar_lea.smem %s0, 28
  %s57 = sld [smem:[%s56]]
  %s58 = scalar_lea.smem %s0, 29
  %s59 = sld [smem:[%s58]]
  %s60 = scalar_lea.smem %s0, 30
  %s61 = sld [smem:[%s60]]
  %s62 = scalar_lea.smem %s0, 31
  %s63 = sld [smem:[%s62]]
  %64 = xla_tuple %s57, %s59, %s61, %s63
  %s65 = sld [smem:[#allocation0]]
  $region146: #{tpu_custom_call.1} parent=0
    _
  %s67 = ssub.s32 1, %s65
  %s68 = scalar_select 0, %s67, %s65
  $region1: #{tpu_custom_call.1} parent=0
    #allocation2 [shape = 'u8[4096]{0}', space=vmem, size = 0x1000, scoped, tag = 'output window, operand 0, single buffered']
    #allocation3 [shape = 's32[1]{0}', space=sflag, size = 0x4, scoped, tag = 'scoped memory for tpu_custom_call.1']
    #allocation4 [shape = 'u8[65536]{0}', space=vmem, size = 0x10000, scoped, tag = 'output window, operand 1, single buffered']
    #allocation5 [shape = 's32[1]{0}', space=sflag, size = 0x4, scoped, tag = 'scoped memory for tpu_custom_call.1']
    #allocation6 [shape = 'u8[65536]{0}', space=vmem, size = 0x10000, scoped, tag = 'output window, operand 2, single buffered']
    #allocation7 [shape = 'u8[65536]{0}', space=vmem, size = 0x10000, scoped, tag = 'output window, operand 3, single buffered']
    #allocation8 [shape = 's32[1]{0}', space=sflag, size = 0x4, scoped, tag = 'scoped memory for tpu_custom_call.1']
    %69 = vsyncpa [#allocation3], 0
    %70 = vsyncpa [#allocation5], 0
    %71 = vsyncpa [#allocation8], 0
    // Predicated region
    $region2: #{tpu_custom_call.1} parent=1 // pred_check
      _
    $region3: #{tpu_custom_call.1} parent=1 // pred_check_branch
      %73 = sbr.rel (0) target = $region5
    $region4: #{tpu_custom_call.1} parent=1 // pred_region
      _
    $region5: #{tpu_custom_call.1} parent=1 // pred_fallthru
      _
    // Predicated region
    $region6: #{tpu_custom_call.1} parent=1 // pred_check
      _
    $region7: #{tpu_custom_call.1} parent=1 // pred_check_branch
      %75 = sbr.rel (0) target = $region9
    $region8: #{tpu_custom_call.1} parent=1 // pred_region
      _
    $region9: #{tpu_custom_call.1} parent=1 // pred_fallthru
      _
    // Predicated region
    $region10: #{tpu_custom_call.1} parent=1 // pred_check
      _
    $region11: #{tpu_custom_call.1} parent=1 // pred_check_branch
      %77 = sbr.rel (0) target = $region13
    $region12: #{tpu_custom_call.1} parent=1 // pred_region
      _
    $region13: #{tpu_custom_call.1} parent=1 // pred_fallthru
      _
    // Predicated region
    $region14: #{tpu_custom_call.1} parent=1 // pred_check
      _
    $region15: #{tpu_custom_call.1} parent=1 // pred_check_branch
      %79 = sbr.rel (0) target = $region17
    $region16: #{tpu_custom_call.1} parent=1 // pred_region
      _
    $region17: #{tpu_custom_call.1} parent=1 // pred_fallthru
      _
    // Predicated region
    $region18: #{tpu_custom_call.1} parent=1 // pred_check
      _
    $region19: #{tpu_custom_call.1} parent=1 // pred_check_branch
      %81 = sbr.rel (0) target = $region21
    $region20: #{tpu_custom_call.1} parent=1 // pred_region
      _
    $region21: #{tpu_custom_call.1} parent=1 // pred_fallthru
      _
    // Predicated region
    $region22: #{tpu_custom_call.1} parent=1 // pred_check
      _
    $region23: #{tpu_custom_call.1} parent=1 // pred_check_branch
      %83 = sbr.rel (0) target = $region25
    $region24: #{tpu_custom_call.1} parent=1 // pred_region
      _
    $region25: #{tpu_custom_call.1} parent=1 // pred_fallthru
      _
    // Predicated region
    $region26: #{tpu_custom_call.1} parent=1 // pred_check
      _
    $region27: #{tpu_custom_call.1} parent=1 // pred_check_branch
      %85 = sbr.rel (0) target = $region29
    $region28: #{tpu_custom_call.1} parent=1 // pred_region
      _
    $region29: #{tpu_custom_call.1} parent=1 // pred_fallthru
      _
    // Predicated region
    $region30: #{tpu_custom_call.1} parent=1 // pred_check
      _
    $region31: #{tpu_custom_call.1} parent=1 // pred_check_branch
      %87 = sbr.rel (0) target = $region33
    $region32: #{tpu_custom_call.1} parent=1 // pred_region
      _
    $region33: #{tpu_custom_call.1} parent=1 // pred_fallthru
      _
    // Predicated region
    $region34: #{tpu_custom_call.1} parent=1 // pred_check
      _
    $region35: #{tpu_custom_call.1} parent=1 // pred_check_branch
      %89 = sbr.rel (0) target = $region37
    $region36: #{tpu_custom_call.1} parent=1 // pred_region
      _
    $region37: #{tpu_custom_call.1} parent=1 // pred_fallthru
      _
    // Predicated region
    $region38: #{tpu_custom_call.1} parent=1 // pred_check
      _
    $region39: #{tpu_custom_call.1} parent=1 // pred_check_branch
      %91 = sbr.rel (0) target = $region41
    $region40: #{tpu_custom_call.1} parent=1 // pred_region
      _
    $region41: #{tpu_custom_call.1} parent=1 // pred_fallthru
      _
    // Predicated region
    $region42: #{tpu_custom_call.1} parent=1 // pred_check
      _
    $region43: #{tpu_custom_call.1} parent=1 // pred_check_branch
      %93 = sbr.rel (0) target = $region45
    $region44: #{tpu_custom_call.1} parent=1 // pred_region
      _
    $region45: #{tpu_custom_call.1} parent=1 // pred_fallthru
      _
    // Predicated region
    $region46: #{tpu_custom_call.1} parent=1 // pred_check
      _
    $region47: #{tpu_custom_call.1} parent=1 // pred_check_branch
      %95 = sbr.rel (0) target = $region49
    $region48: #{tpu_custom_call.1} parent=1 // pred_region
      _
    $region49: #{tpu_custom_call.1} parent=1 // pred_fallthru
      _
    // Predicated region
    $region50: #{tpu_custom_call.1} parent=1 // pred_check
      _
    $region51: #{tpu_custom_call.1} parent=1 // pred_check_branch
      %97 = sbr.rel (0) target = $region53
    $region52: #{tpu_custom_call.1} parent=1 // pred_region
      _
    $region53: #{tpu_custom_call.1} parent=1 // pred_fallthru
      _
    // Predicated region
    $region54: #{tpu_custom_call.1} parent=1 // pred_check
      _
    $region55: #{tpu_custom_call.1} parent=1 // pred_check_branch
      %99 = sbr.rel (0) target = $region57
    $region56: #{tpu_custom_call.1} parent=1 // pred_region
      _
    $region57: #{tpu_custom_call.1} parent=1 // pred_fallthru
      _
    // Predicated region
    $region58: #{tpu_custom_call.1} parent=1 // pred_check
      _
    $region59: #{tpu_custom_call.1} parent=1 // pred_check_branch
      %101 = sbr.rel (0) target = $region61
    $region60: #{tpu_custom_call.1} parent=1 // pred_region
      _
    $region61: #{tpu_custom_call.1} parent=1 // pred_fallthru
      _
    // Predicated region
    $region62: #{tpu_custom_call.1} parent=1 // pred_check
      _
    $region63: #{tpu_custom_call.1} parent=1 // pred_check_branch
      %103 = sbr.rel (0) target = $region65
    $region64: #{tpu_custom_call.1} parent=1 // pred_region
      _
    $region65: #{tpu_custom_call.1} parent=1 // pred_fallthru
      _
    // Predicated region
    $region66: #{tpu_custom_call.1} parent=1 // pred_check
      _
    $region67: #{tpu_custom_call.1} parent=1 // pred_check_branch
      %105 = sbr.rel (0) target = $region69
    $region68: #{tpu_custom_call.1} parent=1 // pred_region
      _
    $region69: #{tpu_custom_call.1} parent=1 // pred_fallthru
      _
    // Predicated region
    $region70: #{tpu_custom_call.1} parent=1 // pred_check
      _
    $region71: #{tpu_custom_call.1} parent=1 // pred_check_branch
      %107 = sbr.rel (0) target = $region73
    $region72: #{tpu_custom_call.1} parent=1 // pred_region
      _
    $region73: #{tpu_custom_call.1} parent=1 // pred_fallthru
      _
    // Predicated region
    $region74: #{tpu_custom_call.1} parent=1 // pred_check
      _
    $region75: #{tpu_custom_call.1} parent=1 // pred_check_branch
      %109 = sbr.rel (0) target = $region77
    $region76: #{tpu_custom_call.1} parent=1 // pred_region
      _
    $region77: #{tpu_custom_call.1} parent=1 // pred_fallthru
      _
    // Predicated region
    $region78: #{tpu_custom_call.1} parent=1 // pred_check
      _
    $region79: #{tpu_custom_call.1} parent=1 // pred_check_branch
      %111 = sbr.rel (0) target = $region81
    $region80: #{tpu_custom_call.1} parent=1 // pred_region
      _
    $region81: #{tpu_custom_call.1} parent=1 // pred_fallthru
      _
    // Predicated region
    $region82: #{tpu_custom_call.1} parent=1 // pred_check
      _
    $region83: #{tpu_custom_call.1} parent=1 // pred_check_branch
      %113 = sbr.rel (0) target = $region85
    $region84: #{tpu_custom_call.1} parent=1 // pred_region
      _
    $region85: #{tpu_custom_call.1} parent=1 // pred_fallthru
      _
    // Predicated region
    $region86: #{tpu_custom_call.1} parent=1 // pred_check
      _
    $region87: #{tpu_custom_call.1} parent=1 // pred_check_branch
      %115 = sbr.rel (0) target = $region89
    $region88: #{tpu_custom_call.1} parent=1 // pred_region
      _
    $region89: #{tpu_custom_call.1} parent=1 // pred_fallthru
      _
    // Predicated region
    $region90: #{tpu_custom_call.1} parent=1 // pred_check
      _
    $region91: #{tpu_custom_call.1} parent=1 // pred_check_branch
      %117 = sbr.rel (0) target = $region93
    $region92: #{tpu_custom_call.1} parent=1 // pred_region
      _
    $region93: #{tpu_custom_call.1} parent=1 // pred_fallthru
      _
    // Predicated region
    $region94: #{tpu_custom_call.1} parent=1 // pred_check
      _
    $region95: #{tpu_custom_call.1} parent=1 // pred_check_branch
      %119 = sbr.rel (0) target = $region97
    $region96: #{tpu_custom_call.1} parent=1 // pred_region
      _
    $region97: #{tpu_custom_call.1} parent=1 // pred_fallthru
      _
    // Predicated region
    $region98: #{tpu_custom_call.1} parent=1 // pred_check
      _
    $region99: #{tpu_custom_call.1} parent=1 // pred_check_branch
      %121 = sbr.rel (0) target = $region101
    $region100: #{tpu_custom_call.1} parent=1 // pred_region
      _
    $region101: #{tpu_custom_call.1} parent=1 // pred_fallthru
      _
    // Predicated region
    $region102: #{tpu_custom_call.1} parent=1 // pred_check
      _
    $region103: #{tpu_custom_call.1} parent=1 // pred_check_branch
      %123 = sbr.rel (0) target = $region105
    $region104: #{tpu_custom_call.1} parent=1 // pred_region
      _
    $region105: #{tpu_custom_call.1} parent=1 // pred_fallthru
      _
    // Predicated region
    $region106: #{tpu_custom_call.1} parent=1 // pred_check
      _
    $region107: #{tpu_custom_call.1} parent=1 // pred_check_branch
      %125 = sbr.rel (0) target = $region109
    $region108: #{tpu_custom_call.1} parent=1 // pred_region
      _
    $region109: #{tpu_custom_call.1} parent=1 // pred_fallthru
      _
    // Predicated region
    $region110: #{tpu_custom_call.1} parent=1 // pred_check
      _
    $region111: #{tpu_custom_call.1} parent=1 // pred_check_branch
      %127 = sbr.rel (0) target = $region113
    $region112: #{tpu_custom_call.1} parent=1 // pred_region
      _
    $region113: #{tpu_custom_call.1} parent=1 // pred_fallthru
      _
    %v129 = vld [vmem:[%s1] sm:$0xff]
    %v130 = vld [vmem:[%s1 + $0x8] sm:$0xff]
    %v131 = vld [vmem:[%s1 + $0x10] sm:$0xff]
    %v132 = vld [vmem:[%s1 + $0x18] sm:$0xff]
    %v133 = vld [vmem:[%s1 + $0x20] sm:$0xff]
    %v134 = vld [vmem:[%s1 + $0x28] sm:$0xff]
    %v135 = vld [vmem:[%s1 + $0x30] sm:$0xff]
    %v136 = vld [vmem:[%s1 + $0x38] sm:$0xff]
    %v137 = vld [vmem:[%s1 + $0x40] sm:$0xff]
    %v138 = vld [vmem:[%s1 + $0x48] sm:$0xff]
    %v139 = vld [vmem:[%s1 + $0x50] sm:$0xff]
    %v140 = vld [vmem:[%s1 + $0x58] sm:$0xff]
    %v141 = vld [vmem:[%s1 + $0x60] sm:$0xff]
    %v142 = vld [vmem:[%s1 + $0x68] sm:$0xff]
    %v143 = vld [vmem:[%s1 + $0x70] sm:$0xff]
    %v144 = vld [vmem:[%s1 + $0x78] sm:$0xff]
    %v145 = vld [vmem:[%s3] sm:$0xff]
    %v146 = vld [vmem:[%s3 + $0x8] sm:$0xff]
    %v147 = vld [vmem:[%s3 + $0x10] sm:$0xff]
    %v148 = vld [vmem:[%s3 + $0x18] sm:$0xff]
    %v149 = vld [vmem:[%s3 + $0x20] sm:$0xff]
    %v150 = vld [vmem:[%s3 + $0x28] sm:$0xff]
    %v151 = vld [vmem:[%s3 + $0x30] sm:$0xff]
    %v152 = vld [vmem:[%s3 + $0x38] sm:$0xff]
    %v153 = vld [vmem:[%s3 + $0x40] sm:$0xff]
    %v154 = vld [vmem:[%s3 + $0x48] sm:$0xff]
    %v155 = vld [vmem:[%s3 + $0x50] sm:$0xff]
    %v156 = vld [vmem:[%s3 + $0x58] sm:$0xff]
    %v157 = vld [vmem:[%s3 + $0x60] sm:$0xff]
    %v158 = vld [vmem:[%s3 + $0x68] sm:$0xff]
    %v159 = vld [vmem:[%s3 + $0x70] sm:$0xff]
    %v160 = vld [vmem:[%s3 + $0x78] sm:$0xff]
    %v161 = vld [vmem:[%s5] sm:$0xf]
    %v162 = vld [vmem:[%s5 + $0x4] sm:$0xf]
    %v163 = vld [vmem:[%s5 + $0x8] sm:$0xf]
    %v164 = vld [vmem:[%s5 + $0xc] sm:$0xf]
    %v165 = vld [vmem:[%s5 + $0x10] sm:$0xf]
    %v166 = vld [vmem:[%s5 + $0x14] sm:$0xf]
    %v167 = vld [vmem:[%s5 + $0x18] sm:$0xf]
    %v168 = vld [vmem:[%s5 + $0x1c] sm:$0xf]
    %v169 = vld [vmem:[%s5 + $0x20] sm:$0xf]
    %v170 = vld [vmem:[%s5 + $0x24] sm:$0xf]
    %v171 = vld [vmem:[%s5 + $0x28] sm:$0xf]
    %v172 = vld [vmem:[%s5 + $0x2c] sm:$0xf]
    %v173 = vld [vmem:[%s5 + $0x30] sm:$0xf]
    %v174 = vld [vmem:[%s5 + $0x34] sm:$0xf]
    %v175 = vld [vmem:[%s5 + $0x38] sm:$0xf]
    %v176 = vld [vmem:[%s5 + $0x3c] sm:$0xf]
    %v177 = vld [vmem:[%s7] sm:$0xf]
    %v178 = vld [vmem:[%s7 + $0x4] sm:$0xf]
    %v179 = vld [vmem:[%s7 + $0x8] sm:$0xf]
    %v180 = vld [vmem:[%s7 + $0xc] sm:$0xf]
    %v181 = vld [vmem:[%s7 + $0x10] sm:$0xf]
    %v182 = vld [vmem:[%s7 + $0x14] sm:$0xf]
    %v183 = vld [vmem:[%s7 + $0x18] sm:$0xf]
    %v184 = vld [vmem:[%s7 + $0x1c] sm:$0xf]
    %v185 = vld [vmem:[%s7 + $0x20] sm:$0xf]
    %v186 = vld [vmem:[%s7 + $0x24] sm:$0xf]
    %v187 = vld [vmem:[%s7 + $0x28] sm:$0xf]
    %v188 = vld [vmem:[%s7 + $0x2c] sm:$0xf]
    %v189 = vld [vmem:[%s7 + $0x30] sm:$0xf]
    %v190 = vld [vmem:[%s7 + $0x34] sm:$0xf]
    %v191 = vld [vmem:[%s7 + $0x38] sm:$0xf]
    %v192 = vld [vmem:[%s7 + $0x3c] sm:$0xf]
    %v193 = vunpack.c.l.bf16 %v177
    %v194 = vunpack.c.l.bf16 %v178
    %v195 = vunpack.c.l.bf16 %v179
    %v196 = vunpack.c.l.bf16 %v180
    %v197 = vunpack.c.l.bf16 %v181
    %v198 = vunpack.c.l.bf16 %v182
    %v199 = vunpack.c.l.bf16 %v183
    %v200 = vunpack.c.l.bf16 %v184
    %v201 = vunpack.c.l.bf16 %v185
    %v202 = vunpack.c.l.bf16 %v186
    %v203 = vunpack.c.l.bf16 %v187
    %v204 = vunpack.c.l.bf16 %v188
    %v205 = vunpack.c.l.bf16 %v189
    %v206 = vunpack.c.l.bf16 %v190
    %v207 = vunpack.c.l.bf16 %v191
    %v208 = vunpack.c.l.bf16 %v192
    %209 = vxpose.xlu0.b32.start [1/16] %v193, 128
    %210 = vxpose.xlu0.b32.cont [2/16] %v194, 128
    %211 = vxpose.xlu0.b32.cont [3/16] %v195, 128
    %212 = vxpose.xlu0.b32.cont [4/16] %v196, 128
    %213 = vxpose.xlu0.b32.cont [5/16] %v197, 128
    %214 = vxpose.xlu0.b32.cont [6/16] %v198, 128
    %215 = vxpose.xlu0.b32.cont [7/16] %v199, 128
    %216 = vxpose.xlu0.b32.cont [8/16] %v200, 128
    %217 = vxpose.xlu0.b32.cont [9/16] %v201, 128
    %218 = vxpose.xlu0.b32.cont [10/16] %v202, 128
    %219 = vxpose.xlu0.b32.cont [11/16] %v203, 128
    %220 = vxpose.xlu0.b32.cont [12/16] %v204, 128
    %221 = vxpose.xlu0.b32.cont [13/16] %v205, 128
    %222 = vxpose.xlu0.b32.cont [14/16] %v206, 128
    %223 = vxpose.xlu0.b32.cont [15/16] %v207, 128
    %224 = vxpose.xlu0.b32.end [16/16] %v208, 128
    %v225 = vpop.trf.xlu0
    %v226 = vpop.trf.xlu0
    %v227 = vpop.trf.xlu0
    %v228 = vpop.trf.xlu0
    %v229 = vpop.trf.xlu0
    %v230 = vpop.trf.xlu0
    %v231 = vpop.trf.xlu0
    %v232 = vpop.trf.xlu0
    %v233 = vpop.trf.xlu0
    %v234 = vpop.trf.xlu0
    %v235 = vpop.trf.xlu0
    %v236 = vpop.trf.xlu0
    %v237 = vpop.trf.xlu0
    %v238 = vpop.trf.xlu0
    %v239 = vpop.trf.xlu0
    %v240 = vpop.trf.xlu0
    %v241 = vpack.c.bf16 %v226, %v225
    %v242 = vpack.c.bf16 %v228, %v227
    %v243 = vpack.c.bf16 %v230, %v229
    %v244 = vpack.c.bf16 %v232, %v231
    %v245 = vpack.c.bf16 %v234, %v233
    %v246 = vpack.c.bf16 %v236, %v235
    %v247 = vpack.c.bf16 %v238, %v237
    %v248 = vpack.c.bf16 %v240, %v239
    %v249 = vld [vmem:[%s11] sm:$0xff]
    %v250 = vld [vmem:[%s11 + $0x8] sm:$0xff]
    %v251 = vld [vmem:[%s11 + $0x10] sm:$0xff]
    %v252 = vld [vmem:[%s13] sm:$0x1]
    %v254 = vlaneseq
    %v255 = vshrl.u32 %v254, 7
    %v256 = vsub.s32 0, %v255
    %v257 = vrot.slane %v252, %v256
    %vm259 = vcmask 195584
    %v261 = vsel %vm259, %v129, 0
    %v264 = vsel %vm259, %v130, 0
    %v267 = vsel %vm259, %v131, 0
    %v270 = vsel %vm259, %v132, 0
    %v273 = vsel %vm259, %v133, 0
    %v276 = vsel %vm259, %v134, 0
    %v279 = vsel %vm259, %v135, 0
    %v282 = vsel %vm259, %v136, 0
    %v285 = vsel %vm259, %v137, 0
    %v288 = vsel %vm259, %v138, 0
    %v291 = vsel %vm259, %v139, 0
    %v294 = vsel %vm259, %v140, 0
    %v297 = vsel %vm259, %v141, 0
    %v300 = vsel %vm259, %v142, 0
    %v303 = vsel %vm259, %v143, 0
    %v306 = vsel %vm259, %v144, 0
    %308 = vmatprep.subr.mxu0 0.0
    %309 = vmatpush1.msra.mxu0 %v249
    %310 = vmatprep.subr.mxu0 0.0
    %311 = vmatpush1.msra.mxu0 %v250
    %312 = vmatprep.subr.mxu0 0.0
    %313 = vmatpush1.msra.mxu0 %v251
    %314 = vmatprep.subr.mxu0 0.0
    %315 = vmatpush1.msra.mxu0 0.0
    %316 = vmatprep.subr.mxu0 0.0
    %317 = vmatpush1.msra.mxu0 0.0
    %318 = vmatprep.subr.mxu0 0.0
    %319 = vmatpush1.msra.mxu0 0.0
    %320 = vmatprep.subr.mxu0 0.0
    %321 = vmatpush1.msra.mxu0 0.0
    %322 = vmatprep.subr.mxu0 0.0
    %323 = vmatpush1.msra.mxu0 0.0
    %324 = vmatprep.subr.mxu0 0.0
    %325 = vmatpush1.msra.mxu0 0.0
    %326 = vmatprep.subr.mxu0 0.0
    %327 = vmatpush1.msra.mxu0 0.0
    %328 = vmatprep.subr.mxu0 0.0
    %329 = vmatpush1.msra.mxu0 0.0
    %330 = vmatprep.subr.mxu0 0.0
    %331 = vmatpush1.msra.mxu0 0.0
    %332 = vmatprep.subr.mxu0 0.0
    %333 = vmatpush1.msra.mxu0 0.0
    %334 = vmatprep.subr.mxu0 0.0
    %335 = vmatpush1.msra.mxu0 0.0
    %336 = vmatprep.subr.mxu0 0.0
    %337 = vmatpush1.msra.mxu0 0.0
    %338 = vmatprep.subr.mxu0 0.0
    %339 = vmatpush1.msra.mxu0 0.0
    %340 = vmatprep.subr.mxu0 0.0
    %341 = vmatpush1.msra.mxu0 0.0
    %342 = vmatprep.subr.mxu0 0.0
    %343 = vmatpush1.msra.mxu0 0.0
    %344 = vmatprep.subr.mxu0 0.0
    %345 = vmatpush1.msra.mxu0 0.0
    %346 = vmatprep.subr.mxu0 0.0
    %347 = vmatpush1.msra.mxu0 0.0
    %348 = vmatprep.subr.mxu0 0.0
    %349 = vmatpush1.msra.mxu0 0.0
    %350 = vmatprep.subr.mxu0 0.0
    %351 = vmatpush1.msra.mxu0 0.0
    %352 = vmatprep.subr.mxu0 0.0
    %353 = vmatpush1.msra.mxu0 0.0
    %354 = vmatprep.subr.mxu0 0.0
    %355 = vmatpush1.msra.mxu0 0.0
    %356 = vmatprep.subr.mxu0 0.0
    %357 = vmatpush1.msra.mxu0 0.0
    %358 = vmatprep.subr.mxu0 0.0
    %359 = vmatpush1.msra.mxu0 0.0
    %360 = vmatprep.subr.mxu0 0.0
    %361 = vmatpush1.msra.mxu0 0.0
    %362 = vmatprep.subr.mxu0 0.0
    %363 = vmatpush1.msra.mxu0 0.0
    %364 = vmatprep.subr.mxu0 0.0
    %365 = vmatpush1.msra.mxu0 0.0
    %366 = vmatprep.subr.mxu0 0.0
    %367 = vmatpush1.msra.mxu0 0.0
    %368 = vmatprep.subr.mxu0 0.0
    %369 = vmatpush1.msra.mxu0 0.0
    %370 = vmatprep.subr.mxu0 0.0
    %371 = vmatpush1.msra.mxu0 0.0
    %372 = vmatprep.mubr.f32.mxu0 0.0
    %373 = vmatmul.mubr.f32.gmra.mrb[0].mxu0 %v261
    %v374 = vpop.f32.mrb[0].mxu0
    %v375 = vadd.f32 %v257, %v374
    %v376 = vpop.f32.mrb[0].mxu0
    %377 = vmatprep.mubr.f32.mxu0 0.0
    %378 = vmatmul.mubr.f32.gmra.mrb[0].mxu0 %v264
    %v379 = vpop.f32.mrb[0].mxu0
    %v380 = vadd.f32 %v257, %v379
    %v381 = vpop.f32.mrb[0].mxu0
    %382 = vmatprep.mubr.f32.mxu0 0.0
    %383 = vmatmul.mubr.f32.gmra.mrb[0].mxu0 %v267
    %v384 = vpop.f32.mrb[0].mxu0
    %v385 = vadd.f32 %v257, %v384
    %v386 = vpop.f32.mrb[0].mxu0
    %387 = vmatprep.mubr.f32.mxu0 0.0
    %388 = vmatmul.mubr.f32.gmra.mrb[0].mxu0 %v270
    %v389 = vpop.f32.mrb[0].mxu0
    %v390 = vadd.f32 %v257, %v389
    %v391 = vpop.f32.mrb[0].mxu0
    %392 = vmatprep.mubr.f32.mxu0 0.0
    %393 = vmatmul.mubr.f32.gmra.mrb[0].mxu0 %v273
    %v394 = vpop.f32.mrb[0].mxu0
    %v395 = vadd.f32 %v257, %v394
    %v396 = vpop.f32.mrb[0].mxu0
    %397 = vmatprep.mubr.f32.mxu0 0.0
    %398 = vmatmul.mubr.f32.gmra.mrb[0].mxu0 %v276
    %v399 = vpop.f32.mrb[0].mxu0
    %v400 = vadd.f32 %v257, %v399
    %v401 = vpop.f32.mrb[0].mxu0
    %402 = vmatprep.mubr.f32.mxu0 0.0
    %403 = vmatmul.mubr.f32.gmra.mrb[0].mxu0 %v279
    %v404 = vpop.f32.mrb[0].mxu0
    %v405 = vadd.f32 %v257, %v404
    %v406 = vpop.f32.mrb[0].mxu0
    %407 = vmatprep.mubr.f32.mxu0 0.0
    %408 = vmatmul.mubr.f32.gmra.mrb[0].mxu0 %v282
    %v409 = vpop.f32.mrb[0].mxu0
    %v410 = vadd.f32 %v257, %v409
    %v411 = vpop.f32.mrb[0].mxu0
    %412 = vmatprep.mubr.f32.mxu0 0.0
    %413 = vmatmul.mubr.f32.gmra.mrb[0].mxu0 %v285
    %v414 = vpop.f32.mrb[0].mxu0
    %v415 = vadd.f32 %v257, %v414
    %v416 = vpop.f32.mrb[0].mxu0
    %417 = vmatprep.mubr.f32.mxu0 0.0
    %418 = vmatmul.mubr.f32.gmra.mrb[0].mxu0 %v288
    %v419 = vpop.f32.mrb[0].mxu0
    %v420 = vadd.f32 %v257, %v419
    %v421 = vpop.f32.mrb[0].mxu0
    %422 = vmatprep.mubr.f32.mxu0 0.0
    %423 = vmatmul.mubr.f32.gmra.mrb[0].mxu0 %v291
    %v424 = vpop.f32.mrb[0].mxu0
    %v425 = vadd.f32 %v257, %v424
    %v426 = vpop.f32.mrb[0].mxu0
    %427 = vmatprep.mubr.f32.mxu0 0.0
    %428 = vmatmul.mubr.f32.gmra.mrb[0].mxu0 %v294
    %v429 = vpop.f32.mrb[0].mxu0
    %v430 = vadd.f32 %v257, %v429
    %v431 = vpop.f32.mrb[0].mxu0
    %432 = vmatprep.mubr.f32.mxu0 0.0
    %433 = vmatmul.mubr.f32.gmra.mrb[0].mxu0 %v297
    %v434 = vpop.f32.mrb[0].mxu0
    %v435 = vadd.f32 %v257, %v434
    %v436 = vpop.f32.mrb[0].mxu0
    %437 = vmatprep.mubr.f32.mxu0 0.0
    %438 = vmatmul.mubr.f32.gmra.mrb[0].mxu0 %v300
    %v439 = vpop.f32.mrb[0].mxu0
    %v440 = vadd.f32 %v257, %v439
    %v441 = vpop.f32.mrb[0].mxu0
    %442 = vmatprep.mubr.f32.mxu0 0.0
    %443 = vmatmul.mubr.f32.gmra.mrb[0].mxu0 %v303
    %v444 = vpop.f32.mrb[0].mxu0
    %v445 = vadd.f32 %v257, %v444
    %v446 = vpop.f32.mrb[0].mxu0
    %447 = vmatprep.mubr.f32.mxu0 0.0
    %448 = vmatmul.mubr.f32.gmra.mrb[0].mxu0 %v306
    %v449 = vpop.f32.mrb[0].mxu0
    %v450 = vadd.f32 %v257, %v449
    %v451 = vpop.f32.mrb[0].mxu0
    %452 = vdwg.mxu0
    %v453 = vld [vmem:[%s15] sm:$0x1]
    %455 = vset.pattern.permute.xlu0 0
    %456 = vperm.xlu0 %455, %v145
    %v457 = vpop.permute.xlu0 %456
    %460 = vset.pattern.permute.xlu0 0
    %461 = vperm.xlu0 %460, %v146
    %v462 = vpop.permute.xlu0 %461
    %465 = vset.pattern.permute.xlu0 0
    %466 = vperm.xlu0 %465, %v147
    %v467 = vpop.permute.xlu0 %466
    %470 = vset.pattern.permute.xlu0 0
    %471 = vperm.xlu0 %470, %v148
    %v472 = vpop.permute.xlu0 %471
    %475 = vset.pattern.permute.xlu0 0
    %476 = vperm.xlu0 %475, %v149
    %v477 = vpop.permute.xlu0 %476
    %480 = vset.pattern.permute.xlu0 0
    %481 = vperm.xlu0 %480, %v150
    %v482 = vpop.permute.xlu0 %481
    %485 = vset.pattern.permute.xlu0 0
    %486 = vperm.xlu0 %485, %v151
    %v487 = vpop.permute.xlu0 %486
    %490 = vset.pattern.permute.xlu0 0
    %491 = vperm.xlu0 %490, %v152
    %v492 = vpop.permute.xlu0 %491
    %495 = vset.pattern.permute.xlu0 0
    %496 = vperm.xlu0 %495, %v153
    %v497 = vpop.permute.xlu0 %496
    %500 = vset.pattern.permute.xlu0 0
    %501 = vperm.xlu0 %500, %v154
    %v502 = vpop.permute.xlu0 %501
    %505 = vset.pattern.permute.xlu0 0
    %506 = vperm.xlu0 %505, %v155
    %v507 = vpop.permute.xlu0 %506
    %510 = vset.pattern.permute.xlu0 0
    %511 = vperm.xlu0 %510, %v156
    %v512 = vpop.permute.xlu0 %511
    %515 = vset.pattern.permute.xlu0 0
    %516 = vperm.xlu0 %515, %v157
    %v517 = vpop.permute.xlu0 %516
    %520 = vset.pattern.permute.xlu0 0
    %521 = vperm.xlu0 %520, %v158
    %v522 = vpop.permute.xlu0 %521
    %525 = vset.pattern.permute.xlu0 0
    %526 = vperm.xlu0 %525, %v159
    %v527 = vpop.permute.xlu0 %526
    %530 = vset.pattern.permute.xlu0 0
    %531 = vperm.xlu0 %530, %v160
    %v532 = vpop.permute.xlu0 %531
    %v535 = vlaneseq
    %v536 = vshrl.u32 %v535, 7
    %v537 = vsub.s32 0, %v536
    %v538 = vrot.slane %v453, %v537
    %v540 = vmul.f32 %v457, %v538
    %v541 = vmul.f32 %v462, %v538
    %v542 = vmul.f32 %v467, %v538
    %v543 = vmul.f32 %v472, %v538
    %v544 = vmul.f32 %v477, %v538
    %v545 = vmul.f32 %v482, %v538
    %v546 = vmul.f32 %v487, %v538
    %v547 = vmul.f32 %v492, %v538
    %v548 = vmul.f32 %v497, %v538
    %v549 = vmul.f32 %v502, %v538
    %v550 = vmul.f32 %v507, %v538
    %v551 = vmul.f32 %v512, %v538
    %v552 = vmul.f32 %v517, %v538
    %v553 = vmul.f32 %v522, %v538
    %v554 = vmul.f32 %v527, %v538
    %v555 = vmul.f32 %v532, %v538
    %v556 = vpack.c.bf16 %v380, %v375
    %v557 = vpack.c.bf16 %v390, %v385
    %v558 = vpack.c.bf16 %v400, %v395
    %v559 = vpack.c.bf16 %v410, %v405
    %v560 = vpack.c.bf16 %v420, %v415
    %v561 = vpack.c.bf16 %v430, %v425
    %v562 = vpack.c.bf16 %v440, %v435
    %v563 = vpack.c.bf16 %v450, %v445
    %v580 = vunpack.c.l.b16 %v161
    %v581 = vunpack.c.l.b16 %v162
    %v582 = vunpack.c.l.b16 %v163
    %v583 = vunpack.c.l.b16 %v164
    %v584 = vunpack.c.l.b16 %v165
    %v585 = vunpack.c.l.b16 %v166
    %v586 = vunpack.c.l.b16 %v167
    %v587 = vunpack.c.l.b16 %v168
    %v588 = vunpack.c.l.b16 %v169
    %v589 = vunpack.c.l.b16 %v170
    %v590 = vunpack.c.l.b16 %v171
    %v591 = vunpack.c.l.b16 %v172
    %v592 = vunpack.c.l.b16 %v173
    %v593 = vunpack.c.l.b16 %v174
    %v594 = vunpack.c.l.b16 %v175
    %v595 = vunpack.c.l.b16 %v176
    %v596 = vpack.c.b16 %v581, %v580
    %v597 = vpack.c.b16 %v583, %v582
    %v598 = vpack.c.b16 %v585, %v584
    %v599 = vpack.c.b16 %v587, %v586
    %v600 = vpack.c.b16 %v589, %v588
    %v601 = vpack.c.b16 %v591, %v590
    %v602 = vpack.c.b16 %v593, %v592
    %v603 = vpack.c.b16 %v595, %v594
    %612 = vmatprep.subr.bf16.mxu0 0
    %613 = vmatpush1.bf16.msra.mxu0 %v556
    %614 = vmatprep.subr.bf16.mxu0 0
    %615 = vmatpush1.bf16.msra.mxu0 %v557
    %616 = vmatprep.subr.bf16.mxu0 0
    %617 = vmatpush1.bf16.msra.mxu0 %v558
    %618 = vmatprep.subr.bf16.mxu0 0
    %619 = vmatpush1.bf16.msra.mxu0 %v559
    %620 = vmatprep.subr.bf16.mxu0 0
    %621 = vmatpush1.bf16.msra.mxu0 %v560
    %622 = vmatprep.subr.bf16.mxu0 0
    %623 = vmatpush1.bf16.msra.mxu0 %v561
    %624 = vmatprep.subr.bf16.mxu0 0
    %625 = vmatpush1.bf16.msra.mxu0 %v562
    %626 = vmatprep.subr.bf16.mxu0 0
    %627 = vmatpush1.bf16.msra.mxu0 %v563
    %628 = vmatprep.subr.bf16.mxu0 0
    %629 = vmatpush1.bf16.msra.mxu0 0
    %630 = vmatprep.subr.bf16.mxu0 0
    %631 = vmatpush1.bf16.msra.mxu0 0
    %632 = vmatprep.subr.bf16.mxu0 0
    %633 = vmatpush1.bf16.msra.mxu0 0
    %634 = vmatprep.subr.bf16.mxu0 0
    %635 = vmatpush1.bf16.msra.mxu0 0
    %636 = vmatprep.subr.bf16.mxu0 0
    %637 = vmatpush1.bf16.msra.mxu0 0
    %638 = vmatprep.subr.bf16.mxu0 0
    %639 = vmatpush1.bf16.msra.mxu0 0
    %640 = vmatprep.subr.bf16.mxu0 0
    %641 = vmatpush1.bf16.msra.mxu0 0
    %642 = vmatprep.subr.bf16.mxu0 0
    %643 = vmatpush1.bf16.msra.mxu0 0
    %644 = vmatprep.mubr.bf16.mxu0 0
    %645 = vmatmul.mubr.bf16.gmra.mrb[0].mxu0 %v596
    %v646 = vpop.f32.mrb[0].mxu0
    %v647 = vadd.f32 %v540, %v646
    %v648 = vpop.f32.mrb[0].mxu0
    %v649 = vpop.f32.mrb[0].mxu0
    %v650 = vadd.f32 %v541, %v649
    %v651 = vpop.f32.mrb[0].mxu0
    %652 = vmatprep.mubr.bf16.mxu0 0
    %653 = vmatmul.mubr.bf16.gmra.mrb[0].mxu0 %v597
    %v654 = vpop.f32.mrb[0].mxu0
    %v655 = vadd.f32 %v542, %v654
    %v656 = vpop.f32.mrb[0].mxu0
    %v657 = vpop.f32.mrb[0].mxu0
    %v658 = vadd.f32 %v543, %v657
    %v659 = vpop.f32.mrb[0].mxu0
    %660 = vmatprep.mubr.bf16.mxu0 0
    %661 = vmatmul.mubr.bf16.gmra.mrb[0].mxu0 %v598
    %v662 = vpop.f32.mrb[0].mxu0
    %v663 = vadd.f32 %v544, %v662
    %v664 = vpop.f32.mrb[0].mxu0
    %v665 = vpop.f32.mrb[0].mxu0
    %v666 = vadd.f32 %v545, %v665
    %v667 = vpop.f32.mrb[0].mxu0
    %668 = vmatprep.mubr.bf16.mxu0 0
    %669 = vmatmul.mubr.bf16.gmra.mrb[0].mxu0 %v599
    %v670 = vpop.f32.mrb[0].mxu0
    %v671 = vadd.f32 %v546, %v670
    %v672 = vpop.f32.mrb[0].mxu0
    %v673 = vpop.f32.mrb[0].mxu0
    %v674 = vadd.f32 %v547, %v673
    %v675 = vpop.f32.mrb[0].mxu0
    %676 = vmatprep.mubr.bf16.mxu0 0
    %677 = vmatmul.mubr.bf16.gmra.mrb[0].mxu0 %v600
    %v678 = vpop.f32.mrb[0].mxu0
    %v679 = vadd.f32 %v548, %v678
    %v680 = vpop.f32.mrb[0].mxu0
    %v681 = vpop.f32.mrb[0].mxu0
    %v682 = vadd.f32 %v549, %v681
    %v683 = vpop.f32.mrb[0].mxu0
    %684 = vmatprep.mubr.bf16.mxu0 0
    %685 = vmatmul.mubr.bf16.gmra.mrb[0].mxu0 %v601
    %v686 = vpop.f32.mrb[0].mxu0
    %v687 = vadd.f32 %v550, %v686
    %v688 = vpop.f32.mrb[0].mxu0
    %v689 = vpop.f32.mrb[0].mxu0
    %v690 = vadd.f32 %v551, %v689
    %v691 = vpop.f32.mrb[0].mxu0
    %692 = vmatprep.mubr.bf16.mxu0 0
    %693 = vmatmul.mubr.bf16.gmra.mrb[0].mxu0 %v602
    %v694 = vpop.f32.mrb[0].mxu0
    %v695 = vadd.f32 %v552, %v694
    %v696 = vpop.f32.mrb[0].mxu0
    %v697 = vpop.f32.mrb[0].mxu0
    %v698 = vadd.f32 %v553, %v697
    %v699 = vpop.f32.mrb[0].mxu0
    %700 = vmatprep.mubr.bf16.mxu0 0
    %701 = vmatmul.mubr.bf16.gmra.mrb[0].mxu0 %v603
    %v702 = vpop.f32.mrb[0].mxu0
    %v703 = vadd.f32 %v554, %v702
    %v704 = vpop.f32.mrb[0].mxu0
    %v705 = vpop.f32.mrb[0].mxu0
    %v706 = vadd.f32 %v555, %v705
    %v707 = vpop.f32.mrb[0].mxu0
    %708 = vdwg.mxu0
    %v725 = vunpack.c.l.b16 %v177
    %v726 = vunpack.c.l.b16 %v178
    %v727 = vunpack.c.l.b16 %v179
    %v728 = vunpack.c.l.b16 %v180
    %v729 = vunpack.c.l.b16 %v181
    %v730 = vunpack.c.l.b16 %v182
    %v731 = vunpack.c.l.b16 %v183
    %v732 = vunpack.c.l.b16 %v184
    %v733 = vunpack.c.l.b16 %v185
    %v734 = vunpack.c.l.b16 %v186
    %v735 = vunpack.c.l.b16 %v187
    %v736 = vunpack.c.l.b16 %v188
    %v737 = vunpack.c.l.b16 %v189
    %v738 = vunpack.c.l.b16 %v190
    %v739 = vunpack.c.l.b16 %v191
    %v740 = vunpack.c.l.b16 %v192
    %v741 = vpack.c.b16 %v726, %v725
    %v742 = vpack.c.b16 %v728, %v727
    %v743 = vpack.c.b16 %v730, %v729
    %v744 = vpack.c.b16 %v732, %v731
    %v745 = vpack.c.b16 %v734, %v733
    %v746 = vpack.c.b16 %v736, %v735
    %v747 = vpack.c.b16 %v738, %v737
    %v748 = vpack.c.b16 %v740, %v739
    %765 = vrot.lane.b32.xlu0 %v556, 64
    %v766 = vpop.permute.xlu0 %765
    %767 = vrot.lane.b32.xlu0 %v557, 64
    %v768 = vpop.permute.xlu0 %767
    %769 = vrot.lane.b32.xlu0 %v558, 64
    %v770 = vpop.permute.xlu0 %769
    %771 = vrot.lane.b32.xlu0 %v559, 64
    %v772 = vpop.permute.xlu0 %771
    %773 = vrot.lane.b32.xlu0 %v560, 64
    %v774 = vpop.permute.xlu0 %773
    %775 = vrot.lane.b32.xlu0 %v561, 64
    %v776 = vpop.permute.xlu0 %775
    %777 = vrot.lane.b32.xlu0 %v562, 64
    %v778 = vpop.permute.xlu0 %777
    %779 = vrot.lane.b32.xlu0 %v563, 64
    %v780 = vpop.permute.xlu0 %779
    %789 = vmatprep.subr.bf16.mxu0 0
    %790 = vmatpush1.bf16.msra.mxu0 %v766
    %791 = vmatprep.subr.bf16.mxu0 0
    %792 = vmatpush1.bf16.msra.mxu0 %v768
    %793 = vmatprep.subr.bf16.mxu0 0
    %794 = vmatpush1.bf16.msra.mxu0 %v770
    %795 = vmatprep.subr.bf16.mxu0 0
    %796 = vmatpush1.bf16.msra.mxu0 %v772
    %797 = vmatprep.subr.bf16.mxu0 0
    %798 = vmatpush1.bf16.msra.mxu0 %v774
    %799 = vmatprep.subr.bf16.mxu0 0
    %800 = vmatpush1.bf16.msra.mxu0 %v776
    %801 = vmatprep.subr.bf16.mxu0 0
    %802 = vmatpush1.bf16.msra.mxu0 %v778
    %803 = vmatprep.subr.bf16.mxu0 0
    %804 = vmatpush1.bf16.msra.mxu0 %v780
    %805 = vmatprep.subr.bf16.mxu0 0
    %806 = vmatpush1.bf16.msra.mxu0 0
    %807 = vmatprep.subr.bf16.mxu0 0
    %808 = vmatpush1.bf16.msra.mxu0 0
    %809 = vmatprep.subr.bf16.mxu0 0
    %810 = vmatpush1.bf16.msra.mxu0 0
    %811 = vmatprep.subr.bf16.mxu0 0
    %812 = vmatpush1.bf16.msra.mxu0 0
    %813 = vmatprep.subr.bf16.mxu0 0
    %814 = vmatpush1.bf16.msra.mxu0 0
    %815 = vmatprep.subr.bf16.mxu0 0
    %816 = vmatpush1.bf16.msra.mxu0 0
    %817 = vmatprep.subr.bf16.mxu0 0
    %818 = vmatpush1.bf16.msra.mxu0 0
    %819 = vmatprep.subr.bf16.mxu0 0
    %820 = vmatpush1.bf16.msra.mxu0 0
    %821 = vmatprep.mubr.bf16.mxu0 0
    %822 = vmatmul.mubr.bf16.gmra.mrb[0].mxu0 %v741
    %v823 = vpop.f32.mrb[0].mxu0
    %v824 = vadd.f32 0.0, %v823
    %v825 = vpop.f32.mrb[0].mxu0
    %v826 = vpop.f32.mrb[0].mxu0
    %v827 = vadd.f32 0.0, %v826
    %v828 = vpop.f32.mrb[0].mxu0
    %829 = vmatprep.mubr.bf16.mxu0 0
    %830 = vmatmul.mubr.bf16.gmra.mrb[0].mxu0 %v742
    %v831 = vpop.f32.mrb[0].mxu0
    %v832 = vadd.f32 0.0, %v831
    %v833 = vpop.f32.mrb[0].mxu0
    %v834 = vpop.f32.mrb[0].mxu0
    %v835 = vadd.f32 0.0, %v834
    %v836 = vpop.f32.mrb[0].mxu0
    %837 = vmatprep.mubr.bf16.mxu0 0
    %838 = vmatmul.mubr.bf16.gmra.mrb[0].mxu0 %v743
    %v839 = vpop.f32.mrb[0].mxu0
    %v840 = vadd.f32 0.0, %v839
    %v841 = vpop.f32.mrb[0].mxu0
    %v842 = vpop.f32.mrb[0].mxu0
    %v843 = vadd.f32 0.0, %v842
    %v844 = vpop.f32.mrb[0].mxu0
    %845 = vmatprep.mubr.bf16.mxu0 0
    %846 = vmatmul.mubr.bf16.gmra.mrb[0].mxu0 %v744
    %v847 = vpop.f32.mrb[0].mxu0
    %v848 = vadd.f32 0.0, %v847
    %v849 = vpop.f32.mrb[0].mxu0
    %v850 = vpop.f32.mrb[0].mxu0
    %v851 = vadd.f32 0.0, %v850
    %v852 = vpop.f32.mrb[0].mxu0
    %853 = vmatprep.mubr.bf16.mxu0 0
    %854 = vmatmul.mubr.bf16.gmra.mrb[0].mxu0 %v745
    %v855 = vpop.f32.mrb[0].mxu0
    %v856 = vadd.f32 0.0, %v855
    %v857 = vpop.f32.mrb[0].mxu0
    %v858 = vpop.f32.mrb[0].mxu0
    %v859 = vadd.f32 0.0, %v858
    %v860 = vpop.f32.mrb[0].mxu0
    %861 = vmatprep.mubr.bf16.mxu0 0
    %862 = vmatmul.mubr.bf16.gmra.mrb[0].mxu0 %v746
    %v863 = vpop.f32.mrb[0].mxu0
    %v864 = vadd.f32 0.0, %v863
    %v865 = vpop.f32.mrb[0].mxu0
    %v866 = vpop.f32.mrb[0].mxu0
    %v867 = vadd.f32 0.0, %v866
    %v868 = vpop.f32.mrb[0].mxu0
    %869 = vmatprep.mubr.bf16.mxu0 0
    %870 = vmatmul.mubr.bf16.gmra.mrb[0].mxu0 %v747
    %v871 = vpop.f32.mrb[0].mxu0
    %v872 = vadd.f32 0.0, %v871
    %v873 = vpop.f32.mrb[0].mxu0
    %v874 = vpop.f32.mrb[0].mxu0
    %v875 = vadd.f32 0.0, %v874
    %v876 = vpop.f32.mrb[0].mxu0
    %877 = vmatprep.mubr.bf16.mxu0 0
    %878 = vmatmul.mubr.bf16.gmra.mrb[0].mxu0 %v748
    %v879 = vpop.f32.mrb[0].mxu0
    %v880 = vadd.f32 0.0, %v879
    %v881 = vpop.f32.mrb[0].mxu0
    %v882 = vpop.f32.mrb[0].mxu0
    %v883 = vadd.f32 0.0, %v882
    %v884 = vpop.f32.mrb[0].mxu0
    %885 = vdwg.mxu0
    %v886 = vmul.f32 %v824, %v647
    %v887 = vmul.f32 %v827, %v650
    %v888 = vmul.f32 %v832, %v655
    %v889 = vmul.f32 %v835, %v658
    %v890 = vmul.f32 %v840, %v663
    %v891 = vmul.f32 %v843, %v666
    %v892 = vmul.f32 %v848, %v671
    %v893 = vmul.f32 %v851, %v674
    %v894 = vmul.f32 %v856, %v679
    %v895 = vmul.f32 %v859, %v682
    %v896 = vmul.f32 %v864, %v687
    %v897 = vmul.f32 %v867, %v690
    %v898 = vmul.f32 %v872, %v695
    %v899 = vmul.f32 %v875, %v698
    %v900 = vmul.f32 %v880, %v703
    %v901 = vmul.f32 %v883, %v706
    %v902 = vld [vmem:[%s17] sm:$0xff]
    %v903 = vld [vmem:[%s17 + $0x8] sm:$0xff]
    %v904 = vld [vmem:[%s17 + $0x10] sm:$0xff]
    %v905 = vld [vmem:[%s17 + $0x18] sm:$0xff]
    %vm906 = vcmask 261120
    %v908 = vsel %vm906, %v886, 0
    %v911 = vsel %vm906, %v887, 0
    %v914 = vsel %vm906, %v888, 0
    %v917 = vsel %vm906, %v889, 0
    %v920 = vsel %vm906, %v890, 0
    %v923 = vsel %vm906, %v891, 0
    %v926 = vsel %vm906, %v892, 0
    %v929 = vsel %vm906, %v893, 0
    %v932 = vsel %vm906, %v894, 0
    %v935 = vsel %vm906, %v895, 0
    %v938 = vsel %vm906, %v896, 0
    %v941 = vsel %vm906, %v897, 0
    %v944 = vsel %vm906, %v898, 0
    %v947 = vsel %vm906, %v899, 0
    %v950 = vsel %vm906, %v900, 0
    %v953 = vsel %vm906, %v901, 0
    %955 = vmatprep.subr.mxu0 0.0
    %956 = vmatpush1.msra.mxu0 %v902
    %957 = vmatprep.subr.mxu0 0.0
    %958 = vmatpush1.msra.mxu0 %v903
    %959 = vmatprep.subr.mxu0 0.0
    %960 = vmatpush1.msra.mxu0 %v904
    %961 = vmatprep.subr.mxu0 0.0
    %962 = vmatpush1.msra.mxu0 %v905
    %963 = vmatprep.subr.mxu0 0.0
    %964 = vmatpush1.msra.mxu0 0.0
    %965 = vmatprep.subr.mxu0 0.0
    %966 = vmatpush1.msra.mxu0 0.0
    %967 = vmatprep.subr.mxu0 0.0
    %968 = vmatpush1.msra.mxu0 0.0
    %969 = vmatprep.subr.mxu0 0.0
    %970 = vmatpush1.msra.mxu0 0.0
    %971 = vmatprep.subr.mxu0 0.0
    %972 = vmatpush1.msra.mxu0 0.0
    %973 = vmatprep.subr.mxu0 0.0
    %974 = vmatpush1.msra.mxu0 0.0
    %975 = vmatprep.subr.mxu0 0.0
    %976 = vmatpush1.msra.mxu0 0.0
    %977 = vmatprep.subr.mxu0 0.0
    %978 = vmatpush1.msra.mxu0 0.0
    %979 = vmatprep.subr.mxu0 0.0
    %980 = vmatpush1.msra.mxu0 0.0
    %981 = vmatprep.subr.mxu0 0.0
    %982 = vmatpush1.msra.mxu0 0.0
    %983 = vmatprep.subr.mxu0 0.0
    %984 = vmatpush1.msra.mxu0 0.0
    %985 = vmatprep.subr.mxu0 0.0
    %986 = vmatpush1.msra.mxu0 0.0
    %987 = vmatprep.subr.mxu0 0.0
    %988 = vmatpush1.msra.mxu0 0.0
    %989 = vmatprep.subr.mxu0 0.0
    %990 = vmatpush1.msra.mxu0 0.0
    %991 = vmatprep.subr.mxu0 0.0
    %992 = vmatpush1.msra.mxu0 0.0
    %993 = vmatprep.subr.mxu0 0.0
    %994 = vmatpush1.msra.mxu0 0.0
    %995 = vmatprep.subr.mxu0 0.0
    %996 = vmatpush1.msra.mxu0 0.0
    %997 = vmatprep.subr.mxu0 0.0
    %998 = vmatpush1.msra.mxu0 0.0
    %999 = vmatprep.subr.mxu0 0.0
    %1000 = vmatpush1.msra.mxu0 0.0
    %1001 = vmatprep.subr.mxu0 0.0
    %1002 = vmatpush1.msra.mxu0 0.0
    %1003 = vmatprep.subr.mxu0 0.0
    %1004 = vmatpush1.msra.mxu0 0.0
    %1005 = vmatprep.subr.mxu0 0.0
    %1006 = vmatpush1.msra.mxu0 0.0
    %1007 = vmatprep.subr.mxu0 0.0
    %1008 = vmatpush1.msra.mxu0 0.0
    %1009 = vmatprep.subr.mxu0 0.0
    %1010 = vmatpush1.msra.mxu0 0.0
    %1011 = vmatprep.subr.mxu0 0.0
    %1012 = vmatpush1.msra.mxu0 0.0
    %1013 = vmatprep.subr.mxu0 0.0
    %1014 = vmatpush1.msra.mxu0 0.0
    %1015 = vmatprep.subr.mxu0 0.0
    %1016 = vmatpush1.msra.mxu0 0.0
    %1017 = vmatprep.subr.mxu0 0.0
    %1018 = vmatpush1.msra.mxu0 0.0
    %1019 = vmatprep.mubr.f32.mxu0 0.0
    %1020 = vmatmul.mubr.f32.gmra.mrb[0].mxu0 %v908
    %v1021 = vpop.f32.mrb[0].mxu0
    %v1022 = vadd.f32 0.0, %v1021
    %v1023 = vpop.f32.mrb[0].mxu0
    %1024 = vmatprep.mubr.f32.mxu0 0.0
    %1025 = vmatmul.mubr.f32.gmra.mrb[0].mxu0 %v911
    %v1026 = vpop.f32.mrb[0].mxu0
    %v1027 = vadd.f32 0.0, %v1026
    %v1028 = vpop.f32.mrb[0].mxu0
    %1029 = vmatprep.mubr.f32.mxu0 0.0
    %1030 = vmatmul.mubr.f32.gmra.mrb[0].mxu0 %v914
    %v1031 = vpop.f32.mrb[0].mxu0
    %v1032 = vadd.f32 0.0, %v1031
    %v1033 = vpop.f32.mrb[0].mxu0
    %1034 = vmatprep.mubr.f32.mxu0 0.0
    %1035 = vmatmul.mubr.f32.gmra.mrb[0].mxu0 %v917
    %v1036 = vpop.f32.mrb[0].mxu0
    %v1037 = vadd.f32 0.0, %v1036
    %v1038 = vpop.f32.mrb[0].mxu0
    %1039 = vmatprep.mubr.f32.mxu0 0.0
    %1040 = vmatmul.mubr.f32.gmra.mrb[0].mxu0 %v920
    %v1041 = vpop.f32.mrb[0].mxu0
    %v1042 = vadd.f32 0.0, %v1041
    %v1043 = vpop.f32.mrb[0].mxu0
    %1044 = vmatprep.mubr.f32.mxu0 0.0
    %1045 = vmatmul.mubr.f32.gmra.mrb[0].mxu0 %v923
    %v1046 = vpop.f32.mrb[0].mxu0
    %v1047 = vadd.f32 0.0, %v1046
    %v1048 = vpop.f32.mrb[0].mxu0
    %1049 = vmatprep.mubr.f32.mxu0 0.0
    %1050 = vmatmul.mubr.f32.gmra.mrb[0].mxu0 %v926
    %v1051 = vpop.f32.mrb[0].mxu0
    %v1052 = vadd.f32 0.0, %v1051
    %v1053 = vpop.f32.mrb[0].mxu0
    %1054 = vmatprep.mubr.f32.mxu0 0.0
    %1055 = vmatmul.mubr.f32.gmra.mrb[0].mxu0 %v929
    %v1056 = vpop.f32.mrb[0].mxu0
    %v1057 = vadd.f32 0.0, %v1056
    %v1058 = vpop.f32.mrb[0].mxu0
    %1059 = vmatprep.mubr.f32.mxu0 0.0
    %1060 = vmatmul.mubr.f32.gmra.mrb[0].mxu0 %v932
    %v1061 = vpop.f32.mrb[0].mxu0
    %v1062 = vadd.f32 0.0, %v1061
    %v1063 = vpop.f32.mrb[0].mxu0
    %1064 = vmatprep.mubr.f32.mxu0 0.0
    %1065 = vmatmul.mubr.f32.gmra.mrb[0].mxu0 %v935
    %v1066 = vpop.f32.mrb[0].mxu0
    %v1067 = vadd.f32 0.0, %v1066
    %v1068 = vpop.f32.mrb[0].mxu0
    %1069 = vmatprep.mubr.f32.mxu0 0.0
    %1070 = vmatmul.mubr.f32.gmra.mrb[0].mxu0 %v938
    %v1071 = vpop.f32.mrb[0].mxu0
    %v1072 = vadd.f32 0.0, %v1071
    %v1073 = vpop.f32.mrb[0].mxu0
    %1074 = vmatprep.mubr.f32.mxu0 0.0
    %1075 = vmatmul.mubr.f32.gmra.mrb[0].mxu0 %v941
    %v1076 = vpop.f32.mrb[0].mxu0
    %v1077 = vadd.f32 0.0, %v1076
    %v1078 = vpop.f32.mrb[0].mxu0
    %1079 = vmatprep.mubr.f32.mxu0 0.0
    %1080 = vmatmul.mubr.f32.gmra.mrb[0].mxu0 %v944
    %v1081 = vpop.f32.mrb[0].mxu0
    %v1082 = vadd.f32 0.0, %v1081
    %v1083 = vpop.f32.mrb[0].mxu0
    %1084 = vmatprep.mubr.f32.mxu0 0.0
    %1085 = vmatmul.mubr.f32.gmra.mrb[0].mxu0 %v947
    %v1086 = vpop.f32.mrb[0].mxu0
    %v1087 = vadd.f32 0.0, %v1086
    %v1088 = vpop.f32.mrb[0].mxu0
    %1089 = vmatprep.mubr.f32.mxu0 0.0
    %1090 = vmatmul.mubr.f32.gmra.mrb[0].mxu0 %v950
    %v1091 = vpop.f32.mrb[0].mxu0
    %v1092 = vadd.f32 0.0, %v1091
    %v1093 = vpop.f32.mrb[0].mxu0
    %1094 = vmatprep.mubr.f32.mxu0 0.0
    %1095 = vmatmul.mubr.f32.gmra.mrb[0].mxu0 %v953
    %v1096 = vpop.f32.mrb[0].mxu0
    %v1097 = vadd.f32 0.0, %v1096
    %v1098 = vpop.f32.mrb[0].mxu0
    %1099 = vdwg.mxu0
    %v1100 = vmul.f32 %v1022, 0.35355338
    %v1101 = vmul.f32 %v1027, 0.35355338
    %v1102 = vmul.f32 %v1032, 0.35355338
    %v1103 = vmul.f32 %v1037, 0.35355338
    %v1104 = vmul.f32 %v1042, 0.35355338
    %v1105 = vmul.f32 %v1047, 0.35355338
    %v1106 = vmul.f32 %v1052, 0.35355338
    %v1107 = vmul.f32 %v1057, 0.35355338
    %v1108 = vmul.f32 %v1062, 0.35355338
    %v1109 = vmul.f32 %v1067, 0.35355338
    %v1110 = vmul.f32 %v1072, 0.35355338
    %v1111 = vmul.f32 %v1077, 0.35355338
    %v1112 = vmul.f32 %v1082, 0.35355338
    %v1113 = vmul.f32 %v1087, 0.35355338
    %v1114 = vmul.f32 %v1092, 0.35355338
    %v1115 = vmul.f32 %v1097, 0.35355338
    %v1116 = vmax.f32 %v1100, %v1104
    %v1117 = vmax.f32 %v1101, %v1105
    %v1118 = vmax.f32 %v1102, %v1106
    %v1119 = vmax.f32 %v1103, %v1107
    %v1120 = vmax.f32 %v1116, %v1108
    %v1121 = vmax.f32 %v1117, %v1109
    %v1122 = vmax.f32 %v1118, %v1110
    %v1123 = vmax.f32 %v1119, %v1111
    %v1124 = vmax.f32 %v1120, %v1112
    %v1125 = vmax.f32 %v1121, %v1113
    %v1126 = vmax.f32 %v1122, %v1114
    %v1127 = vmax.f32 %v1123, %v1115
    %v1128 = vmax.f32 %v1124, %v1125
    %v1129 = vmax.f32 %v1126, %v1127
    %v1130 = vmax.f32 %v1128, %v1129
    %v1131 = vrot.slane %v1130, 4
    %v1132 = vmax.f32 %v1130, %v1131
    %v1133 = vrot.slane %v1132, 2
    %v1134 = vmax.f32 %v1132, %v1133
    %v1135 = vrot.slane %v1134, 1
    %v1136 = vmax.f32 %v1134, %v1135
    %v1137 = vsub.f32 %v1100, %v1136
    %v1138 = vsub.f32 %v1101, %v1136
    %v1139 = vsub.f32 %v1102, %v1136
    %v1140 = vsub.f32 %v1103, %v1136
    %v1141 = vsub.f32 %v1104, %v1136
    %v1142 = vsub.f32 %v1105, %v1136
    %v1143 = vsub.f32 %v1106, %v1136
    %v1144 = vsub.f32 %v1107, %v1136
    %v1145 = vsub.f32 %v1108, %v1136
    %v1146 = vsub.f32 %v1109, %v1136
    %v1147 = vsub.f32 %v1110, %v1136
    %v1148 = vsub.f32 %v1111, %v1136
    %v1149 = vsub.f32 %v1112, %v1136
    %v1150 = vsub.f32 %v1113, %v1136
    %v1151 = vsub.f32 %v1114, %v1136
    %v1152 = vsub.f32 %v1115, %v1136
    %v1153 = vmul.f32 %v1137, 1.442695
    %v1154 = vpow.pop %v1153
    %v1155 = vmul.f32 %v1138, 1.442695
    %v1156 = vpow.pop %v1155
    %v1157 = vmul.f32 %v1139, 1.442695
    %v1158 = vpow.pop %v1157
    %v1159 = vmul.f32 %v1140, 1.442695
    %v1160 = vpow.pop %v1159
    %v1161 = vmul.f32 %v1141, 1.442695
    %v1162 = vpow.pop %v1161
    %v1163 = vmul.f32 %v1142, 1.442695
    %v1164 = vpow.pop %v1163
    %v1165 = vmul.f32 %v1143, 1.442695
    %v1166 = vpow.pop %v1165
    %v1167 = vmul.f32 %v1144, 1.442695
    %v1168 = vpow.pop %v1167
    %v1169 = vmul.f32 %v1145, 1.442695
    %v1170 = vpow.pop %v1169
    %v1171 = vmul.f32 %v1146, 1.442695
    %v1172 = vpow.pop %v1171
    %v1173 = vmul.f32 %v1147, 1.442695
    %v1174 = vpow.pop %v1173
    %v1175 = vmul.f32 %v1148, 1.442695
    %v1176 = vpow.pop %v1175
    %v1177 = vmul.f32 %v1149, 1.442695
    %v1178 = vpow.pop %v1177
    %v1179 = vmul.f32 %v1150, 1.442695
    %v1180 = vpow.pop %v1179
    %v1181 = vmul.f32 %v1151, 1.442695
    %v1182 = vpow.pop %v1181
    %v1183 = vmul.f32 %v1152, 1.442695
    %v1184 = vpow.pop %v1183
    %v1185 = vpack.c.bf16 %v1156, %v1154
    %v1186 = vpack.c.bf16 %v1160, %v1158
    %v1187 = vpack.c.bf16 %v1164, %v1162
    %v1188 = vpack.c.bf16 %v1168, %v1166
    %v1189 = vpack.c.bf16 %v1172, %v1170
    %v1190 = vpack.c.bf16 %v1176, %v1174
    %v1191 = vpack.c.bf16 %v1180, %v1178
    %v1192 = vpack.c.bf16 %v1184, %v1182
    %1193 = vmatprep.subr.bf16.mxu0 0
    %1194 = vmatpush1.bf16.msra.mxu0 %v1185
    %1195 = vmatprep.subr.bf16.mxu0 0
    %1196 = vmatpush1.bf16.msra.mxu0 %v1186
    %1197 = vmatprep.subr.bf16.mxu0 0
    %1198 = vmatpush1.bf16.msra.mxu0 %v1187
    %1199 = vmatprep.subr.bf16.mxu0 0
    %1200 = vmatpush1.bf16.msra.mxu0 %v1188
    %1201 = vmatprep.subr.bf16.mxu0 0
    %1202 = vmatpush1.bf16.msra.mxu0 %v1189
    %1203 = vmatprep.subr.bf16.mxu0 0
    %1204 = vmatpush1.bf16.msra.mxu0 %v1190
    %1205 = vmatprep.subr.bf16.mxu0 0
    %1206 = vmatpush1.bf16.msra.mxu0 %v1191
    %1207 = vmatprep.subr.bf16.mxu0 0
    %1208 = vmatpush1.bf16.msra.mxu0 %v1192
    %1209 = vmatprep.subr.bf16.mxu0 0
    %1210 = vmatpush1.bf16.msra.mxu0 0
    %1211 = vmatprep.subr.bf16.mxu0 0
    %1212 = vmatpush1.bf16.msra.mxu0 0
    %1213 = vmatprep.subr.bf16.mxu0 0
    %1214 = vmatpush1.bf16.msra.mxu0 0
    %1215 = vmatprep.subr.bf16.mxu0 0
    %1216 = vmatpush1.bf16.msra.mxu0 0
    %1217 = vmatprep.subr.bf16.mxu0 0
    %1218 = vmatpush1.bf16.msra.mxu0 0
    %1219 = vmatprep.subr.bf16.mxu0 0
    %1220 = vmatpush1.bf16.msra.mxu0 0
    %1221 = vmatprep.subr.bf16.mxu0 0
    %1222 = vmatpush1.bf16.msra.mxu0 0
    %1223 = vmatprep.subr.bf16.mxu0 0
    %1224 = vmatpush1.bf16.msra.mxu0 0
    %1225 = vmatprep.mubr.bf16.mxu0 0
    %1226 = vmatmul.mubr.bf16.gmra.mrb[0].mxu0 %v241
    %v1227 = vpop.f32.mrb[0].mxu0
    %v1228 = vadd.f32 0.0, %v1227
    %v1229 = vpop.f32.mrb[0].mxu0
    %v1230 = vpop.f32.mrb[0].mxu0
    %v1231 = vadd.f32 0.0, %v1230
    %v1232 = vpop.f32.mrb[0].mxu0
    %1233 = vmatprep.mubr.bf16.mxu0 0
    %1234 = vmatmul.mubr.bf16.gmra.mrb[0].mxu0 %v242
    %v1235 = vpop.f32.mrb[0].mxu0
    %v1236 = vadd.f32 0.0, %v1235
    %v1237 = vpop.f32.mrb[0].mxu0
    %v1238 = vpop.f32.mrb[0].mxu0
    %v1239 = vadd.f32 0.0, %v1238
    %v1240 = vpop.f32.mrb[0].mxu0
    %1241 = vmatprep.mubr.bf16.mxu0 0
    %1242 = vmatmul.mubr.bf16.gmra.mrb[0].mxu0 %v243
    %v1243 = vpop.f32.mrb[0].mxu0
    %v1244 = vadd.f32 0.0, %v1243
    %v1245 = vpop.f32.mrb[0].mxu0
    %v1246 = vpop.f32.mrb[0].mxu0
    %v1247 = vadd.f32 0.0, %v1246
    %v1248 = vpop.f32.mrb[0].mxu0
    %1249 = vmatprep.mubr.bf16.mxu0 0
    %1250 = vmatmul.mubr.bf16.gmra.mrb[0].mxu0 %v244
    %v1251 = vpop.f32.mrb[0].mxu0
    %v1252 = vadd.f32 0.0, %v1251
    %v1253 = vpop.f32.mrb[0].mxu0
    %v1254 = vpop.f32.mrb[0].mxu0
    %v1255 = vadd.f32 0.0, %v1254
    %v1256 = vpop.f32.mrb[0].mxu0
    %1257 = vmatprep.mubr.bf16.mxu0 0
    %1258 = vmatmul.mubr.bf16.gmra.mrb[0].mxu0 %v245
    %v1259 = vpop.f32.mrb[0].mxu0
    %v1260 = vadd.f32 0.0, %v1259
    %v1261 = vpop.f32.mrb[0].mxu0
    %v1262 = vpop.f32.mrb[0].mxu0
    %v1263 = vadd.f32 0.0, %v1262
    %v1264 = vpop.f32.mrb[0].mxu0
    %1265 = vmatprep.mubr.bf16.mxu0 0
    %1266 = vmatmul.mubr.bf16.gmra.mrb[0].mxu0 %v246
    %v1267 = vpop.f32.mrb[0].mxu0
    %v1268 = vadd.f32 0.0, %v1267
    %v1269 = vpop.f32.mrb[0].mxu0
    %v1270 = vpop.f32.mrb[0].mxu0
    %v1271 = vadd.f32 0.0, %v1270
    %v1272 = vpop.f32.mrb[0].mxu0
    %1273 = vmatprep.mubr.bf16.mxu0 0
    %1274 = vmatmul.mubr.bf16.gmra.mrb[0].mxu0 %v247
    %v1275 = vpop.f32.mrb[0].mxu0
    %v1276 = vadd.f32 0.0, %v1275
    %v1277 = vpop.f32.mrb[0].mxu0
    %v1278 = vpop.f32.mrb[0].mxu0
    %v1279 = vadd.f32 0.0, %v1278
    %v1280 = vpop.f32.mrb[0].mxu0
    %1281 = vmatprep.mubr.bf16.mxu0 0
    %1282 = vmatmul.mubr.bf16.gmra.mrb[0].mxu0 %v248
    %v1283 = vpop.f32.mrb[0].mxu0
    %v1284 = vadd.f32 0.0, %v1283
    %v1285 = vpop.f32.mrb[0].mxu0
    %v1286 = vpop.f32.mrb[0].mxu0
    %v1287 = vadd.f32 0.0, %v1286
    %v1288 = vpop.f32.mrb[0].mxu0
    %1289 = vdwg.mxu0
    %v1290 = vmax.f32 %v1228, 1e-09
    %v1291 = vmax.f32 %v1231, 1e-09
    %v1292 = vmax.f32 %v1236, 1e-09
    %v1293 = vmax.f32 %v1239, 1e-09
    %v1294 = vmax.f32 %v1244, 1e-09
    %v1295 = vmax.f32 %v1247, 1e-09
    %v1296 = vmax.f32 %v1252, 1e-09
    %v1297 = vmax.f32 %v1255, 1e-09
    %v1298 = vmax.f32 %v1260, 1e-09
    %v1299 = vmax.f32 %v1263, 1e-09
    %v1300 = vmax.f32 %v1268, 1e-09
    %v1301 = vmax.f32 %v1271, 1e-09
    %v1302 = vmax.f32 %v1276, 1e-09
    %v1303 = vmax.f32 %v1279, 1e-09
    %v1304 = vmax.f32 %v1284, 1e-09
    %v1305 = vmax.f32 %v1287, 1e-09
    %v1306 = vrcp.pop %v1290
    %v1307 = vrcp.pop %v1291
    %v1308 = vrcp.pop %v1292
    %v1309 = vrcp.pop %v1293
    %v1310 = vrcp.pop %v1294
    %v1311 = vrcp.pop %v1295
    %v1312 = vrcp.pop %v1296
    %v1313 = vrcp.pop %v1297
    %v1314 = vrcp.pop %v1298
    %v1315 = vrcp.pop %v1299
    %v1316 = vrcp.pop %v1300
    %v1317 = vrcp.pop %v1301
    %v1318 = vrcp.pop %v1302
    %v1319 = vrcp.pop %v1303
    %v1320 = vrcp.pop %v1304
    %v1321 = vrcp.pop %v1305
    %v1322 = vpack.c.bf16 %v1307, %v1306
    %v1323 = vpack.c.bf16 %v1309, %v1308
    %v1324 = vpack.c.bf16 %v1311, %v1310
    %v1325 = vpack.c.bf16 %v1313, %v1312
    %v1326 = vpack.c.bf16 %v1315, %v1314
    %v1327 = vpack.c.bf16 %v1317, %v1316
    %v1328 = vpack.c.bf16 %v1319, %v1318
    %v1329 = vpack.c.bf16 %v1321, %v1320
    %1330 = vmatprep.subr.bf16.mxu0 0
    %1331 = vmatpush1.bf16.msra.mxu0 %v1322
    %1332 = vmatprep.subr.bf16.mxu0 0
    %1333 = vmatpush1.bf16.msra.mxu0 %v1323
    %1334 = vmatprep.subr.bf16.mxu0 0
    %1335 = vmatpush1.bf16.msra.mxu0 %v1324
    %1336 = vmatprep.subr.bf16.mxu0 0
    %1337 = vmatpush1.bf16.msra.mxu0 %v1325
    %1338 = vmatprep.subr.bf16.mxu0 0
    %1339 = vmatpush1.bf16.msra.mxu0 %v1326
    %1340 = vmatprep.subr.bf16.mxu0 0
    %1341 = vmatpush1.bf16.msra.mxu0 %v1327
    %1342 = vmatprep.subr.bf16.mxu0 0
    %1343 = vmatpush1.bf16.msra.mxu0 %v1328
    %1344 = vmatprep.subr.bf16.mxu0 0
    %1345 = vmatpush1.bf16.msra.mxu0 %v1329
    %1346 = vmatprep.subr.bf16.mxu0 0
    %1347 = vmatpush1.bf16.msra.mxu0 0
    %1348 = vmatprep.subr.bf16.mxu0 0
    %1349 = vmatpush1.bf16.msra.mxu0 0
    %1350 = vmatprep.subr.bf16.mxu0 0
    %1351 = vmatpush1.bf16.msra.mxu0 0
    %1352 = vmatprep.subr.bf16.mxu0 0
    %1353 = vmatpush1.bf16.msra.mxu0 0
    %1354 = vmatprep.subr.bf16.mxu0 0
    %1355 = vmatpush1.bf16.msra.mxu0 0
    %1356 = vmatprep.subr.bf16.mxu0 0
    %1357 = vmatpush1.bf16.msra.mxu0 0
    %1358 = vmatprep.subr.bf16.mxu0 0
    %1359 = vmatpush1.bf16.msra.mxu0 0
    %1360 = vmatprep.subr.bf16.mxu0 0
    %1361 = vmatpush1.bf16.msra.mxu0 0
    %1362 = vmatprep.mubr.bf16.mxu0 0
    %1363 = vmatmul.mubr.bf16.gmra.mrb[0].mxu0 %v741
    %v1364 = vpop.f32.mrb[0].mxu0
    %v1365 = vadd.f32 0.0, %v1364
    %v1366 = vpop.f32.mrb[0].mxu0
    %v1367 = vpop.f32.mrb[0].mxu0
    %v1368 = vadd.f32 0.0, %v1367
    %v1369 = vpop.f32.mrb[0].mxu0
    %1370 = vmatprep.mubr.bf16.mxu0 0
    %1371 = vmatmul.mubr.bf16.gmra.mrb[0].mxu0 %v742
    %v1372 = vpop.f32.mrb[0].mxu0
    %v1373 = vadd.f32 0.0, %v1372
    %v1374 = vpop.f32.mrb[0].mxu0
    %v1375 = vpop.f32.mrb[0].mxu0
    %v1376 = vadd.f32 0.0, %v1375
    %v1377 = vpop.f32.mrb[0].mxu0
    %1378 = vmatprep.mubr.bf16.mxu0 0
    %1379 = vmatmul.mubr.bf16.gmra.mrb[0].mxu0 %v743
    %v1380 = vpop.f32.mrb[0].mxu0
    %v1381 = vadd.f32 0.0, %v1380
    %v1382 = vpop.f32.mrb[0].mxu0
    %v1383 = vpop.f32.mrb[0].mxu0
    %v1384 = vadd.f32 0.0, %v1383
    %v1385 = vpop.f32.mrb[0].mxu0
    %1386 = vmatprep.mubr.bf16.mxu0 0
    %1387 = vmatmul.mubr.bf16.gmra.mrb[0].mxu0 %v744
    %v1388 = vpop.f32.mrb[0].mxu0
    %v1389 = vadd.f32 0.0, %v1388
    %v1390 = vpop.f32.mrb[0].mxu0
    %v1391 = vpop.f32.mrb[0].mxu0
    %v1392 = vadd.f32 0.0, %v1391
    %v1393 = vpop.f32.mrb[0].mxu0
    %1394 = vmatprep.mubr.bf16.mxu0 0
    %1395 = vmatmul.mubr.bf16.gmra.mrb[0].mxu0 %v745
    %v1396 = vpop.f32.mrb[0].mxu0
    %v1397 = vadd.f32 0.0, %v1396
    %v1398 = vpop.f32.mrb[0].mxu0
    %v1399 = vpop.f32.mrb[0].mxu0
    %v1400 = vadd.f32 0.0, %v1399
    %v1401 = vpop.f32.mrb[0].mxu0
    %1402 = vmatprep.mubr.bf16.mxu0 0
    %1403 = vmatmul.mubr.bf16.gmra.mrb[0].mxu0 %v746
    %v1404 = vpop.f32.mrb[0].mxu0
    %v1405 = vadd.f32 0.0, %v1404
    %v1406 = vpop.f32.mrb[0].mxu0
    %v1407 = vpop.f32.mrb[0].mxu0
    %v1408 = vadd.f32 0.0, %v1407
    %v1409 = vpop.f32.mrb[0].mxu0
    %1410 = vmatprep.mubr.bf16.mxu0 0
    %1411 = vmatmul.mubr.bf16.gmra.mrb[0].mxu0 %v747
    %v1412 = vpop.f32.mrb[0].mxu0
    %v1413 = vadd.f32 0.0, %v1412
    %v1414 = vpop.f32.mrb[0].mxu0
    %v1415 = vpop.f32.mrb[0].mxu0
    %v1416 = vadd.f32 0.0, %v1415
    %v1417 = vpop.f32.mrb[0].mxu0
    %1418 = vmatprep.mubr.bf16.mxu0 0
    %1419 = vmatmul.mubr.bf16.gmra.mrb[0].mxu0 %v748
    %v1420 = vpop.f32.mrb[0].mxu0
    %v1421 = vadd.f32 0.0, %v1420
    %v1422 = vpop.f32.mrb[0].mxu0
    %v1423 = vpop.f32.mrb[0].mxu0
    %v1424 = vadd.f32 0.0, %v1423
    %v1425 = vpop.f32.mrb[0].mxu0
    %1426 = vdwg.mxu0
    %v1427 = vmul.f32 %v1154, %v1365
    %v1428 = vmul.f32 %v1156, %v1368
    %v1429 = vmul.f32 %v1158, %v1373
    %v1430 = vmul.f32 %v1160, %v1376
    %v1431 = vmul.f32 %v1162, %v1381
    %v1432 = vmul.f32 %v1164, %v1384
    %v1433 = vmul.f32 %v1166, %v1389
    %v1434 = vmul.f32 %v1168, %v1392
    %v1435 = vmul.f32 %v1170, %v1397
    %v1436 = vmul.f32 %v1172, %v1400
    %v1437 = vmul.f32 %v1174, %v1405
    %v1438 = vmul.f32 %v1176, %v1408
    %v1439 = vmul.f32 %v1178, %v1413
    %v1440 = vmul.f32 %v1180, %v1416
    %v1441 = vmul.f32 %v1182, %v1421
    %v1442 = vmul.f32 %v1184, %v1424
    %1443 = vst [vmem:[#allocation4] sm:$0xff] %v1427
    %1444 = vst [vmem:[#allocation4 + $0x8] sm:$0xff] %v1428
    %1445 = vst [vmem:[#allocation4 + $0x10] sm:$0xff] %v1429
    %1446 = vst [vmem:[#allocation4 + $0x18] sm:$0xff] %v1430
    %1447 = vst [vmem:[#allocation4 + $0x20] sm:$0xff] %v1431
    %1448 = vst [vmem:[#allocation4 + $0x28] sm:$0xff] %v1432
    %1449 = vst [vmem:[#allocation4 + $0x30] sm:$0xff] %v1433
    %1450 = vst [vmem:[#allocation4 + $0x38] sm:$0xff] %v1434
    %1451 = vst [vmem:[#allocation4 + $0x40] sm:$0xff] %v1435
    %1452 = vst [vmem:[#allocation4 + $0x48] sm:$0xff] %v1436
    %1453 = vst [vmem:[#allocation4 + $0x50] sm:$0xff] %v1437
    %1454 = vst [vmem:[#allocation4 + $0x58] sm:$0xff] %v1438
    %1455 = vst [vmem:[#allocation4 + $0x60] sm:$0xff] %v1439
    %1456 = vst [vmem:[#allocation4 + $0x68] sm:$0xff] %v1440
    %1457 = vst [vmem:[#allocation4 + $0x70] sm:$0xff] %v1441
    %1458 = vst [vmem:[#allocation4 + $0x78] sm:$0xff] %v1442
    %v1459 = vld [vmem:[%s19] sm:$0xff]
    %v1460 = vld [vmem:[%s19 + $0x8] sm:$0xff]
    %v1461 = vld [vmem:[%s19 + $0x10] sm:$0xff]
    %v1462 = vld [vmem:[%s19 + $0x18] sm:$0xff]
    %v1463 = vld [vmem:[%s19 + $0x20] sm:$0xff]
    %v1464 = vld [vmem:[%s19 + $0x28] sm:$0xff]
    %v1465 = vld [vmem:[%s19 + $0x30] sm:$0xff]
    %v1466 = vld [vmem:[%s19 + $0x38] sm:$0xff]
    %v1467 = vld [vmem:[%s19 + $0x40] sm:$0xff]
    %v1468 = vld [vmem:[%s19 + $0x48] sm:$0xff]
    %v1469 = vld [vmem:[%s19 + $0x50] sm:$0xff]
    %v1470 = vld [vmem:[%s19 + $0x58] sm:$0xff]
    %v1471 = vld [vmem:[%s19 + $0x60] sm:$0xff]
    %v1472 = vld [vmem:[%s19 + $0x68] sm:$0xff]
    %v1473 = vld [vmem:[%s19 + $0x70] sm:$0xff]
    %v1474 = vld [vmem:[%s19 + $0x78] sm:$0xff]
    %1475 = vmatprep.subr.mxu0 0.0
    %1476 = vmatpush1.msra.mxu0 %v1459
    %1477 = vmatprep.subr.mxu0 0.0
    %1478 = vmatpush1.msra.mxu0 %v1460
    %1479 = vmatprep.subr.mxu0 0.0
    %1480 = vmatpush1.msra.mxu0 %v1461
    %1481 = vmatprep.subr.mxu0 0.0
    %1482 = vmatpush1.msra.mxu0 %v1462
    %1483 = vmatprep.subr.mxu0 0.0
    %1484 = vmatpush1.msra.mxu0 %v1463
    %1485 = vmatprep.subr.mxu0 0.0
    %1486 = vmatpush1.msra.mxu0 %v1464
    %1487 = vmatprep.subr.mxu0 0.0
    %1488 = vmatpush1.msra.mxu0 %v1465
    %1489 = vmatprep.subr.mxu0 0.0
    %1490 = vmatpush1.msra.mxu0 %v1466
    %1491 = vmatprep.subr.mxu0 0.0
    %1492 = vmatpush1.msra.mxu0 %v1467
    %1493 = vmatprep.subr.mxu0 0.0
    %1494 = vmatpush1.msra.mxu0 %v1468
    %1495 = vmatprep.subr.mxu0 0.0
    %1496 = vmatpush1.msra.mxu0 %v1469
    %1497 = vmatprep.subr.mxu0 0.0
    %1498 = vmatpush1.msra.mxu0 %v1470
    %1499 = vmatprep.subr.mxu0 0.0
    %1500 = vmatpush1.msra.mxu0 %v1471
    %1501 = vmatprep.subr.mxu0 0.0
    %1502 = vmatpush1.msra.mxu0 %v1472
    %1503 = vmatprep.subr.mxu0 0.0
    %1504 = vmatpush1.msra.mxu0 %v1473
    %1505 = vmatprep.subr.mxu0 0.0
    %1506 = vmatpush1.msra.mxu0 %v1474
    %1507 = vmatprep.subr.mxu0 0.0
    %1508 = vmatpush1.msra.mxu0 0.0
    %1509 = vmatprep.subr.mxu0 0.0
    %1510 = vmatpush1.msra.mxu0 0.0
    %1511 = vmatprep.subr.mxu0 0.0
    %1512 = vmatpush1.msra.mxu0 0.0
    %1513 = vmatprep.subr.mxu0 0.0
    %1514 = vmatpush1.msra.mxu0 0.0
    %1515 = vmatprep.subr.mxu0 0.0
    %1516 = vmatpush1.msra.mxu0 0.0
    %1517 = vmatprep.subr.mxu0 0.0
    %1518 = vmatpush1.msra.mxu0 0.0
    %1519 = vmatprep.subr.mxu0 0.0
    %1520 = vmatpush1.msra.mxu0 0.0
    %1521 = vmatprep.subr.mxu0 0.0
    %1522 = vmatpush1.msra.mxu0 0.0
    %1523 = vmatprep.subr.mxu0 0.0
    %1524 = vmatpush1.msra.mxu0 0.0
    %1525 = vmatprep.subr.mxu0 0.0
    %1526 = vmatpush1.msra.mxu0 0.0
    %1527 = vmatprep.subr.mxu0 0.0
    %1528 = vmatpush1.msra.mxu0 0.0
    %1529 = vmatprep.subr.mxu0 0.0
    %1530 = vmatpush1.msra.mxu0 0.0
    %1531 = vmatprep.subr.mxu0 0.0
    %1532 = vmatpush1.msra.mxu0 0.0
    %1533 = vmatprep.subr.mxu0 0.0
    %1534 = vmatpush1.msra.mxu0 0.0
    %1535 = vmatprep.subr.mxu0 0.0
    %1536 = vmatpush1.msra.mxu0 0.0
    %1537 = vmatprep.subr.mxu0 0.0
    %1538 = vmatpush1.msra.mxu0 0.0
    %1539 = vmatprep.mubr.f32.mxu0 0.0
    %1540 = vmatmul.mubr.f32.gmra.mrb[0].mxu0 %v1427
    %v1541 = vpop.f32.mrb[0].mxu0
    %v1542 = vadd.f32 0.0, %v1541
    %v1543 = vpop.f32.mrb[0].mxu0
    %1544 = vmatprep.mubr.f32.mxu0 0.0
    %1545 = vmatmul.mubr.f32.gmra.mrb[0].mxu0 %v1428
    %v1546 = vpop.f32.mrb[0].mxu0
    %v1547 = vadd.f32 0.0, %v1546
    %v1548 = vpop.f32.mrb[0].mxu0
    %1549 = vmatprep.mubr.f32.mxu0 0.0
    %1550 = vmatmul.mubr.f32.gmra.mrb[0].mxu0 %v1429
    %v1551 = vpop.f32.mrb[0].mxu0
    %v1552 = vadd.f32 0.0, %v1551
    %v1553 = vpop.f32.mrb[0].mxu0
    %1554 = vmatprep.mubr.f32.mxu0 0.0
    %1555 = vmatmul.mubr.f32.gmra.mrb[0].mxu0 %v1430
    %v1556 = vpop.f32.mrb[0].mxu0
    %v1557 = vadd.f32 0.0, %v1556
    %v1558 = vpop.f32.mrb[0].mxu0
    %1559 = vmatprep.mubr.f32.mxu0 0.0
    %1560 = vmatmul.mubr.f32.gmra.mrb[0].mxu0 %v1431
    %v1561 = vpop.f32.mrb[0].mxu0
    %v1562 = vadd.f32 0.0, %v1561
    %v1563 = vpop.f32.mrb[0].mxu0
    %1564 = vmatprep.mubr.f32.mxu0 0.0
    %1565 = vmatmul.mubr.f32.gmra.mrb[0].mxu0 %v1432
    %v1566 = vpop.f32.mrb[0].mxu0
    %v1567 = vadd.f32 0.0, %v1566
    %v1568 = vpop.f32.mrb[0].mxu0
    %1569 = vmatprep.mubr.f32.mxu0 0.0
    %1570 = vmatmul.mubr.f32.gmra.mrb[0].mxu0 %v1433
    %v1571 = vpop.f32.mrb[0].mxu0
    %v1572 = vadd.f32 0.0, %v1571
    %v1573 = vpop.f32.mrb[0].mxu0
    %1574 = vmatprep.mubr.f32.mxu0 0.0
    %1575 = vmatmul.mubr.f32.gmra.mrb[0].mxu0 %v1434
    %v1576 = vpop.f32.mrb[0].mxu0
    %v1577 = vadd.f32 0.0, %v1576
    %v1578 = vpop.f32.mrb[0].mxu0
    %1579 = vmatprep.mubr.f32.mxu0 0.0
    %1580 = vmatmul.mubr.f32.gmra.mrb[0].mxu0 %v1435
    %v1581 = vpop.f32.mrb[0].mxu0
    %v1582 = vadd.f32 0.0, %v1581
    %v1583 = vpop.f32.mrb[0].mxu0
    %1584 = vmatprep.mubr.f32.mxu0 0.0
    %1585 = vmatmul.mubr.f32.gmra.mrb[0].mxu0 %v1436
    %v1586 = vpop.f32.mrb[0].mxu0
    %v1587 = vadd.f32 0.0, %v1586
    %v1588 = vpop.f32.mrb[0].mxu0
    %1589 = vmatprep.mubr.f32.mxu0 0.0
    %1590 = vmatmul.mubr.f32.gmra.mrb[0].mxu0 %v1437
    %v1591 = vpop.f32.mrb[0].mxu0
    %v1592 = vadd.f32 0.0, %v1591
    %v1593 = vpop.f32.mrb[0].mxu0
    %1594 = vmatprep.mubr.f32.mxu0 0.0
    %1595 = vmatmul.mubr.f32.gmra.mrb[0].mxu0 %v1438
    %v1596 = vpop.f32.mrb[0].mxu0
    %v1597 = vadd.f32 0.0, %v1596
    %v1598 = vpop.f32.mrb[0].mxu0
    %1599 = vmatprep.mubr.f32.mxu0 0.0
    %1600 = vmatmul.mubr.f32.gmra.mrb[0].mxu0 %v1439
    %v1601 = vpop.f32.mrb[0].mxu0
    %v1602 = vadd.f32 0.0, %v1601
    %v1603 = vpop.f32.mrb[0].mxu0
    %1604 = vmatprep.mubr.f32.mxu0 0.0
    %1605 = vmatmul.mubr.f32.gmra.mrb[0].mxu0 %v1440
    %v1606 = vpop.f32.mrb[0].mxu0
    %v1607 = vadd.f32 0.0, %v1606
    %v1608 = vpop.f32.mrb[0].mxu0
    %1609 = vmatprep.mubr.f32.mxu0 0.0
    %1610 = vmatmul.mubr.f32.gmra.mrb[0].mxu0 %v1441
    %v1611 = vpop.f32.mrb[0].mxu0
    %v1612 = vadd.f32 0.0, %v1611
    %v1613 = vpop.f32.mrb[0].mxu0
    %1614 = vmatprep.mubr.f32.mxu0 0.0
    %1615 = vmatmul.mubr.f32.gmra.mrb[0].mxu0 %v1442
    %v1616 = vpop.f32.mrb[0].mxu0
    %v1617 = vadd.f32 0.0, %v1616
    %v1618 = vpop.f32.mrb[0].mxu0
    %1619 = vdwg.mxu0
    %1636 = vrot.lane.b32.xlu0 %v1542, 32
    %v1637 = vpop.permute.xlu0 %1636
    %1638 = vrot.lane.b32.xlu0 %v1547, 32
    %v1639 = vpop.permute.xlu0 %1638
    %1640 = vrot.lane.b32.xlu0 %v1552, 32
    %v1641 = vpop.permute.xlu0 %1640
    %1642 = vrot.lane.b32.xlu0 %v1557, 32
    %v1643 = vpop.permute.xlu0 %1642
    %1644 = vrot.lane.b32.xlu0 %v1562, 32
    %v1645 = vpop.permute.xlu0 %1644
    %1646 = vrot.lane.b32.xlu0 %v1567, 32
    %v1647 = vpop.permute.xlu0 %1646
    %1648 = vrot.lane.b32.xlu0 %v1572, 32
    %v1649 = vpop.permute.xlu0 %1648
    %1650 = vrot.lane.b32.xlu0 %v1577, 32
    %v1651 = vpop.permute.xlu0 %1650
    %1652 = vrot.lane.b32.xlu0 %v1582, 32
    %v1653 = vpop.permute.xlu0 %1652
    %1654 = vrot.lane.b32.xlu0 %v1587, 32
    %v1655 = vpop.permute.xlu0 %1654
    %1656 = vrot.lane.b32.xlu0 %v1592, 32
    %v1657 = vpop.permute.xlu0 %1656
    %1658 = vrot.lane.b32.xlu0 %v1597, 32
    %v1659 = vpop.permute.xlu0 %1658
    %1660 = vrot.lane.b32.xlu0 %v1602, 32
    %v1661 = vpop.permute.xlu0 %1660
    %1662 = vrot.lane.b32.xlu0 %v1607, 32
    %v1663 = vpop.permute.xlu0 %1662
    %1664 = vrot.lane.b32.xlu0 %v1612, 32
    %v1665 = vpop.permute.xlu0 %1664
    %1666 = vrot.lane.b32.xlu0 %v1617, 32
    %v1667 = vpop.permute.xlu0 %1666
    %v1684 = vmul.f32 %v647, %v1637
    %v1685 = vmul.f32 %v650, %v1639
    %v1686 = vmul.f32 %v655, %v1641
    %v1687 = vmul.f32 %v658, %v1643
    %v1688 = vmul.f32 %v663, %v1645
    %v1689 = vmul.f32 %v666, %v1647
    %v1690 = vmul.f32 %v671, %v1649
    %v1691 = vmul.f32 %v674, %v1651
    %v1692 = vmul.f32 %v679, %v1653
    %v1693 = vmul.f32 %v682, %v1655
    %v1694 = vmul.f32 %v687, %v1657
    %v1695 = vmul.f32 %v690, %v1659
    %v1696 = vmul.f32 %v695, %v1661
    %v1697 = vmul.f32 %v698, %v1663
    %v1698 = vmul.f32 %v703, %v1665
    %v1699 = vmul.f32 %v706, %v1667
    %v1700 = vpack.c.bf16 %v1685, %v1684
    %v1701 = vpack.c.bf16 %v1687, %v1686
    %v1702 = vpack.c.bf16 %v1689, %v1688
    %v1703 = vpack.c.bf16 %v1691, %v1690
    %v1704 = vpack.c.bf16 %v1693, %v1692
    %v1705 = vpack.c.bf16 %v1695, %v1694
    %v1706 = vpack.c.bf16 %v1697, %v1696
    %v1707 = vpack.c.bf16 %v1699, %v1698
    %1716 = vrot.lane.b32.xlu0 %v1700, 96
    %v1717 = vpop.permute.xlu0 %1716
    %1718 = vrot.lane.b32.xlu0 %v1701, 96
    %v1719 = vpop.permute.xlu0 %1718
    %1720 = vrot.lane.b32.xlu0 %v1702, 96
    %v1721 = vpop.permute.xlu0 %1720
    %1722 = vrot.lane.b32.xlu0 %v1703, 96
    %v1723 = vpop.permute.xlu0 %1722
    %1724 = vrot.lane.b32.xlu0 %v1704, 96
    %v1725 = vpop.permute.xlu0 %1724
    %1726 = vrot.lane.b32.xlu0 %v1705, 96
    %v1727 = vpop.permute.xlu0 %1726
    %1728 = vrot.lane.b32.xlu0 %v1706, 96
    %v1729 = vpop.permute.xlu0 %1728
    %1730 = vrot.lane.b32.xlu0 %v1707, 96
    %v1731 = vpop.permute.xlu0 %1730
    %1756 = vrot.lane.b32.xlu0 %v375, 32
    %v1757 = vpop.permute.xlu0 %1756
    %1758 = vrot.lane.b32.xlu0 %v380, 32
    %v1759 = vpop.permute.xlu0 %1758
    %1760 = vrot.lane.b32.xlu0 %v385, 32
    %v1761 = vpop.permute.xlu0 %1760
    %1762 = vrot.lane.b32.xlu0 %v390, 32
    %v1763 = vpop.permute.xlu0 %1762
    %1764 = vrot.lane.b32.xlu0 %v395, 32
    %v1765 = vpop.permute.xlu0 %1764
    %1766 = vrot.lane.b32.xlu0 %v400, 32
    %v1767 = vpop.permute.xlu0 %1766
    %1768 = vrot.lane.b32.xlu0 %v405, 32
    %v1769 = vpop.permute.xlu0 %1768
    %1770 = vrot.lane.b32.xlu0 %v410, 32
    %v1771 = vpop.permute.xlu0 %1770
    %1772 = vrot.lane.b32.xlu0 %v415, 32
    %v1773 = vpop.permute.xlu0 %1772
    %1774 = vrot.lane.b32.xlu0 %v420, 32
    %v1775 = vpop.permute.xlu0 %1774
    %1776 = vrot.lane.b32.xlu0 %v425, 32
    %v1777 = vpop.permute.xlu0 %1776
    %1778 = vrot.lane.b32.xlu0 %v430, 32
    %v1779 = vpop.permute.xlu0 %1778
    %1780 = vrot.lane.b32.xlu0 %v435, 32
    %v1781 = vpop.permute.xlu0 %1780
    %1782 = vrot.lane.b32.xlu0 %v440, 32
    %v1783 = vpop.permute.xlu0 %1782
    %1784 = vrot.lane.b32.xlu0 %v445, 32
    %v1785 = vpop.permute.xlu0 %1784
    %1786 = vrot.lane.b32.xlu0 %v450, 32
    %v1787 = vpop.permute.xlu0 %1786
    %1804 = vmatprep.subr.bf16.mxu0 0
    %1805 = vmatpush1.bf16.msra.mxu0 %v1717
    %1806 = vmatprep.subr.bf16.mxu0 0
    %1807 = vmatpush1.bf16.msra.mxu0 %v1719
    %1808 = vmatprep.subr.bf16.mxu0 0
    %1809 = vmatpush1.bf16.msra.mxu0 %v1721
    %1810 = vmatprep.subr.bf16.mxu0 0
    %1811 = vmatpush1.bf16.msra.mxu0 %v1723
    %1812 = vmatprep.subr.bf16.mxu0 0
    %1813 = vmatpush1.bf16.msra.mxu0 %v1725
    %1814 = vmatprep.subr.bf16.mxu0 0
    %1815 = vmatpush1.bf16.msra.mxu0 %v1727
    %1816 = vmatprep.subr.bf16.mxu0 0
    %1817 = vmatpush1.bf16.msra.mxu0 %v1729
    %1818 = vmatprep.subr.bf16.mxu0 0
    %1819 = vmatpush1.bf16.msra.mxu0 %v1731
    %1820 = vmatprep.subr.bf16.mxu0 0
    %1821 = vmatpush1.bf16.msra.mxu0 0
    %1822 = vmatprep.subr.bf16.mxu0 0
    %1823 = vmatpush1.bf16.msra.mxu0 0
    %1824 = vmatprep.subr.bf16.mxu0 0
    %1825 = vmatpush1.bf16.msra.mxu0 0
    %1826 = vmatprep.subr.bf16.mxu0 0
    %1827 = vmatpush1.bf16.msra.mxu0 0
    %1828 = vmatprep.subr.bf16.mxu0 0
    %1829 = vmatpush1.bf16.msra.mxu0 0
    %1830 = vmatprep.subr.bf16.mxu0 0
    %1831 = vmatpush1.bf16.msra.mxu0 0
    %1832 = vmatprep.subr.bf16.mxu0 0
    %1833 = vmatpush1.bf16.msra.mxu0 0
    %1834 = vmatprep.subr.bf16.mxu0 0
    %1835 = vmatpush1.bf16.msra.mxu0 0
    %1836 = vmatprep.mubr.bf16.mxu0 0
    %1837 = vmatmul.mubr.bf16.gmra.mrb[0].mxu0 %v241
    %v1838 = vpop.f32.mrb[0].mxu0
    %v1839 = vadd.f32 %v1757, %v1838
    %v1840 = vpop.f32.mrb[0].mxu0
    %v1841 = vpop.f32.mrb[0].mxu0
    %v1842 = vadd.f32 %v1759, %v1841
    %v1843 = vpop.f32.mrb[0].mxu0
    %1844 = vmatprep.mubr.bf16.mxu0 0
    %1845 = vmatmul.mubr.bf16.gmra.mrb[0].mxu0 %v242
    %v1846 = vpop.f32.mrb[0].mxu0
    %v1847 = vadd.f32 %v1761, %v1846
    %v1848 = vpop.f32.mrb[0].mxu0
    %v1849 = vpop.f32.mrb[0].mxu0
    %v1850 = vadd.f32 %v1763, %v1849
    %v1851 = vpop.f32.mrb[0].mxu0
    %1852 = vmatprep.mubr.bf16.mxu0 0
    %1853 = vmatmul.mubr.bf16.gmra.mrb[0].mxu0 %v243
    %v1854 = vpop.f32.mrb[0].mxu0
    %v1855 = vadd.f32 %v1765, %v1854
    %v1856 = vpop.f32.mrb[0].mxu0
    %v1857 = vpop.f32.mrb[0].mxu0
    %v1858 = vadd.f32 %v1767, %v1857
    %v1859 = vpop.f32.mrb[0].mxu0
    %1860 = vmatprep.mubr.bf16.mxu0 0
    %1861 = vmatmul.mubr.bf16.gmra.mrb[0].mxu0 %v244
    %v1862 = vpop.f32.mrb[0].mxu0
    %v1863 = vadd.f32 %v1769, %v1862
    %v1864 = vpop.f32.mrb[0].mxu0
    %v1865 = vpop.f32.mrb[0].mxu0
    %v1866 = vadd.f32 %v1771, %v1865
    %v1867 = vpop.f32.mrb[0].mxu0
    %1868 = vmatprep.mubr.bf16.mxu0 0
    %1869 = vmatmul.mubr.bf16.gmra.mrb[0].mxu0 %v245
    %v1870 = vpop.f32.mrb[0].mxu0
    %v1871 = vadd.f32 %v1773, %v1870
    %v1872 = vpop.f32.mrb[0].mxu0
    %v1873 = vpop.f32.mrb[0].mxu0
    %v1874 = vadd.f32 %v1775, %v1873
    %v1875 = vpop.f32.mrb[0].mxu0
    %1876 = vmatprep.mubr.bf16.mxu0 0
    %1877 = vmatmul.mubr.bf16.gmra.mrb[0].mxu0 %v246
    %v1878 = vpop.f32.mrb[0].mxu0
    %v1879 = vadd.f32 %v1777, %v1878
    %v1880 = vpop.f32.mrb[0].mxu0
    %v1881 = vpop.f32.mrb[0].mxu0
    %v1882 = vadd.f32 %v1779, %v1881
    %v1883 = vpop.f32.mrb[0].mxu0
    %1884 = vmatprep.mubr.bf16.mxu0 0
    %1885 = vmatmul.mubr.bf16.gmra.mrb[0].mxu0 %v247
    %v1886 = vpop.f32.mrb[0].mxu0
    %v1887 = vadd.f32 %v1781, %v1886
    %v1888 = vpop.f32.mrb[0].mxu0
    %v1889 = vpop.f32.mrb[0].mxu0
    %v1890 = vadd.f32 %v1783, %v1889
    %v1891 = vpop.f32.mrb[0].mxu0
    %1892 = vmatprep.mubr.bf16.mxu0 0
    %1893 = vmatmul.mubr.bf16.gmra.mrb[0].mxu0 %v248
    %v1894 = vpop.f32.mrb[0].mxu0
    %v1895 = vadd.f32 %v1785, %v1894
    %v1896 = vpop.f32.mrb[0].mxu0
    %v1897 = vpop.f32.mrb[0].mxu0
    %v1898 = vadd.f32 %v1787, %v1897
    %v1899 = vpop.f32.mrb[0].mxu0
    %1900 = vdwg.mxu0
    %v1901 = vsel %vm906, %v1839, 0.0
    %1902 = vadd.xlane.f32.xlu0 %v1901
    %v1903 = vpop.xlane.xlu0 %1902
    %v1904 = vsel %vm906, %v1842, 0.0
    %1905 = vadd.xlane.f32.xlu0 %v1904
    %v1906 = vpop.xlane.xlu0 %1905
    %v1907 = vsel %vm906, %v1847, 0.0
    %1908 = vadd.xlane.f32.xlu0 %v1907
    %v1909 = vpop.xlane.xlu0 %1908
    %v1910 = vsel %vm906, %v1850, 0.0
    %1911 = vadd.xlane.f32.xlu0 %v1910
    %v1912 = vpop.xlane.xlu0 %1911
    %v1913 = vsel %vm906, %v1855, 0.0
    %1914 = vadd.xlane.f32.xlu0 %v1913
    %v1915 = vpop.xlane.xlu0 %1914
    %v1916 = vsel %vm906, %v1858, 0.0
    %1917 = vadd.xlane.f32.xlu0 %v1916
    %v1918 = vpop.xlane.xlu0 %1917
    %v1919 = vsel %vm906, %v1863, 0.0
    %1920 = vadd.xlane.f32.xlu0 %v1919
    %v1921 = vpop.xlane.xlu0 %1920
    %v1922 = vsel %vm906, %v1866, 0.0
    %1923 = vadd.xlane.f32.xlu0 %v1922
    %v1924 = vpop.xlane.xlu0 %1923
    %v1925 = vsel %vm906, %v1871, 0.0
    %1926 = vadd.xlane.f32.xlu0 %v1925
    %v1927 = vpop.xlane.xlu0 %1926
    %v1928 = vsel %vm906, %v1874, 0.0
    %1929 = vadd.xlane.f32.xlu0 %v1928
    %v1930 = vpop.xlane.xlu0 %1929
    %v1931 = vsel %vm906, %v1879, 0.0
    %1932 = vadd.xlane.f32.xlu0 %v1931
    %v1933 = vpop.xlane.xlu0 %1932
    %v1934 = vsel %vm906, %v1882, 0.0
    %1935 = vadd.xlane.f32.xlu0 %v1934
    %v1936 = vpop.xlane.xlu0 %1935
    %v1937 = vsel %vm906, %v1887, 0.0
    %1938 = vadd.xlane.f32.xlu0 %v1937
    %v1939 = vpop.xlane.xlu0 %1938
    %v1940 = vsel %vm906, %v1890, 0.0
    %1941 = vadd.xlane.f32.xlu0 %v1940
    %v1942 = vpop.xlane.xlu0 %1941
    %v1943 = vsel %vm906, %v1895, 0.0
    %1944 = vadd.xlane.f32.xlu0 %v1943
    %v1945 = vpop.xlane.xlu0 %1944
    %v1946 = vsel %vm906, %v1898, 0.0
    %1947 = vadd.xlane.f32.xlu0 %v1946
    %v1948 = vpop.xlane.xlu0 %1947
    %v1949 = vrcp.pop 32.0
    %v1950 = vmul.f32 %v1903, %v1949
    %v1951 = vmul.f32 %v1906, %v1949
    %v1952 = vmul.f32 %v1909, %v1949
    %v1953 = vmul.f32 %v1912, %v1949
    %v1954 = vmul.f32 %v1915, %v1949
    %v1955 = vmul.f32 %v1918, %v1949
    %v1956 = vmul.f32 %v1921, %v1949
    %v1957 = vmul.f32 %v1924, %v1949
    %v1958 = vmul.f32 %v1927, %v1949
    %v1959 = vmul.f32 %v1930, %v1949
    %v1960 = vmul.f32 %v1933, %v1949
    %v1961 = vmul.f32 %v1936, %v1949
    %v1962 = vmul.f32 %v1939, %v1949
    %v1963 = vmul.f32 %v1942, %v1949
    %v1964 = vmul.f32 %v1945, %v1949
    %v1965 = vmul.f32 %v1948, %v1949
    %v1966 = vsub.f32 %v1839, %v1950
    %v1967 = vsub.f32 %v1842, %v1951
    %v1968 = vsub.f32 %v1847, %v1952
    %v1969 = vsub.f32 %v1850, %v1953
    %v1970 = vsub.f32 %v1855, %v1954
    %v1971 = vsub.f32 %v1858, %v1955
    %v1972 = vsub.f32 %v1863, %v1956
    %v1973 = vsub.f32 %v1866, %v1957
    %v1974 = vsub.f32 %v1871, %v1958
    %v1975 = vsub.f32 %v1874, %v1959
    %v1976 = vsub.f32 %v1879, %v1960
    %v1977 = vsub.f32 %v1882, %v1961
    %v1978 = vsub.f32 %v1887, %v1962
    %v1979 = vsub.f32 %v1890, %v1963
    %v1980 = vsub.f32 %v1895, %v1964
    %v1981 = vsub.f32 %v1898, %v1965
    %v1982 = vmul.f32 %v1966, %v1966
    %v1983 = vmul.f32 %v1967, %v1967
    %v1984 = vmul.f32 %v1968, %v1968
    %v1985 = vmul.f32 %v1969, %v1969
    %v1986 = vmul.f32 %v1970, %v1970
    %v1987 = vmul.f32 %v1971, %v1971
    %v1988 = vmul.f32 %v1972, %v1972
    %v1989 = vmul.f32 %v1973, %v1973
    %v1990 = vmul.f32 %v1974, %v1974
    %v1991 = vmul.f32 %v1975, %v1975
    %v1992 = vmul.f32 %v1976, %v1976
    %v1993 = vmul.f32 %v1977, %v1977
    %v1994 = vmul.f32 %v1978, %v1978
    %v1995 = vmul.f32 %v1979, %v1979
    %v1996 = vmul.f32 %v1980, %v1980
    %v1997 = vmul.f32 %v1981, %v1981
    %v1998 = vsel %vm906, %v1982, 0.0
    %1999 = vadd.xlane.f32.xlu0 %v1998
    %v2000 = vpop.xlane.xlu0 %1999
    %v2001 = vsel %vm906, %v1983, 0.0
    %2002 = vadd.xlane.f32.xlu0 %v2001
    %v2003 = vpop.xlane.xlu0 %2002
    %v2004 = vsel %vm906, %v1984, 0.0
    %2005 = vadd.xlane.f32.xlu0 %v2004
    %v2006 = vpop.xlane.xlu0 %2005
    %v2007 = vsel %vm906, %v1985, 0.0
    %2008 = vadd.xlane.f32.xlu0 %v2007
    %v2009 = vpop.xlane.xlu0 %2008
    %v2010 = vsel %vm906, %v1986, 0.0
    %2011 = vadd.xlane.f32.xlu0 %v2010
    %v2012 = vpop.xlane.xlu0 %2011
    %v2013 = vsel %vm906, %v1987, 0.0
    %2014 = vadd.xlane.f32.xlu0 %v2013
    %v2015 = vpop.xlane.xlu0 %2014
    %v2016 = vsel %vm906, %v1988, 0.0
    %2017 = vadd.xlane.f32.xlu0 %v2016
    %v2018 = vpop.xlane.xlu0 %2017
    %v2019 = vsel %vm906, %v1989, 0.0
    %2020 = vadd.xlane.f32.xlu0 %v2019
    %v2021 = vpop.xlane.xlu0 %2020
    %v2022 = vsel %vm906, %v1990, 0.0
    %2023 = vadd.xlane.f32.xlu0 %v2022
    %v2024 = vpop.xlane.xlu0 %2023
    %v2025 = vsel %vm906, %v1991, 0.0
    %2026 = vadd.xlane.f32.xlu0 %v2025
    %v2027 = vpop.xlane.xlu0 %2026
    %v2028 = vsel %vm906, %v1992, 0.0
    %2029 = vadd.xlane.f32.xlu0 %v2028
    %v2030 = vpop.xlane.xlu0 %2029
    %v2031 = vsel %vm906, %v1993, 0.0
    %2032 = vadd.xlane.f32.xlu0 %v2031
    %v2033 = vpop.xlane.xlu0 %2032
    %v2034 = vsel %vm906, %v1994, 0.0
    %2035 = vadd.xlane.f32.xlu0 %v2034
    %v2036 = vpop.xlane.xlu0 %2035
    %v2037 = vsel %vm906, %v1995, 0.0
    %2038 = vadd.xlane.f32.xlu0 %v2037
    %v2039 = vpop.xlane.xlu0 %2038
    %v2040 = vsel %vm906, %v1996, 0.0
    %2041 = vadd.xlane.f32.xlu0 %v2040
    %v2042 = vpop.xlane.xlu0 %2041
    %v2043 = vsel %vm906, %v1997, 0.0
    %2044 = vadd.xlane.f32.xlu0 %v2043
    %v2045 = vpop.xlane.xlu0 %2044
    %v2046 = vmul.f32 %v2000, %v1949
    %v2047 = vmul.f32 %v2003, %v1949
    %v2048 = vmul.f32 %v2006, %v1949
    %v2049 = vmul.f32 %v2009, %v1949
    %v2050 = vmul.f32 %v2012, %v1949
    %v2051 = vmul.f32 %v2015, %v1949
    %v2052 = vmul.f32 %v2018, %v1949
    %v2053 = vmul.f32 %v2021, %v1949
    %v2054 = vmul.f32 %v2024, %v1949
    %v2055 = vmul.f32 %v2027, %v1949
    %v2056 = vmul.f32 %v2030, %v1949
    %v2057 = vmul.f32 %v2033, %v1949
    %v2058 = vmul.f32 %v2036, %v1949
    %v2059 = vmul.f32 %v2039, %v1949
    %v2060 = vmul.f32 %v2042, %v1949
    %v2061 = vmul.f32 %v2045, %v1949
    %v2062 = vadd.f32 %v2046, 1e-05
    %v2063 = vadd.f32 %v2047, 1e-05
    %v2064 = vadd.f32 %v2048, 1e-05
    %v2065 = vadd.f32 %v2049, 1e-05
    %v2066 = vadd.f32 %v2050, 1e-05
    %v2067 = vadd.f32 %v2051, 1e-05
    %v2068 = vadd.f32 %v2052, 1e-05
    %v2069 = vadd.f32 %v2053, 1e-05
    %v2070 = vadd.f32 %v2054, 1e-05
    %v2071 = vadd.f32 %v2055, 1e-05
    %v2072 = vadd.f32 %v2056, 1e-05
    %v2073 = vadd.f32 %v2057, 1e-05
    %v2074 = vadd.f32 %v2058, 1e-05
    %v2075 = vadd.f32 %v2059, 1e-05
    %v2076 = vadd.f32 %v2060, 1e-05
    %v2077 = vadd.f32 %v2061, 1e-05
    %v2078 = vrsqrt.pop %v2062
    %v2079 = vrsqrt.pop %v2063
    %v2080 = vrsqrt.pop %v2064
    %v2081 = vrsqrt.pop %v2065
    %v2082 = vrsqrt.pop %v2066
    %v2083 = vrsqrt.pop %v2067
    %v2084 = vrsqrt.pop %v2068
    %v2085 = vrsqrt.pop %v2069
    %v2086 = vrsqrt.pop %v2070
    %v2087 = vrsqrt.pop %v2071
    %v2088 = vrsqrt.pop %v2072
    %v2089 = vrsqrt.pop %v2073
    %v2090 = vrsqrt.pop %v2074
    %v2091 = vrsqrt.pop %v2075
    %v2092 = vrsqrt.pop %v2076
    %v2093 = vrsqrt.pop %v2077
    %v2094 = vmul.f32 %v1966, %v2078
    %v2095 = vmul.f32 %v1967, %v2079
    %v2096 = vmul.f32 %v1968, %v2080
    %v2097 = vmul.f32 %v1969, %v2081
    %v2098 = vmul.f32 %v1970, %v2082
    %v2099 = vmul.f32 %v1971, %v2083
    %v2100 = vmul.f32 %v1972, %v2084
    %v2101 = vmul.f32 %v1973, %v2085
    %v2102 = vmul.f32 %v1974, %v2086
    %v2103 = vmul.f32 %v1975, %v2087
    %v2104 = vmul.f32 %v1976, %v2088
    %v2105 = vmul.f32 %v1977, %v2089
    %v2106 = vmul.f32 %v1978, %v2090
    %v2107 = vmul.f32 %v1979, %v2091
    %v2108 = vmul.f32 %v1980, %v2092
    %v2109 = vmul.f32 %v1981, %v2093
    %v2110 = vld [vmem:[%s41] sm:$0x1]
    %v2112 = vlaneseq
    %v2113 = vshrl.u32 %v2112, 7
    %v2114 = vsub.s32 0, %v2113
    %v2115 = vrot.slane %v2110, %v2114
    %v2117 = vmul.f32 %v2094, %v2115
    %v2118 = vmul.f32 %v2095, %v2115
    %v2119 = vmul.f32 %v2096, %v2115
    %v2120 = vmul.f32 %v2097, %v2115
    %v2121 = vmul.f32 %v2098, %v2115
    %v2122 = vmul.f32 %v2099, %v2115
    %v2123 = vmul.f32 %v2100, %v2115
    %v2124 = vmul.f32 %v2101, %v2115
    %v2125 = vmul.f32 %v2102, %v2115
    %v2126 = vmul.f32 %v2103, %v2115
    %v2127 = vmul.f32 %v2104, %v2115
    %v2128 = vmul.f32 %v2105, %v2115
    %v2129 = vmul.f32 %v2106, %v2115
    %v2130 = vmul.f32 %v2107, %v2115
    %v2131 = vmul.f32 %v2108, %v2115
    %v2132 = vmul.f32 %v2109, %v2115
    %v2133 = vld [vmem:[%s43] sm:$0x1]
    %v2135 = vlaneseq
    %v2136 = vshrl.u32 %v2135, 7
    %v2137 = vsub.s32 0, %v2136
    %v2138 = vrot.slane %v2133, %v2137
    %v2140 = vadd.f32 %v2117, %v2138
    %v2141 = vadd.f32 %v2118, %v2138
    %v2142 = vadd.f32 %v2119, %v2138
    %v2143 = vadd.f32 %v2120, %v2138
    %v2144 = vadd.f32 %v2121, %v2138
    %v2145 = vadd.f32 %v2122, %v2138
    %v2146 = vadd.f32 %v2123, %v2138
    %v2147 = vadd.f32 %v2124, %v2138
    %v2148 = vadd.f32 %v2125, %v2138
    %v2149 = vadd.f32 %v2126, %v2138
    %v2150 = vadd.f32 %v2127, %v2138
    %v2151 = vadd.f32 %v2128, %v2138
    %v2152 = vadd.f32 %v2129, %v2138
    %v2153 = vadd.f32 %v2130, %v2138
    %v2154 = vadd.f32 %v2131, %v2138
    %v2155 = vadd.f32 %v2132, %v2138
    %v2156 = vmax.f32 %v2140, 0.0
    %v2157 = vmax.f32 %v2141, 0.0
    %v2158 = vmax.f32 %v2142, 0.0
    %v2159 = vmax.f32 %v2143, 0.0
    %v2160 = vmax.f32 %v2144, 0.0
    %v2161 = vmax.f32 %v2145, 0.0
    %v2162 = vmax.f32 %v2146, 0.0
    %v2163 = vmax.f32 %v2147, 0.0
    %v2164 = vmax.f32 %v2148, 0.0
    %v2165 = vmax.f32 %v2149, 0.0
    %v2166 = vmax.f32 %v2150, 0.0
    %v2167 = vmax.f32 %v2151, 0.0
    %v2168 = vmax.f32 %v2152, 0.0
    %v2169 = vmax.f32 %v2153, 0.0
    %v2170 = vmax.f32 %v2154, 0.0
    %v2171 = vmax.f32 %v2155, 0.0
    %v2172 = vld [vmem:[%s21] sm:$0xff]
    %v2173 = vld [vmem:[%s21 + $0x8] sm:$0xff]
    %v2174 = vld [vmem:[%s21 + $0x10] sm:$0xff]
    %v2175 = vld [vmem:[%s21 + $0x18] sm:$0xff]
    %v2176 = vld [vmem:[%s23] sm:$0x1]
    %v2178 = vlaneseq
    %v2179 = vshrl.u32 %v2178, 7
    %v2180 = vsub.s32 0, %v2179
    %v2181 = vrot.slane %v2176, %v2180
    %v2184 = vsel %vm906, %v2156, 0
    %v2187 = vsel %vm906, %v2157, 0
    %v2190 = vsel %vm906, %v2158, 0
    %v2193 = vsel %vm906, %v2159, 0
    %v2196 = vsel %vm906, %v2160, 0
    %v2199 = vsel %vm906, %v2161, 0
    %v2202 = vsel %vm906, %v2162, 0
    %v2205 = vsel %vm906, %v2163, 0
    %v2208 = vsel %vm906, %v2164, 0
    %v2211 = vsel %vm906, %v2165, 0
    %v2214 = vsel %vm906, %v2166, 0
    %v2217 = vsel %vm906, %v2167, 0
    %v2220 = vsel %vm906, %v2168, 0
    %v2223 = vsel %vm906, %v2169, 0
    %v2226 = vsel %vm906, %v2170, 0
    %v2229 = vsel %vm906, %v2171, 0
    %2231 = vmatprep.subr.mxu0 0.0
    %2232 = vmatpush1.msra.mxu0 %v2172
    %2233 = vmatprep.subr.mxu0 0.0
    %2234 = vmatpush1.msra.mxu0 %v2173
    %2235 = vmatprep.subr.mxu0 0.0
    %2236 = vmatpush1.msra.mxu0 %v2174
    %2237 = vmatprep.subr.mxu0 0.0
    %2238 = vmatpush1.msra.mxu0 %v2175
    %2239 = vmatprep.subr.mxu0 0.0
    %2240 = vmatpush1.msra.mxu0 0.0
    %2241 = vmatprep.subr.mxu0 0.0
    %2242 = vmatpush1.msra.mxu0 0.0
    %2243 = vmatprep.subr.mxu0 0.0
    %2244 = vmatpush1.msra.mxu0 0.0
    %2245 = vmatprep.subr.mxu0 0.0
    %2246 = vmatpush1.msra.mxu0 0.0
    %2247 = vmatprep.subr.mxu0 0.0
    %2248 = vmatpush1.msra.mxu0 0.0
    %2249 = vmatprep.subr.mxu0 0.0
    %2250 = vmatpush1.msra.mxu0 0.0
    %2251 = vmatprep.subr.mxu0 0.0
    %2252 = vmatpush1.msra.mxu0 0.0
    %2253 = vmatprep.subr.mxu0 0.0
    %2254 = vmatpush1.msra.mxu0 0.0
    %2255 = vmatprep.subr.mxu0 0.0
    %2256 = vmatpush1.msra.mxu0 0.0
    %2257 = vmatprep.subr.mxu0 0.0
    %2258 = vmatpush1.msra.mxu0 0.0
    %2259 = vmatprep.subr.mxu0 0.0
    %2260 = vmatpush1.msra.mxu0 0.0
    %2261 = vmatprep.subr.mxu0 0.0
    %2262 = vmatpush1.msra.mxu0 0.0
    %2263 = vmatprep.subr.mxu0 0.0
    %2264 = vmatpush1.msra.mxu0 0.0
    %2265 = vmatprep.subr.mxu0 0.0
    %2266 = vmatpush1.msra.mxu0 0.0
    %2267 = vmatprep.subr.mxu0 0.0
    %2268 = vmatpush1.msra.mxu0 0.0
    %2269 = vmatprep.subr.mxu0 0.0
    %2270 = vmatpush1.msra.mxu0 0.0
    %2271 = vmatprep.subr.mxu0 0.0
    %2272 = vmatpush1.msra.mxu0 0.0
    %2273 = vmatprep.subr.mxu0 0.0
    %2274 = vmatpush1.msra.mxu0 0.0
    %2275 = vmatprep.subr.mxu0 0.0
    %2276 = vmatpush1.msra.mxu0 0.0
    %2277 = vmatprep.subr.mxu0 0.0
    %2278 = vmatpush1.msra.mxu0 0.0
    %2279 = vmatprep.subr.mxu0 0.0
    %2280 = vmatpush1.msra.mxu0 0.0
    %2281 = vmatprep.subr.mxu0 0.0
    %2282 = vmatpush1.msra.mxu0 0.0
    %2283 = vmatprep.subr.mxu0 0.0
    %2284 = vmatpush1.msra.mxu0 0.0
    %2285 = vmatprep.subr.mxu0 0.0
    %2286 = vmatpush1.msra.mxu0 0.0
    %2287 = vmatprep.subr.mxu0 0.0
    %2288 = vmatpush1.msra.mxu0 0.0
    %2289 = vmatprep.subr.mxu0 0.0
    %2290 = vmatpush1.msra.mxu0 0.0
    %2291 = vmatprep.subr.mxu0 0.0
    %2292 = vmatpush1.msra.mxu0 0.0
    %2293 = vmatprep.subr.mxu0 0.0
    %2294 = vmatpush1.msra.mxu0 0.0
    %2295 = vmatprep.mubr.f32.mxu0 0.0
    %2296 = vmatmul.mubr.f32.gmra.mrb[0].mxu0 %v2184
    %v2297 = vpop.f32.mrb[0].mxu0
    %v2298 = vadd.f32 %v2181, %v2297
    %v2299 = vpop.f32.mrb[0].mxu0
    %2300 = vmatprep.mubr.f32.mxu0 0.0
    %2301 = vmatmul.mubr.f32.gmra.mrb[0].mxu0 %v2187
    %v2302 = vpop.f32.mrb[0].mxu0
    %v2303 = vadd.f32 %v2181, %v2302
    %v2304 = vpop.f32.mrb[0].mxu0
    %2305 = vmatprep.mubr.f32.mxu0 0.0
    %2306 = vmatmul.mubr.f32.gmra.mrb[0].mxu0 %v2190
    %v2307 = vpop.f32.mrb[0].mxu0
    %v2308 = vadd.f32 %v2181, %v2307
    %v2309 = vpop.f32.mrb[0].mxu0
    %2310 = vmatprep.mubr.f32.mxu0 0.0
    %2311 = vmatmul.mubr.f32.gmra.mrb[0].mxu0 %v2193
    %v2312 = vpop.f32.mrb[0].mxu0
    %v2313 = vadd.f32 %v2181, %v2312
    %v2314 = vpop.f32.mrb[0].mxu0
    %2315 = vmatprep.mubr.f32.mxu0 0.0
    %2316 = vmatmul.mubr.f32.gmra.mrb[0].mxu0 %v2196
    %v2317 = vpop.f32.mrb[0].mxu0
    %v2318 = vadd.f32 %v2181, %v2317
    %v2319 = vpop.f32.mrb[0].mxu0
    %2320 = vmatprep.mubr.f32.mxu0 0.0
    %2321 = vmatmul.mubr.f32.gmra.mrb[0].mxu0 %v2199
    %v2322 = vpop.f32.mrb[0].mxu0
    %v2323 = vadd.f32 %v2181, %v2322
    %v2324 = vpop.f32.mrb[0].mxu0
    %2325 = vmatprep.mubr.f32.mxu0 0.0
    %2326 = vmatmul.mubr.f32.gmra.mrb[0].mxu0 %v2202
    %v2327 = vpop.f32.mrb[0].mxu0
    %v2328 = vadd.f32 %v2181, %v2327
    %v2329 = vpop.f32.mrb[0].mxu0
    %2330 = vmatprep.mubr.f32.mxu0 0.0
    %2331 = vmatmul.mubr.f32.gmra.mrb[0].mxu0 %v2205
    %v2332 = vpop.f32.mrb[0].mxu0
    %v2333 = vadd.f32 %v2181, %v2332
    %v2334 = vpop.f32.mrb[0].mxu0
    %2335 = vmatprep.mubr.f32.mxu0 0.0
    %2336 = vmatmul.mubr.f32.gmra.mrb[0].mxu0 %v2208
    %v2337 = vpop.f32.mrb[0].mxu0
    %v2338 = vadd.f32 %v2181, %v2337
    %v2339 = vpop.f32.mrb[0].mxu0
    %2340 = vmatprep.mubr.f32.mxu0 0.0
    %2341 = vmatmul.mubr.f32.gmra.mrb[0].mxu0 %v2211
    %v2342 = vpop.f32.mrb[0].mxu0
    %v2343 = vadd.f32 %v2181, %v2342
    %v2344 = vpop.f32.mrb[0].mxu0
    %2345 = vmatprep.mubr.f32.mxu0 0.0
    %2346 = vmatmul.mubr.f32.gmra.mrb[0].mxu0 %v2214
    %v2347 = vpop.f32.mrb[0].mxu0
    %v2348 = vadd.f32 %v2181, %v2347
    %v2349 = vpop.f32.mrb[0].mxu0
    %2350 = vmatprep.mubr.f32.mxu0 0.0
    %2351 = vmatmul.mubr.f32.gmra.mrb[0].mxu0 %v2217
    %v2352 = vpop.f32.mrb[0].mxu0
    %v2353 = vadd.f32 %v2181, %v2352
    %v2354 = vpop.f32.mrb[0].mxu0
    %2355 = vmatprep.mubr.f32.mxu0 0.0
    %2356 = vmatmul.mubr.f32.gmra.mrb[0].mxu0 %v2220
    %v2357 = vpop.f32.mrb[0].mxu0
    %v2358 = vadd.f32 %v2181, %v2357
    %v2359 = vpop.f32.mrb[0].mxu0
    %2360 = vmatprep.mubr.f32.mxu0 0.0
    %2361 = vmatmul.mubr.f32.gmra.mrb[0].mxu0 %v2223
    %v2362 = vpop.f32.mrb[0].mxu0
    %v2363 = vadd.f32 %v2181, %v2362
    %v2364 = vpop.f32.mrb[0].mxu0
    %2365 = vmatprep.mubr.f32.mxu0 0.0
    %2366 = vmatmul.mubr.f32.gmra.mrb[0].mxu0 %v2226
    %v2367 = vpop.f32.mrb[0].mxu0
    %v2368 = vadd.f32 %v2181, %v2367
    %v2369 = vpop.f32.mrb[0].mxu0
    %2370 = vmatprep.mubr.f32.mxu0 0.0
    %2371 = vmatmul.mubr.f32.gmra.mrb[0].mxu0 %v2229
    %v2372 = vpop.f32.mrb[0].mxu0
    %v2373 = vadd.f32 %v2181, %v2372
    %v2374 = vpop.f32.mrb[0].mxu0
    %2375 = vdwg.mxu0
    %v2376 = vld [vmem:[%s25] sm:$0x1]
    %v2378 = vlaneseq
    %v2379 = vshrl.u32 %v2378, 7
    %v2380 = vsub.s32 0, %v2379
    %v2381 = vrot.slane %v2376, %v2380
    %v2383 = vmul.f32 %v457, %v2381
    %v2384 = vmul.f32 %v462, %v2381
    %v2385 = vmul.f32 %v467, %v2381
    %v2386 = vmul.f32 %v472, %v2381
    %v2387 = vmul.f32 %v477, %v2381
    %v2388 = vmul.f32 %v482, %v2381
    %v2389 = vmul.f32 %v487, %v2381
    %v2390 = vmul.f32 %v492, %v2381
    %v2391 = vmul.f32 %v497, %v2381
    %v2392 = vmul.f32 %v502, %v2381
    %v2393 = vmul.f32 %v507, %v2381
    %v2394 = vmul.f32 %v512, %v2381
    %v2395 = vmul.f32 %v517, %v2381
    %v2396 = vmul.f32 %v522, %v2381
    %v2397 = vmul.f32 %v527, %v2381
    %v2398 = vmul.f32 %v532, %v2381
    %v2399 = vpack.c.bf16 %v2303, %v2298
    %v2400 = vpack.c.bf16 %v2313, %v2308
    %v2401 = vpack.c.bf16 %v2323, %v2318
    %v2402 = vpack.c.bf16 %v2333, %v2328
    %v2403 = vpack.c.bf16 %v2343, %v2338
    %v2404 = vpack.c.bf16 %v2353, %v2348
    %v2405 = vpack.c.bf16 %v2363, %v2358
    %v2406 = vpack.c.bf16 %v2373, %v2368
    %2407 = vmatprep.subr.bf16.mxu0 0
    %2408 = vmatpush1.bf16.msra.mxu0 %v2399
    %2409 = vmatprep.subr.bf16.mxu0 0
    %2410 = vmatpush1.bf16.msra.mxu0 %v2400
    %2411 = vmatprep.subr.bf16.mxu0 0
    %2412 = vmatpush1.bf16.msra.mxu0 %v2401
    %2413 = vmatprep.subr.bf16.mxu0 0
    %2414 = vmatpush1.bf16.msra.mxu0 %v2402
    %2415 = vmatprep.subr.bf16.mxu0 0
    %2416 = vmatpush1.bf16.msra.mxu0 %v2403
    %2417 = vmatprep.subr.bf16.mxu0 0
    %2418 = vmatpush1.bf16.msra.mxu0 %v2404
    %2419 = vmatprep.subr.bf16.mxu0 0
    %2420 = vmatpush1.bf16.msra.mxu0 %v2405
    %2421 = vmatprep.subr.bf16.mxu0 0
    %2422 = vmatpush1.bf16.msra.mxu0 %v2406
    %2423 = vmatprep.subr.bf16.mxu0 0
    %2424 = vmatpush1.bf16.msra.mxu0 0
    %2425 = vmatprep.subr.bf16.mxu0 0
    %2426 = vmatpush1.bf16.msra.mxu0 0
    %2427 = vmatprep.subr.bf16.mxu0 0
    %2428 = vmatpush1.bf16.msra.mxu0 0
    %2429 = vmatprep.subr.bf16.mxu0 0
    %2430 = vmatpush1.bf16.msra.mxu0 0
    %2431 = vmatprep.subr.bf16.mxu0 0
    %2432 = vmatpush1.bf16.msra.mxu0 0
    %2433 = vmatprep.subr.bf16.mxu0 0
    %2434 = vmatpush1.bf16.msra.mxu0 0
    %2435 = vmatprep.subr.bf16.mxu0 0
    %2436 = vmatpush1.bf16.msra.mxu0 0
    %2437 = vmatprep.subr.bf16.mxu0 0
    %2438 = vmatpush1.bf16.msra.mxu0 0
    %2439 = vmatprep.mubr.bf16.mxu0 0
    %2440 = vmatmul.mubr.bf16.gmra.mrb[0].mxu0 %v596
    %v2441 = vpop.f32.mrb[0].mxu0
    %v2442 = vadd.f32 %v2383, %v2441
    %v2443 = vpop.f32.mrb[0].mxu0
    %v2444 = vpop.f32.mrb[0].mxu0
    %v2445 = vadd.f32 %v2384, %v2444
    %v2446 = vpop.f32.mrb[0].mxu0
    %2447 = vmatprep.mubr.bf16.mxu0 0
    %2448 = vmatmul.mubr.bf16.gmra.mrb[0].mxu0 %v597
    %v2449 = vpop.f32.mrb[0].mxu0
    %v2450 = vadd.f32 %v2385, %v2449
    %v2451 = vpop.f32.mrb[0].mxu0
    %v2452 = vpop.f32.mrb[0].mxu0
    %v2453 = vadd.f32 %v2386, %v2452
    %v2454 = vpop.f32.mrb[0].mxu0
    %2455 = vmatprep.mubr.bf16.mxu0 0
    %2456 = vmatmul.mubr.bf16.gmra.mrb[0].mxu0 %v598
    %v2457 = vpop.f32.mrb[0].mxu0
    %v2458 = vadd.f32 %v2387, %v2457
    %v2459 = vpop.f32.mrb[0].mxu0
    %v2460 = vpop.f32.mrb[0].mxu0
    %v2461 = vadd.f32 %v2388, %v2460
    %v2462 = vpop.f32.mrb[0].mxu0
    %2463 = vmatprep.mubr.bf16.mxu0 0
    %2464 = vmatmul.mubr.bf16.gmra.mrb[0].mxu0 %v599
    %v2465 = vpop.f32.mrb[0].mxu0
    %v2466 = vadd.f32 %v2389, %v2465
    %v2467 = vpop.f32.mrb[0].mxu0
    %v2468 = vpop.f32.mrb[0].mxu0
    %v2469 = vadd.f32 %v2390, %v2468
    %v2470 = vpop.f32.mrb[0].mxu0
    %2471 = vmatprep.mubr.bf16.mxu0 0
    %2472 = vmatmul.mubr.bf16.gmra.mrb[0].mxu0 %v600
    %v2473 = vpop.f32.mrb[0].mxu0
    %v2474 = vadd.f32 %v2391, %v2473
    %v2475 = vpop.f32.mrb[0].mxu0
    %v2476 = vpop.f32.mrb[0].mxu0
    %v2477 = vadd.f32 %v2392, %v2476
    %v2478 = vpop.f32.mrb[0].mxu0
    %2479 = vmatprep.mubr.bf16.mxu0 0
    %2480 = vmatmul.mubr.bf16.gmra.mrb[0].mxu0 %v601
    %v2481 = vpop.f32.mrb[0].mxu0
    %v2482 = vadd.f32 %v2393, %v2481
    %v2483 = vpop.f32.mrb[0].mxu0
    %v2484 = vpop.f32.mrb[0].mxu0
    %v2485 = vadd.f32 %v2394, %v2484
    %v2486 = vpop.f32.mrb[0].mxu0
    %2487 = vmatprep.mubr.bf16.mxu0 0
    %2488 = vmatmul.mubr.bf16.gmra.mrb[0].mxu0 %v602
    %v2489 = vpop.f32.mrb[0].mxu0
    %v2490 = vadd.f32 %v2395, %v2489
    %v2491 = vpop.f32.mrb[0].mxu0
    %v2492 = vpop.f32.mrb[0].mxu0
    %v2493 = vadd.f32 %v2396, %v2492
    %v2494 = vpop.f32.mrb[0].mxu0
    %2495 = vmatprep.mubr.bf16.mxu0 0
    %2496 = vmatmul.mubr.bf16.gmra.mrb[0].mxu0 %v603
    %v2497 = vpop.f32.mrb[0].mxu0
    %v2498 = vadd.f32 %v2397, %v2497
    %v2499 = vpop.f32.mrb[0].mxu0
    %v2500 = vpop.f32.mrb[0].mxu0
    %v2501 = vadd.f32 %v2398, %v2500
    %v2502 = vpop.f32.mrb[0].mxu0
    %2503 = vdwg.mxu0
    %2512 = vrot.lane.b32.xlu0 %v2399, 64
    %v2513 = vpop.permute.xlu0 %2512
    %2514 = vrot.lane.b32.xlu0 %v2400, 64
    %v2515 = vpop.permute.xlu0 %2514
    %2516 = vrot.lane.b32.xlu0 %v2401, 64
    %v2517 = vpop.permute.xlu0 %2516
    %2518 = vrot.lane.b32.xlu0 %v2402, 64
    %v2519 = vpop.permute.xlu0 %2518
    %2520 = vrot.lane.b32.xlu0 %v2403, 64
    %v2521 = vpop.permute.xlu0 %2520
    %2522 = vrot.lane.b32.xlu0 %v2404, 64
    %v2523 = vpop.permute.xlu0 %2522
    %2524 = vrot.lane.b32.xlu0 %v2405, 64
    %v2525 = vpop.permute.xlu0 %2524
    %2526 = vrot.lane.b32.xlu0 %v2406, 64
    %v2527 = vpop.permute.xlu0 %2526
    %2536 = vmatprep.subr.bf16.mxu0 0
    %2537 = vmatpush1.bf16.msra.mxu0 %v2513
    %2538 = vmatprep.subr.bf16.mxu0 0
    %2539 = vmatpush1.bf16.msra.mxu0 %v2515
    %2540 = vmatprep.subr.bf16.mxu0 0
    %2541 = vmatpush1.bf16.msra.mxu0 %v2517
    %2542 = vmatprep.subr.bf16.mxu0 0
    %2543 = vmatpush1.bf16.msra.mxu0 %v2519
    %2544 = vmatprep.subr.bf16.mxu0 0
    %2545 = vmatpush1.bf16.msra.mxu0 %v2521
    %2546 = vmatprep.subr.bf16.mxu0 0
    %2547 = vmatpush1.bf16.msra.mxu0 %v2523
    %2548 = vmatprep.subr.bf16.mxu0 0
    %2549 = vmatpush1.bf16.msra.mxu0 %v2525
    %2550 = vmatprep.subr.bf16.mxu0 0
    %2551 = vmatpush1.bf16.msra.mxu0 %v2527
    %2552 = vmatprep.subr.bf16.mxu0 0
    %2553 = vmatpush1.bf16.msra.mxu0 0
    %2554 = vmatprep.subr.bf16.mxu0 0
    %2555 = vmatpush1.bf16.msra.mxu0 0
    %2556 = vmatprep.subr.bf16.mxu0 0
    %2557 = vmatpush1.bf16.msra.mxu0 0
    %2558 = vmatprep.subr.bf16.mxu0 0
    %2559 = vmatpush1.bf16.msra.mxu0 0
    %2560 = vmatprep.subr.bf16.mxu0 0
    %2561 = vmatpush1.bf16.msra.mxu0 0
    %2562 = vmatprep.subr.bf16.mxu0 0
    %2563 = vmatpush1.bf16.msra.mxu0 0
    %2564 = vmatprep.subr.bf16.mxu0 0
    %2565 = vmatpush1.bf16.msra.mxu0 0
    %2566 = vmatprep.subr.bf16.mxu0 0
    %2567 = vmatpush1.bf16.msra.mxu0 0
    %2568 = vmatprep.mubr.bf16.mxu0 0
    %2569 = vmatmul.mubr.bf16.gmra.mrb[0].mxu0 %v741
    %v2570 = vpop.f32.mrb[0].mxu0
    %v2571 = vadd.f32 0.0, %v2570
    %v2572 = vpop.f32.mrb[0].mxu0
    %v2573 = vpop.f32.mrb[0].mxu0
    %v2574 = vadd.f32 0.0, %v2573
    %v2575 = vpop.f32.mrb[0].mxu0
    %2576 = vmatprep.mubr.bf16.mxu0 0
    %2577 = vmatmul.mubr.bf16.gmra.mrb[0].mxu0 %v742
    %v2578 = vpop.f32.mrb[0].mxu0
    %v2579 = vadd.f32 0.0, %v2578
    %v2580 = vpop.f32.mrb[0].mxu0
    %v2581 = vpop.f32.mrb[0].mxu0
    %v2582 = vadd.f32 0.0, %v2581
    %v2583 = vpop.f32.mrb[0].mxu0
    %2584 = vmatprep.mubr.bf16.mxu0 0
    %2585 = vmatmul.mubr.bf16.gmra.mrb[0].mxu0 %v743
    %v2586 = vpop.f32.mrb[0].mxu0
    %v2587 = vadd.f32 0.0, %v2586
    %v2588 = vpop.f32.mrb[0].mxu0
    %v2589 = vpop.f32.mrb[0].mxu0
    %v2590 = vadd.f32 0.0, %v2589
    %v2591 = vpop.f32.mrb[0].mxu0
    %2592 = vmatprep.mubr.bf16.mxu0 0
    %2593 = vmatmul.mubr.bf16.gmra.mrb[0].mxu0 %v744
    %v2594 = vpop.f32.mrb[0].mxu0
    %v2595 = vadd.f32 0.0, %v2594
    %v2596 = vpop.f32.mrb[0].mxu0
    %v2597 = vpop.f32.mrb[0].mxu0
    %v2598 = vadd.f32 0.0, %v2597
    %v2599 = vpop.f32.mrb[0].mxu0
    %2600 = vmatprep.mubr.bf16.mxu0 0
    %2601 = vmatmul.mubr.bf16.gmra.mrb[0].mxu0 %v745
    %v2602 = vpop.f32.mrb[0].mxu0
    %v2603 = vadd.f32 0.0, %v2602
    %v2604 = vpop.f32.mrb[0].mxu0
    %v2605 = vpop.f32.mrb[0].mxu0
    %v2606 = vadd.f32 0.0, %v2605
    %v2607 = vpop.f32.mrb[0].mxu0
    %2608 = vmatprep.mubr.bf16.mxu0 0
    %2609 = vmatmul.mubr.bf16.gmra.mrb[0].mxu0 %v746
    %v2610 = vpop.f32.mrb[0].mxu0
    %v2611 = vadd.f32 0.0, %v2610
    %v2612 = vpop.f32.mrb[0].mxu0
    %v2613 = vpop.f32.mrb[0].mxu0
    %v2614 = vadd.f32 0.0, %v2613
    %v2615 = vpop.f32.mrb[0].mxu0
    %2616 = vmatprep.mubr.bf16.mxu0 0
    %2617 = vmatmul.mubr.bf16.gmra.mrb[0].mxu0 %v747
    %v2618 = vpop.f32.mrb[0].mxu0
    %v2619 = vadd.f32 0.0, %v2618
    %v2620 = vpop.f32.mrb[0].mxu0
    %v2621 = vpop.f32.mrb[0].mxu0
    %v2622 = vadd.f32 0.0, %v2621
    %v2623 = vpop.f32.mrb[0].mxu0
    %2624 = vmatprep.mubr.bf16.mxu0 0
    %2625 = vmatmul.mubr.bf16.gmra.mrb[0].mxu0 %v748
    %v2626 = vpop.f32.mrb[0].mxu0
    %v2627 = vadd.f32 0.0, %v2626
    %v2628 = vpop.f32.mrb[0].mxu0
    %v2629 = vpop.f32.mrb[0].mxu0
    %v2630 = vadd.f32 0.0, %v2629
    %v2631 = vpop.f32.mrb[0].mxu0
    %2632 = vdwg.mxu0
    %v2633 = vmul.f32 %v2571, %v2442
    %v2634 = vmul.f32 %v2574, %v2445
    %v2635 = vmul.f32 %v2579, %v2450
    %v2636 = vmul.f32 %v2582, %v2453
    %v2637 = vmul.f32 %v2587, %v2458
    %v2638 = vmul.f32 %v2590, %v2461
    %v2639 = vmul.f32 %v2595, %v2466
    %v2640 = vmul.f32 %v2598, %v2469
    %v2641 = vmul.f32 %v2603, %v2474
    %v2642 = vmul.f32 %v2606, %v2477
    %v2643 = vmul.f32 %v2611, %v2482
    %v2644 = vmul.f32 %v2614, %v2485
    %v2645 = vmul.f32 %v2619, %v2490
    %v2646 = vmul.f32 %v2622, %v2493
    %v2647 = vmul.f32 %v2627, %v2498
    %v2648 = vmul.f32 %v2630, %v2501
    %v2649 = vld [vmem:[%s27] sm:$0xff]
    %v2650 = vld [vmem:[%s27 + $0x8] sm:$0xff]
    %v2651 = vld [vmem:[%s27 + $0x10] sm:$0xff]
    %v2652 = vld [vmem:[%s27 + $0x18] sm:$0xff]
    %v2654 = vsel %vm906, %v2633, 0
    %v2657 = vsel %vm906, %v2634, 0
    %v2660 = vsel %vm906, %v2635, 0
    %v2663 = vsel %vm906, %v2636, 0
    %v2666 = vsel %vm906, %v2637, 0
    %v2669 = vsel %vm906, %v2638, 0
    %v2672 = vsel %vm906, %v2639, 0
    %v2675 = vsel %vm906, %v2640, 0
    %v2678 = vsel %vm906, %v2641, 0
    %v2681 = vsel %vm906, %v2642, 0
    %v2684 = vsel %vm906, %v2643, 0
    %v2687 = vsel %vm906, %v2644, 0
    %v2690 = vsel %vm906, %v2645, 0
    %v2693 = vsel %vm906, %v2646, 0
    %v2696 = vsel %vm906, %v2647, 0
    %v2699 = vsel %vm906, %v2648, 0
    %2701 = vmatprep.subr.mxu0 0.0
    %2702 = vmatpush1.msra.mxu0 %v2649
    %2703 = vmatprep.subr.mxu0 0.0
    %2704 = vmatpush1.msra.mxu0 %v2650
    %2705 = vmatprep.subr.mxu0 0.0
    %2706 = vmatpush1.msra.mxu0 %v2651
    %2707 = vmatprep.subr.mxu0 0.0
    %2708 = vmatpush1.msra.mxu0 %v2652
    %2709 = vmatprep.subr.mxu0 0.0
    %2710 = vmatpush1.msra.mxu0 0.0
    %2711 = vmatprep.subr.mxu0 0.0
    %2712 = vmatpush1.msra.mxu0 0.0
    %2713 = vmatprep.subr.mxu0 0.0
    %2714 = vmatpush1.msra.mxu0 0.0
    %2715 = vmatprep.subr.mxu0 0.0
    %2716 = vmatpush1.msra.mxu0 0.0
    %2717 = vmatprep.subr.mxu0 0.0
    %2718 = vmatpush1.msra.mxu0 0.0
    %2719 = vmatprep.subr.mxu0 0.0
    %2720 = vmatpush1.msra.mxu0 0.0
    %2721 = vmatprep.subr.mxu0 0.0
    %2722 = vmatpush1.msra.mxu0 0.0
    %2723 = vmatprep.subr.mxu0 0.0
    %2724 = vmatpush1.msra.mxu0 0.0
    %2725 = vmatprep.subr.mxu0 0.0
    %2726 = vmatpush1.msra.mxu0 0.0
    %2727 = vmatprep.subr.mxu0 0.0
    %2728 = vmatpush1.msra.mxu0 0.0
    %2729 = vmatprep.subr.mxu0 0.0
    %2730 = vmatpush1.msra.mxu0 0.0
    %2731 = vmatprep.subr.mxu0 0.0
    %2732 = vmatpush1.msra.mxu0 0.0
    %2733 = vmatprep.subr.mxu0 0.0
    %2734 = vmatpush1.msra.mxu0 0.0
    %2735 = vmatprep.subr.mxu0 0.0
    %2736 = vmatpush1.msra.mxu0 0.0
    %2737 = vmatprep.subr.mxu0 0.0
    %2738 = vmatpush1.msra.mxu0 0.0
    %2739 = vmatprep.subr.mxu0 0.0
    %2740 = vmatpush1.msra.mxu0 0.0
    %2741 = vmatprep.subr.mxu0 0.0
    %2742 = vmatpush1.msra.mxu0 0.0
    %2743 = vmatprep.subr.mxu0 0.0
    %2744 = vmatpush1.msra.mxu0 0.0
    %2745 = vmatprep.subr.mxu0 0.0
    %2746 = vmatpush1.msra.mxu0 0.0
    %2747 = vmatprep.subr.mxu0 0.0
    %2748 = vmatpush1.msra.mxu0 0.0
    %2749 = vmatprep.subr.mxu0 0.0
    %2750 = vmatpush1.msra.mxu0 0.0
    %2751 = vmatprep.subr.mxu0 0.0
    %2752 = vmatpush1.msra.mxu0 0.0
    %2753 = vmatprep.subr.mxu0 0.0
    %2754 = vmatpush1.msra.mxu0 0.0
    %2755 = vmatprep.subr.mxu0 0.0
    %2756 = vmatpush1.msra.mxu0 0.0
    %2757 = vmatprep.subr.mxu0 0.0
    %2758 = vmatpush1.msra.mxu0 0.0
    %2759 = vmatprep.subr.mxu0 0.0
    %2760 = vmatpush1.msra.mxu0 0.0
    %2761 = vmatprep.subr.mxu0 0.0
    %2762 = vmatpush1.msra.mxu0 0.0
    %2763 = vmatprep.subr.mxu0 0.0
    %2764 = vmatpush1.msra.mxu0 0.0
    %2765 = vmatprep.mubr.f32.mxu0 0.0
    %2766 = vmatmul.mubr.f32.gmra.mrb[0].mxu0 %v2654
    %v2767 = vpop.f32.mrb[0].mxu0
    %v2768 = vadd.f32 0.0, %v2767
    %v2769 = vpop.f32.mrb[0].mxu0
    %2770 = vmatprep.mubr.f32.mxu0 0.0
    %2771 = vmatmul.mubr.f32.gmra.mrb[0].mxu0 %v2657
    %v2772 = vpop.f32.mrb[0].mxu0
    %v2773 = vadd.f32 0.0, %v2772
    %v2774 = vpop.f32.mrb[0].mxu0
    %2775 = vmatprep.mubr.f32.mxu0 0.0
    %2776 = vmatmul.mubr.f32.gmra.mrb[0].mxu0 %v2660
    %v2777 = vpop.f32.mrb[0].mxu0
    %v2778 = vadd.f32 0.0, %v2777
    %v2779 = vpop.f32.mrb[0].mxu0
    %2780 = vmatprep.mubr.f32.mxu0 0.0
    %2781 = vmatmul.mubr.f32.gmra.mrb[0].mxu0 %v2663
    %v2782 = vpop.f32.mrb[0].mxu0
    %v2783 = vadd.f32 0.0, %v2782
    %v2784 = vpop.f32.mrb[0].mxu0
    %2785 = vmatprep.mubr.f32.mxu0 0.0
    %2786 = vmatmul.mubr.f32.gmra.mrb[0].mxu0 %v2666
    %v2787 = vpop.f32.mrb[0].mxu0
    %v2788 = vadd.f32 0.0, %v2787
    %v2789 = vpop.f32.mrb[0].mxu0
    %2790 = vmatprep.mubr.f32.mxu0 0.0
    %2791 = vmatmul.mubr.f32.gmra.mrb[0].mxu0 %v2669
    %v2792 = vpop.f32.mrb[0].mxu0
    %v2793 = vadd.f32 0.0, %v2792
    %v2794 = vpop.f32.mrb[0].mxu0
    %2795 = vmatprep.mubr.f32.mxu0 0.0
    %2796 = vmatmul.mubr.f32.gmra.mrb[0].mxu0 %v2672
    %v2797 = vpop.f32.mrb[0].mxu0
    %v2798 = vadd.f32 0.0, %v2797
    %v2799 = vpop.f32.mrb[0].mxu0
    %2800 = vmatprep.mubr.f32.mxu0 0.0
    %2801 = vmatmul.mubr.f32.gmra.mrb[0].mxu0 %v2675
    %v2802 = vpop.f32.mrb[0].mxu0
    %v2803 = vadd.f32 0.0, %v2802
    %v2804 = vpop.f32.mrb[0].mxu0
    %2805 = vmatprep.mubr.f32.mxu0 0.0
    %2806 = vmatmul.mubr.f32.gmra.mrb[0].mxu0 %v2678
    %v2807 = vpop.f32.mrb[0].mxu0
    %v2808 = vadd.f32 0.0, %v2807
    %v2809 = vpop.f32.mrb[0].mxu0
    %2810 = vmatprep.mubr.f32.mxu0 0.0
    %2811 = vmatmul.mubr.f32.gmra.mrb[0].mxu0 %v2681
    %v2812 = vpop.f32.mrb[0].mxu0
    %v2813 = vadd.f32 0.0, %v2812
    %v2814 = vpop.f32.mrb[0].mxu0
    %2815 = vmatprep.mubr.f32.mxu0 0.0
    %2816 = vmatmul.mubr.f32.gmra.mrb[0].mxu0 %v2684
    %v2817 = vpop.f32.mrb[0].mxu0
    %v2818 = vadd.f32 0.0, %v2817
    %v2819 = vpop.f32.mrb[0].mxu0
    %2820 = vmatprep.mubr.f32.mxu0 0.0
    %2821 = vmatmul.mubr.f32.gmra.mrb[0].mxu0 %v2687
    %v2822 = vpop.f32.mrb[0].mxu0
    %v2823 = vadd.f32 0.0, %v2822
    %v2824 = vpop.f32.mrb[0].mxu0
    %2825 = vmatprep.mubr.f32.mxu0 0.0
    %2826 = vmatmul.mubr.f32.gmra.mrb[0].mxu0 %v2690
    %v2827 = vpop.f32.mrb[0].mxu0
    %v2828 = vadd.f32 0.0, %v2827
    %v2829 = vpop.f32.mrb[0].mxu0
    %2830 = vmatprep.mubr.f32.mxu0 0.0
    %2831 = vmatmul.mubr.f32.gmra.mrb[0].mxu0 %v2693
    %v2832 = vpop.f32.mrb[0].mxu0
    %v2833 = vadd.f32 0.0, %v2832
    %v2834 = vpop.f32.mrb[0].mxu0
    %2835 = vmatprep.mubr.f32.mxu0 0.0
    %2836 = vmatmul.mubr.f32.gmra.mrb[0].mxu0 %v2696
    %v2837 = vpop.f32.mrb[0].mxu0
    %v2838 = vadd.f32 0.0, %v2837
    %v2839 = vpop.f32.mrb[0].mxu0
    %2840 = vmatprep.mubr.f32.mxu0 0.0
    %2841 = vmatmul.mubr.f32.gmra.mrb[0].mxu0 %v2699
    %v2842 = vpop.f32.mrb[0].mxu0
    %v2843 = vadd.f32 0.0, %v2842
    %v2844 = vpop.f32.mrb[0].mxu0
    %2845 = vdwg.mxu0
    %v2846 = vmul.f32 %v2768, 0.35355338
    %v2847 = vmul.f32 %v2773, 0.35355338
    %v2848 = vmul.f32 %v2778, 0.35355338
    %v2849 = vmul.f32 %v2783, 0.35355338
    %v2850 = vmul.f32 %v2788, 0.35355338
    %v2851 = vmul.f32 %v2793, 0.35355338
    %v2852 = vmul.f32 %v2798, 0.35355338
    %v2853 = vmul.f32 %v2803, 0.35355338
    %v2854 = vmul.f32 %v2808, 0.35355338
    %v2855 = vmul.f32 %v2813, 0.35355338
    %v2856 = vmul.f32 %v2818, 0.35355338
    %v2857 = vmul.f32 %v2823, 0.35355338
    %v2858 = vmul.f32 %v2828, 0.35355338
    %v2859 = vmul.f32 %v2833, 0.35355338
    %v2860 = vmul.f32 %v2838, 0.35355338
    %v2861 = vmul.f32 %v2843, 0.35355338
    %v2862 = vmax.f32 %v2846, %v2850
    %v2863 = vmax.f32 %v2847, %v2851
    %v2864 = vmax.f32 %v2848, %v2852
    %v2865 = vmax.f32 %v2849, %v2853
    %v2866 = vmax.f32 %v2862, %v2854
    %v2867 = vmax.f32 %v2863, %v2855
    %v2868 = vmax.f32 %v2864, %v2856
    %v2869 = vmax.f32 %v2865, %v2857
    %v2870 = vmax.f32 %v2866, %v2858
    %v2871 = vmax.f32 %v2867, %v2859
    %v2872 = vmax.f32 %v2868, %v2860
    %v2873 = vmax.f32 %v2869, %v2861
    %v2874 = vmax.f32 %v2870, %v2871
    %v2875 = vmax.f32 %v2872, %v2873
    %v2876 = vmax.f32 %v2874, %v2875
    %v2877 = vrot.slane %v2876, 4
    %v2878 = vmax.f32 %v2876, %v2877
    %v2879 = vrot.slane %v2878, 2
    %v2880 = vmax.f32 %v2878, %v2879
    %v2881 = vrot.slane %v2880, 1
    %v2882 = vmax.f32 %v2880, %v2881
    %v2883 = vsub.f32 %v2846, %v2882
    %v2884 = vsub.f32 %v2847, %v2882
    %v2885 = vsub.f32 %v2848, %v2882
    %v2886 = vsub.f32 %v2849, %v2882
    %v2887 = vsub.f32 %v2850, %v2882
    %v2888 = vsub.f32 %v2851, %v2882
    %v2889 = vsub.f32 %v2852, %v2882
    %v2890 = vsub.f32 %v2853, %v2882
    %v2891 = vsub.f32 %v2854, %v2882
    %v2892 = vsub.f32 %v2855, %v2882
    %v2893 = vsub.f32 %v2856, %v2882
    %v2894 = vsub.f32 %v2857, %v2882
    %v2895 = vsub.f32 %v2858, %v2882
    %v2896 = vsub.f32 %v2859, %v2882
    %v2897 = vsub.f32 %v2860, %v2882
    %v2898 = vsub.f32 %v2861, %v2882
    %v2899 = vmul.f32 %v2883, 1.442695
    %v2900 = vpow.pop %v2899
    %v2901 = vmul.f32 %v2884, 1.442695
    %v2902 = vpow.pop %v2901
    %v2903 = vmul.f32 %v2885, 1.442695
    %v2904 = vpow.pop %v2903
    %v2905 = vmul.f32 %v2886, 1.442695
    %v2906 = vpow.pop %v2905
    %v2907 = vmul.f32 %v2887, 1.442695
    %v2908 = vpow.pop %v2907
    %v2909 = vmul.f32 %v2888, 1.442695
    %v2910 = vpow.pop %v2909
    %v2911 = vmul.f32 %v2889, 1.442695
    %v2912 = vpow.pop %v2911
    %v2913 = vmul.f32 %v2890, 1.442695
    %v2914 = vpow.pop %v2913
    %v2915 = vmul.f32 %v2891, 1.442695
    %v2916 = vpow.pop %v2915
    %v2917 = vmul.f32 %v2892, 1.442695
    %v2918 = vpow.pop %v2917
    %v2919 = vmul.f32 %v2893, 1.442695
    %v2920 = vpow.pop %v2919
    %v2921 = vmul.f32 %v2894, 1.442695
    %v2922 = vpow.pop %v2921
    %v2923 = vmul.f32 %v2895, 1.442695
    %v2924 = vpow.pop %v2923
    %v2925 = vmul.f32 %v2896, 1.442695
    %v2926 = vpow.pop %v2925
    %v2927 = vmul.f32 %v2897, 1.442695
    %v2928 = vpow.pop %v2927
    %v2929 = vmul.f32 %v2898, 1.442695
    %v2930 = vpow.pop %v2929
    %v2931 = vpack.c.bf16 %v2902, %v2900
    %v2932 = vpack.c.bf16 %v2906, %v2904
    %v2933 = vpack.c.bf16 %v2910, %v2908
    %v2934 = vpack.c.bf16 %v2914, %v2912
    %v2935 = vpack.c.bf16 %v2918, %v2916
    %v2936 = vpack.c.bf16 %v2922, %v2920
    %v2937 = vpack.c.bf16 %v2926, %v2924
    %v2938 = vpack.c.bf16 %v2930, %v2928
    %2939 = vmatprep.subr.bf16.mxu0 0
    %2940 = vmatpush1.bf16.msra.mxu0 %v2931
    %2941 = vmatprep.subr.bf16.mxu0 0
    %2942 = vmatpush1.bf16.msra.mxu0 %v2932
    %2943 = vmatprep.subr.bf16.mxu0 0
    %2944 = vmatpush1.bf16.msra.mxu0 %v2933
    %2945 = vmatprep.subr.bf16.mxu0 0
    %2946 = vmatpush1.bf16.msra.mxu0 %v2934
    %2947 = vmatprep.subr.bf16.mxu0 0
    %2948 = vmatpush1.bf16.msra.mxu0 %v2935
    %2949 = vmatprep.subr.bf16.mxu0 0
    %2950 = vmatpush1.bf16.msra.mxu0 %v2936
    %2951 = vmatprep.subr.bf16.mxu0 0
    %2952 = vmatpush1.bf16.msra.mxu0 %v2937
    %2953 = vmatprep.subr.bf16.mxu0 0
    %2954 = vmatpush1.bf16.msra.mxu0 %v2938
    %2955 = vmatprep.subr.bf16.mxu0 0
    %2956 = vmatpush1.bf16.msra.mxu0 0
    %2957 = vmatprep.subr.bf16.mxu0 0
    %2958 = vmatpush1.bf16.msra.mxu0 0
    %2959 = vmatprep.subr.bf16.mxu0 0
    %2960 = vmatpush1.bf16.msra.mxu0 0
    %2961 = vmatprep.subr.bf16.mxu0 0
    %2962 = vmatpush1.bf16.msra.mxu0 0
    %2963 = vmatprep.subr.bf16.mxu0 0
    %2964 = vmatpush1.bf16.msra.mxu0 0
    %2965 = vmatprep.subr.bf16.mxu0 0
    %2966 = vmatpush1.bf16.msra.mxu0 0
    %2967 = vmatprep.subr.bf16.mxu0 0
    %2968 = vmatpush1.bf16.msra.mxu0 0
    %2969 = vmatprep.subr.bf16.mxu0 0
    %2970 = vmatpush1.bf16.msra.mxu0 0
    %2971 = vmatprep.mubr.bf16.mxu0 0
    %2972 = vmatmul.mubr.bf16.gmra.mrb[0].mxu0 %v241
    %v2973 = vpop.f32.mrb[0].mxu0
    %v2974 = vadd.f32 0.0, %v2973
    %v2975 = vpop.f32.mrb[0].mxu0
    %v2976 = vpop.f32.mrb[0].mxu0
    %v2977 = vadd.f32 0.0, %v2976
    %v2978 = vpop.f32.mrb[0].mxu0
    %2979 = vmatprep.mubr.bf16.mxu0 0
    %2980 = vmatmul.mubr.bf16.gmra.mrb[0].mxu0 %v242
    %v2981 = vpop.f32.mrb[0].mxu0
    %v2982 = vadd.f32 0.0, %v2981
    %v2983 = vpop.f32.mrb[0].mxu0
    %v2984 = vpop.f32.mrb[0].mxu0
    %v2985 = vadd.f32 0.0, %v2984
    %v2986 = vpop.f32.mrb[0].mxu0
    %2987 = vmatprep.mubr.bf16.mxu0 0
    %2988 = vmatmul.mubr.bf16.gmra.mrb[0].mxu0 %v243
    %v2989 = vpop.f32.mrb[0].mxu0
    %v2990 = vadd.f32 0.0, %v2989
    %v2991 = vpop.f32.mrb[0].mxu0
    %v2992 = vpop.f32.mrb[0].mxu0
    %v2993 = vadd.f32 0.0, %v2992
    %v2994 = vpop.f32.mrb[0].mxu0
    %2995 = vmatprep.mubr.bf16.mxu0 0
    %2996 = vmatmul.mubr.bf16.gmra.mrb[0].mxu0 %v244
    %v2997 = vpop.f32.mrb[0].mxu0
    %v2998 = vadd.f32 0.0, %v2997
    %v2999 = vpop.f32.mrb[0].mxu0
    %v3000 = vpop.f32.mrb[0].mxu0
    %v3001 = vadd.f32 0.0, %v3000
    %v3002 = vpop.f32.mrb[0].mxu0
    %3003 = vmatprep.mubr.bf16.mxu0 0
    %3004 = vmatmul.mubr.bf16.gmra.mrb[0].mxu0 %v245
    %v3005 = vpop.f32.mrb[0].mxu0
    %v3006 = vadd.f32 0.0, %v3005
    %v3007 = vpop.f32.mrb[0].mxu0
    %v3008 = vpop.f32.mrb[0].mxu0
    %v3009 = vadd.f32 0.0, %v3008
    %v3010 = vpop.f32.mrb[0].mxu0
    %3011 = vmatprep.mubr.bf16.mxu0 0
    %3012 = vmatmul.mubr.bf16.gmra.mrb[0].mxu0 %v246
    %v3013 = vpop.f32.mrb[0].mxu0
    %v3014 = vadd.f32 0.0, %v3013
    %v3015 = vpop.f32.mrb[0].mxu0
    %v3016 = vpop.f32.mrb[0].mxu0
    %v3017 = vadd.f32 0.0, %v3016
    %v3018 = vpop.f32.mrb[0].mxu0
    %3019 = vmatprep.mubr.bf16.mxu0 0
    %3020 = vmatmul.mubr.bf16.gmra.mrb[0].mxu0 %v247
    %v3021 = vpop.f32.mrb[0].mxu0
    %v3022 = vadd.f32 0.0, %v3021
    %v3023 = vpop.f32.mrb[0].mxu0
    %v3024 = vpop.f32.mrb[0].mxu0
    %v3025 = vadd.f32 0.0, %v3024
    %v3026 = vpop.f32.mrb[0].mxu0
    %3027 = vmatprep.mubr.bf16.mxu0 0
    %3028 = vmatmul.mubr.bf16.gmra.mrb[0].mxu0 %v248
    %v3029 = vpop.f32.mrb[0].mxu0
    %v3030 = vadd.f32 0.0, %v3029
    %v3031 = vpop.f32.mrb[0].mxu0
    %v3032 = vpop.f32.mrb[0].mxu0
    %v3033 = vadd.f32 0.0, %v3032
    %v3034 = vpop.f32.mrb[0].mxu0
    %3035 = vdwg.mxu0
    %v3036 = vmax.f32 %v2974, 1e-09
    %v3037 = vmax.f32 %v2977, 1e-09
    %v3038 = vmax.f32 %v2982, 1e-09
    %v3039 = vmax.f32 %v2985, 1e-09
    %v3040 = vmax.f32 %v2990, 1e-09
    %v3041 = vmax.f32 %v2993, 1e-09
    %v3042 = vmax.f32 %v2998, 1e-09
    %v3043 = vmax.f32 %v3001, 1e-09
    %v3044 = vmax.f32 %v3006, 1e-09
    %v3045 = vmax.f32 %v3009, 1e-09
    %v3046 = vmax.f32 %v3014, 1e-09
    %v3047 = vmax.f32 %v3017, 1e-09
    %v3048 = vmax.f32 %v3022, 1e-09
    %v3049 = vmax.f32 %v3025, 1e-09
    %v3050 = vmax.f32 %v3030, 1e-09
    %v3051 = vmax.f32 %v3033, 1e-09
    %v3052 = vrcp.pop %v3036
    %v3053 = vrcp.pop %v3037
    %v3054 = vrcp.pop %v3038
    %v3055 = vrcp.pop %v3039
    %v3056 = vrcp.pop %v3040
    %v3057 = vrcp.pop %v3041
    %v3058 = vrcp.pop %v3042
    %v3059 = vrcp.pop %v3043
    %v3060 = vrcp.pop %v3044
    %v3061 = vrcp.pop %v3045
    %v3062 = vrcp.pop %v3046
    %v3063 = vrcp.pop %v3047
    %v3064 = vrcp.pop %v3048
    %v3065 = vrcp.pop %v3049
    %v3066 = vrcp.pop %v3050
    %v3067 = vrcp.pop %v3051
    %v3068 = vpack.c.bf16 %v3053, %v3052
    %v3069 = vpack.c.bf16 %v3055, %v3054
    %v3070 = vpack.c.bf16 %v3057, %v3056
    %v3071 = vpack.c.bf16 %v3059, %v3058
    %v3072 = vpack.c.bf16 %v3061, %v3060
    %v3073 = vpack.c.bf16 %v3063, %v3062
    %v3074 = vpack.c.bf16 %v3065, %v3064
    %v3075 = vpack.c.bf16 %v3067, %v3066
    %3076 = vmatprep.subr.bf16.mxu0 0
    %3077 = vmatpush1.bf16.msra.mxu0 %v3068
    %3078 = vmatprep.subr.bf16.mxu0 0
    %3079 = vmatpush1.bf16.msra.mxu0 %v3069
    %3080 = vmatprep.subr.bf16.mxu0 0
    %3081 = vmatpush1.bf16.msra.mxu0 %v3070
    %3082 = vmatprep.subr.bf16.mxu0 0
    %3083 = vmatpush1.bf16.msra.mxu0 %v3071
    %3084 = vmatprep.subr.bf16.mxu0 0
    %3085 = vmatpush1.bf16.msra.mxu0 %v3072
    %3086 = vmatprep.subr.bf16.mxu0 0
    %3087 = vmatpush1.bf16.msra.mxu0 %v3073
    %3088 = vmatprep.subr.bf16.mxu0 0
    %3089 = vmatpush1.bf16.msra.mxu0 %v3074
    %3090 = vmatprep.subr.bf16.mxu0 0
    %3091 = vmatpush1.bf16.msra.mxu0 %v3075
    %3092 = vmatprep.subr.bf16.mxu0 0
    %3093 = vmatpush1.bf16.msra.mxu0 0
    %3094 = vmatprep.subr.bf16.mxu0 0
    %3095 = vmatpush1.bf16.msra.mxu0 0
    %3096 = vmatprep.subr.bf16.mxu0 0
    %3097 = vmatpush1.bf16.msra.mxu0 0
    %3098 = vmatprep.subr.bf16.mxu0 0
    %3099 = vmatpush1.bf16.msra.mxu0 0
    %3100 = vmatprep.subr.bf16.mxu0 0
    %3101 = vmatpush1.bf16.msra.mxu0 0
    %3102 = vmatprep.subr.bf16.mxu0 0
    %3103 = vmatpush1.bf16.msra.mxu0 0
    %3104 = vmatprep.subr.bf16.mxu0 0
    %3105 = vmatpush1.bf16.msra.mxu0 0
    %3106 = vmatprep.subr.bf16.mxu0 0
    %3107 = vmatpush1.bf16.msra.mxu0 0
    %3108 = vmatprep.mubr.bf16.mxu0 0
    %3109 = vmatmul.mubr.bf16.gmra.mrb[0].mxu0 %v741
    %v3110 = vpop.f32.mrb[0].mxu0
    %v3111 = vadd.f32 0.0, %v3110
    %v3112 = vpop.f32.mrb[0].mxu0
    %v3113 = vpop.f32.mrb[0].mxu0
    %v3114 = vadd.f32 0.0, %v3113
    %v3115 = vpop.f32.mrb[0].mxu0
    %3116 = vmatprep.mubr.bf16.mxu0 0
    %3117 = vmatmul.mubr.bf16.gmra.mrb[0].mxu0 %v742
    %v3118 = vpop.f32.mrb[0].mxu0
    %v3119 = vadd.f32 0.0, %v3118
    %v3120 = vpop.f32.mrb[0].mxu0
    %v3121 = vpop.f32.mrb[0].mxu0
    %v3122 = vadd.f32 0.0, %v3121
    %v3123 = vpop.f32.mrb[0].mxu0
    %3124 = vmatprep.mubr.bf16.mxu0 0
    %3125 = vmatmul.mubr.bf16.gmra.mrb[0].mxu0 %v743
    %v3126 = vpop.f32.mrb[0].mxu0
    %v3127 = vadd.f32 0.0, %v3126
    %v3128 = vpop.f32.mrb[0].mxu0
    %v3129 = vpop.f32.mrb[0].mxu0
    %v3130 = vadd.f32 0.0, %v3129
    %v3131 = vpop.f32.mrb[0].mxu0
    %3132 = vmatprep.mubr.bf16.mxu0 0
    %3133 = vmatmul.mubr.bf16.gmra.mrb[0].mxu0 %v744
    %v3134 = vpop.f32.mrb[0].mxu0
    %v3135 = vadd.f32 0.0, %v3134
    %v3136 = vpop.f32.mrb[0].mxu0
    %v3137 = vpop.f32.mrb[0].mxu0
    %v3138 = vadd.f32 0.0, %v3137
    %v3139 = vpop.f32.mrb[0].mxu0
    %3140 = vmatprep.mubr.bf16.mxu0 0
    %3141 = vmatmul.mubr.bf16.gmra.mrb[0].mxu0 %v745
    %v3142 = vpop.f32.mrb[0].mxu0
    %v3143 = vadd.f32 0.0, %v3142
    %v3144 = vpop.f32.mrb[0].mxu0
    %v3145 = vpop.f32.mrb[0].mxu0
    %v3146 = vadd.f32 0.0, %v3145
    %v3147 = vpop.f32.mrb[0].mxu0
    %3148 = vmatprep.mubr.bf16.mxu0 0
    %3149 = vmatmul.mubr.bf16.gmra.mrb[0].mxu0 %v746
    %v3150 = vpop.f32.mrb[0].mxu0
    %v3151 = vadd.f32 0.0, %v3150
    %v3152 = vpop.f32.mrb[0].mxu0
    %v3153 = vpop.f32.mrb[0].mxu0
    %v3154 = vadd.f32 0.0, %v3153
    %v3155 = vpop.f32.mrb[0].mxu0
    %3156 = vmatprep.mubr.bf16.mxu0 0
    %3157 = vmatmul.mubr.bf16.gmra.mrb[0].mxu0 %v747
    %v3158 = vpop.f32.mrb[0].mxu0
    %v3159 = vadd.f32 0.0, %v3158
    %v3160 = vpop.f32.mrb[0].mxu0
    %v3161 = vpop.f32.mrb[0].mxu0
    %v3162 = vadd.f32 0.0, %v3161
    %v3163 = vpop.f32.mrb[0].mxu0
    %3164 = vmatprep.mubr.bf16.mxu0 0
    %3165 = vmatmul.mubr.bf16.gmra.mrb[0].mxu0 %v748
    %v3166 = vpop.f32.mrb[0].mxu0
    %v3167 = vadd.f32 0.0, %v3166
    %v3168 = vpop.f32.mrb[0].mxu0
    %v3169 = vpop.f32.mrb[0].mxu0
    %v3170 = vadd.f32 0.0, %v3169
    %v3171 = vpop.f32.mrb[0].mxu0
    %3172 = vdwg.mxu0
    %v3173 = vmul.f32 %v2900, %v3111
    %v3174 = vmul.f32 %v2902, %v3114
    %v3175 = vmul.f32 %v2904, %v3119
    %v3176 = vmul.f32 %v2906, %v3122
    %v3177 = vmul.f32 %v2908, %v3127
    %v3178 = vmul.f32 %v2910, %v3130
    %v3179 = vmul.f32 %v2912, %v3135
    %v3180 = vmul.f32 %v2914, %v3138
    %v3181 = vmul.f32 %v2916, %v3143
    %v3182 = vmul.f32 %v2918, %v3146
    %v3183 = vmul.f32 %v2920, %v3151
    %v3184 = vmul.f32 %v2922, %v3154
    %v3185 = vmul.f32 %v2924, %v3159
    %v3186 = vmul.f32 %v2926, %v3162
    %v3187 = vmul.f32 %v2928, %v3167
    %v3188 = vmul.f32 %v2930, %v3170
    %3189 = vst [vmem:[#allocation6] sm:$0xff] %v3173
    %3190 = vst [vmem:[#allocation6 + $0x8] sm:$0xff] %v3174
    %3191 = vst [vmem:[#allocation6 + $0x10] sm:$0xff] %v3175
    %3192 = vst [vmem:[#allocation6 + $0x18] sm:$0xff] %v3176
    %3193 = vst [vmem:[#allocation6 + $0x20] sm:$0xff] %v3177
    %3194 = vst [vmem:[#allocation6 + $0x28] sm:$0xff] %v3178
    %3195 = vst [vmem:[#allocation6 + $0x30] sm:$0xff] %v3179
    %3196 = vst [vmem:[#allocation6 + $0x38] sm:$0xff] %v3180
    %3197 = vst [vmem:[#allocation6 + $0x40] sm:$0xff] %v3181
    %3198 = vst [vmem:[#allocation6 + $0x48] sm:$0xff] %v3182
    %3199 = vst [vmem:[#allocation6 + $0x50] sm:$0xff] %v3183
    %3200 = vst [vmem:[#allocation6 + $0x58] sm:$0xff] %v3184
    %3201 = vst [vmem:[#allocation6 + $0x60] sm:$0xff] %v3185
    %3202 = vst [vmem:[#allocation6 + $0x68] sm:$0xff] %v3186
    %3203 = vst [vmem:[#allocation6 + $0x70] sm:$0xff] %v3187
    %3204 = vst [vmem:[#allocation6 + $0x78] sm:$0xff] %v3188
    %v3205 = vld [vmem:[%s29] sm:$0xff]
    %v3206 = vld [vmem:[%s29 + $0x8] sm:$0xff]
    %v3207 = vld [vmem:[%s29 + $0x10] sm:$0xff]
    %v3208 = vld [vmem:[%s29 + $0x18] sm:$0xff]
    %v3209 = vld [vmem:[%s29 + $0x20] sm:$0xff]
    %v3210 = vld [vmem:[%s29 + $0x28] sm:$0xff]
    %v3211 = vld [vmem:[%s29 + $0x30] sm:$0xff]
    %v3212 = vld [vmem:[%s29 + $0x38] sm:$0xff]
    %v3213 = vld [vmem:[%s29 + $0x40] sm:$0xff]
    %v3214 = vld [vmem:[%s29 + $0x48] sm:$0xff]
    %v3215 = vld [vmem:[%s29 + $0x50] sm:$0xff]
    %v3216 = vld [vmem:[%s29 + $0x58] sm:$0xff]
    %v3217 = vld [vmem:[%s29 + $0x60] sm:$0xff]
    %v3218 = vld [vmem:[%s29 + $0x68] sm:$0xff]
    %v3219 = vld [vmem:[%s29 + $0x70] sm:$0xff]
    %v3220 = vld [vmem:[%s29 + $0x78] sm:$0xff]
    %3221 = vmatprep.subr.mxu0 0.0
    %3222 = vmatpush1.msra.mxu0 %v3205
    %3223 = vmatprep.subr.mxu0 0.0
    %3224 = vmatpush1.msra.mxu0 %v3206
    %3225 = vmatprep.subr.mxu0 0.0
    %3226 = vmatpush1.msra.mxu0 %v3207
    %3227 = vmatprep.subr.mxu0 0.0
    %3228 = vmatpush1.msra.mxu0 %v3208
    %3229 = vmatprep.subr.mxu0 0.0
    %3230 = vmatpush1.msra.mxu0 %v3209
    %3231 = vmatprep.subr.mxu0 0.0
    %3232 = vmatpush1.msra.mxu0 %v3210
    %3233 = vmatprep.subr.mxu0 0.0
    %3234 = vmatpush1.msra.mxu0 %v3211
    %3235 = vmatprep.subr.mxu0 0.0
    %3236 = vmatpush1.msra.mxu0 %v3212
    %3237 = vmatprep.subr.mxu0 0.0
    %3238 = vmatpush1.msra.mxu0 %v3213
    %3239 = vmatprep.subr.mxu0 0.0
    %3240 = vmatpush1.msra.mxu0 %v3214
    %3241 = vmatprep.subr.mxu0 0.0
    %3242 = vmatpush1.msra.mxu0 %v3215
    %3243 = vmatprep.subr.mxu0 0.0
    %3244 = vmatpush1.msra.mxu0 %v3216
    %3245 = vmatprep.subr.mxu0 0.0
    %3246 = vmatpush1.msra.mxu0 %v3217
    %3247 = vmatprep.subr.mxu0 0.0
    %3248 = vmatpush1.msra.mxu0 %v3218
    %3249 = vmatprep.subr.mxu0 0.0
    %3250 = vmatpush1.msra.mxu0 %v3219
    %3251 = vmatprep.subr.mxu0 0.0
    %3252 = vmatpush1.msra.mxu0 %v3220
    %3253 = vmatprep.subr.mxu0 0.0
    %3254 = vmatpush1.msra.mxu0 0.0
    %3255 = vmatprep.subr.mxu0 0.0
    %3256 = vmatpush1.msra.mxu0 0.0
    %3257 = vmatprep.subr.mxu0 0.0
    %3258 = vmatpush1.msra.mxu0 0.0
    %3259 = vmatprep.subr.mxu0 0.0
    %3260 = vmatpush1.msra.mxu0 0.0
    %3261 = vmatprep.subr.mxu0 0.0
    %3262 = vmatpush1.msra.mxu0 0.0
    %3263 = vmatprep.subr.mxu0 0.0
    %3264 = vmatpush1.msra.mxu0 0.0
    %3265 = vmatprep.subr.mxu0 0.0
    %3266 = vmatpush1.msra.mxu0 0.0
    %3267 = vmatprep.subr.mxu0 0.0
    %3268 = vmatpush1.msra.mxu0 0.0
    %3269 = vmatprep.subr.mxu0 0.0
    %3270 = vmatpush1.msra.mxu0 0.0
    %3271 = vmatprep.subr.mxu0 0.0
    %3272 = vmatpush1.msra.mxu0 0.0
    %3273 = vmatprep.subr.mxu0 0.0
    %3274 = vmatpush1.msra.mxu0 0.0
    %3275 = vmatprep.subr.mxu0 0.0
    %3276 = vmatpush1.msra.mxu0 0.0
    %3277 = vmatprep.subr.mxu0 0.0
    %3278 = vmatpush1.msra.mxu0 0.0
    %3279 = vmatprep.subr.mxu0 0.0
    %3280 = vmatpush1.msra.mxu0 0.0
    %3281 = vmatprep.subr.mxu0 0.0
    %3282 = vmatpush1.msra.mxu0 0.0
    %3283 = vmatprep.subr.mxu0 0.0
    %3284 = vmatpush1.msra.mxu0 0.0
    %3285 = vmatprep.mubr.f32.mxu0 0.0
    %3286 = vmatmul.mubr.f32.gmra.mrb[0].mxu0 %v3173
    %v3287 = vpop.f32.mrb[0].mxu0
    %v3288 = vadd.f32 0.0, %v3287
    %v3289 = vpop.f32.mrb[0].mxu0
    %3290 = vmatprep.mubr.f32.mxu0 0.0
    %3291 = vmatmul.mubr.f32.gmra.mrb[0].mxu0 %v3174
    %v3292 = vpop.f32.mrb[0].mxu0
    %v3293 = vadd.f32 0.0, %v3292
    %v3294 = vpop.f32.mrb[0].mxu0
    %3295 = vmatprep.mubr.f32.mxu0 0.0
    %3296 = vmatmul.mubr.f32.gmra.mrb[0].mxu0 %v3175
    %v3297 = vpop.f32.mrb[0].mxu0
    %v3298 = vadd.f32 0.0, %v3297
    %v3299 = vpop.f32.mrb[0].mxu0
    %3300 = vmatprep.mubr.f32.mxu0 0.0
    %3301 = vmatmul.mubr.f32.gmra.mrb[0].mxu0 %v3176
    %v3302 = vpop.f32.mrb[0].mxu0
    %v3303 = vadd.f32 0.0, %v3302
    %v3304 = vpop.f32.mrb[0].mxu0
    %3305 = vmatprep.mubr.f32.mxu0 0.0
    %3306 = vmatmul.mubr.f32.gmra.mrb[0].mxu0 %v3177
    %v3307 = vpop.f32.mrb[0].mxu0
    %v3308 = vadd.f32 0.0, %v3307
    %v3309 = vpop.f32.mrb[0].mxu0
    %3310 = vmatprep.mubr.f32.mxu0 0.0
    %3311 = vmatmul.mubr.f32.gmra.mrb[0].mxu0 %v3178
    %v3312 = vpop.f32.mrb[0].mxu0
    %v3313 = vadd.f32 0.0, %v3312
    %v3314 = vpop.f32.mrb[0].mxu0
    %3315 = vmatprep.mubr.f32.mxu0 0.0
    %3316 = vmatmul.mubr.f32.gmra.mrb[0].mxu0 %v3179
    %v3317 = vpop.f32.mrb[0].mxu0
    %v3318 = vadd.f32 0.0, %v3317
    %v3319 = vpop.f32.mrb[0].mxu0
    %3320 = vmatprep.mubr.f32.mxu0 0.0
    %3321 = vmatmul.mubr.f32.gmra.mrb[0].mxu0 %v3180
    %v3322 = vpop.f32.mrb[0].mxu0
    %v3323 = vadd.f32 0.0, %v3322
    %v3324 = vpop.f32.mrb[0].mxu0
    %3325 = vmatprep.mubr.f32.mxu0 0.0
    %3326 = vmatmul.mubr.f32.gmra.mrb[0].mxu0 %v3181
    %v3327 = vpop.f32.mrb[0].mxu0
    %v3328 = vadd.f32 0.0, %v3327
    %v3329 = vpop.f32.mrb[0].mxu0
    %3330 = vmatprep.mubr.f32.mxu0 0.0
    %3331 = vmatmul.mubr.f32.gmra.mrb[0].mxu0 %v3182
    %v3332 = vpop.f32.mrb[0].mxu0
    %v3333 = vadd.f32 0.0, %v3332
    %v3334 = vpop.f32.mrb[0].mxu0
    %3335 = vmatprep.mubr.f32.mxu0 0.0
    %3336 = vmatmul.mubr.f32.gmra.mrb[0].mxu0 %v3183
    %v3337 = vpop.f32.mrb[0].mxu0
    %v3338 = vadd.f32 0.0, %v3337
    %v3339 = vpop.f32.mrb[0].mxu0
    %3340 = vmatprep.mubr.f32.mxu0 0.0
    %3341 = vmatmul.mubr.f32.gmra.mrb[0].mxu0 %v3184
    %v3342 = vpop.f32.mrb[0].mxu0
    %v3343 = vadd.f32 0.0, %v3342
    %v3344 = vpop.f32.mrb[0].mxu0
    %3345 = vmatprep.mubr.f32.mxu0 0.0
    %3346 = vmatmul.mubr.f32.gmra.mrb[0].mxu0 %v3185
    %v3347 = vpop.f32.mrb[0].mxu0
    %v3348 = vadd.f32 0.0, %v3347
    %v3349 = vpop.f32.mrb[0].mxu0
    %3350 = vmatprep.mubr.f32.mxu0 0.0
    %3351 = vmatmul.mubr.f32.gmra.mrb[0].mxu0 %v3186
    %v3352 = vpop.f32.mrb[0].mxu0
    %v3353 = vadd.f32 0.0, %v3352
    %v3354 = vpop.f32.mrb[0].mxu0
    %3355 = vmatprep.mubr.f32.mxu0 0.0
    %3356 = vmatmul.mubr.f32.gmra.mrb[0].mxu0 %v3187
    %v3357 = vpop.f32.mrb[0].mxu0
    %v3358 = vadd.f32 0.0, %v3357
    %v3359 = vpop.f32.mrb[0].mxu0
    %3360 = vmatprep.mubr.f32.mxu0 0.0
    %3361 = vmatmul.mubr.f32.gmra.mrb[0].mxu0 %v3188
    %v3362 = vpop.f32.mrb[0].mxu0
    %v3363 = vadd.f32 0.0, %v3362
    %v3364 = vpop.f32.mrb[0].mxu0
    %3365 = vdwg.mxu0
    %3382 = vrot.lane.b32.xlu0 %v3288, 32
    %v3383 = vpop.permute.xlu0 %3382
    %3384 = vrot.lane.b32.xlu0 %v3293, 32
    %v3385 = vpop.permute.xlu0 %3384
    %3386 = vrot.lane.b32.xlu0 %v3298, 32
    %v3387 = vpop.permute.xlu0 %3386
    %3388 = vrot.lane.b32.xlu0 %v3303, 32
    %v3389 = vpop.permute.xlu0 %3388
    %3390 = vrot.lane.b32.xlu0 %v3308, 32
    %v3391 = vpop.permute.xlu0 %3390
    %3392 = vrot.lane.b32.xlu0 %v3313, 32
    %v3393 = vpop.permute.xlu0 %3392
    %3394 = vrot.lane.b32.xlu0 %v3318, 32
    %v3395 = vpop.permute.xlu0 %3394
    %3396 = vrot.lane.b32.xlu0 %v3323, 32
    %v3397 = vpop.permute.xlu0 %3396
    %3398 = vrot.lane.b32.xlu0 %v3328, 32
    %v3399 = vpop.permute.xlu0 %3398
    %3400 = vrot.lane.b32.xlu0 %v3333, 32
    %v3401 = vpop.permute.xlu0 %3400
    %3402 = vrot.lane.b32.xlu0 %v3338, 32
    %v3403 = vpop.permute.xlu0 %3402
    %3404 = vrot.lane.b32.xlu0 %v3343, 32
    %v3405 = vpop.permute.xlu0 %3404
    %3406 = vrot.lane.b32.xlu0 %v3348, 32
    %v3407 = vpop.permute.xlu0 %3406
    %3408 = vrot.lane.b32.xlu0 %v3353, 32
    %v3409 = vpop.permute.xlu0 %3408
    %3410 = vrot.lane.b32.xlu0 %v3358, 32
    %v3411 = vpop.permute.xlu0 %3410
    %3412 = vrot.lane.b32.xlu0 %v3363, 32
    %v3413 = vpop.permute.xlu0 %3412
    %v3430 = vmul.f32 %v2442, %v3383
    %v3431 = vmul.f32 %v2445, %v3385
    %v3432 = vmul.f32 %v2450, %v3387
    %v3433 = vmul.f32 %v2453, %v3389
    %v3434 = vmul.f32 %v2458, %v3391
    %v3435 = vmul.f32 %v2461, %v3393
    %v3436 = vmul.f32 %v2466, %v3395
    %v3437 = vmul.f32 %v2469, %v3397
    %v3438 = vmul.f32 %v2474, %v3399
    %v3439 = vmul.f32 %v2477, %v3401
    %v3440 = vmul.f32 %v2482, %v3403
    %v3441 = vmul.f32 %v2485, %v3405
    %v3442 = vmul.f32 %v2490, %v3407
    %v3443 = vmul.f32 %v2493, %v3409
    %v3444 = vmul.f32 %v2498, %v3411
    %v3445 = vmul.f32 %v2501, %v3413
    %v3446 = vpack.c.bf16 %v3431, %v3430
    %v3447 = vpack.c.bf16 %v3433, %v3432
    %v3448 = vpack.c.bf16 %v3435, %v3434
    %v3449 = vpack.c.bf16 %v3437, %v3436
    %v3450 = vpack.c.bf16 %v3439, %v3438
    %v3451 = vpack.c.bf16 %v3441, %v3440
    %v3452 = vpack.c.bf16 %v3443, %v3442
    %v3453 = vpack.c.bf16 %v3445, %v3444
    %3462 = vrot.lane.b32.xlu0 %v3446, 96
    %v3463 = vpop.permute.xlu0 %3462
    %3464 = vrot.lane.b32.xlu0 %v3447, 96
    %v3465 = vpop.permute.xlu0 %3464
    %3466 = vrot.lane.b32.xlu0 %v3448, 96
    %v3467 = vpop.permute.xlu0 %3466
    %3468 = vrot.lane.b32.xlu0 %v3449, 96
    %v3469 = vpop.permute.xlu0 %3468
    %3470 = vrot.lane.b32.xlu0 %v3450, 96
    %v3471 = vpop.permute.xlu0 %3470
    %3472 = vrot.lane.b32.xlu0 %v3451, 96
    %v3473 = vpop.permute.xlu0 %3472
    %3474 = vrot.lane.b32.xlu0 %v3452, 96
    %v3475 = vpop.permute.xlu0 %3474
    %3476 = vrot.lane.b32.xlu0 %v3453, 96
    %v3477 = vpop.permute.xlu0 %3476
    %3502 = vrot.lane.b32.xlu0 %v2298, 32
    %v3503 = vpop.permute.xlu0 %3502
    %3504 = vrot.lane.b32.xlu0 %v2303, 32
    %v3505 = vpop.permute.xlu0 %3504
    %3506 = vrot.lane.b32.xlu0 %v2308, 32
    %v3507 = vpop.permute.xlu0 %3506
    %3508 = vrot.lane.b32.xlu0 %v2313, 32
    %v3509 = vpop.permute.xlu0 %3508
    %3510 = vrot.lane.b32.xlu0 %v2318, 32
    %v3511 = vpop.permute.xlu0 %3510
    %3512 = vrot.lane.b32.xlu0 %v2323, 32
    %v3513 = vpop.permute.xlu0 %3512
    %3514 = vrot.lane.b32.xlu0 %v2328, 32
    %v3515 = vpop.permute.xlu0 %3514
    %3516 = vrot.lane.b32.xlu0 %v2333, 32
    %v3517 = vpop.permute.xlu0 %3516
    %3518 = vrot.lane.b32.xlu0 %v2338, 32
    %v3519 = vpop.permute.xlu0 %3518
    %3520 = vrot.lane.b32.xlu0 %v2343, 32
    %v3521 = vpop.permute.xlu0 %3520
    %3522 = vrot.lane.b32.xlu0 %v2348, 32
    %v3523 = vpop.permute.xlu0 %3522
    %3524 = vrot.lane.b32.xlu0 %v2353, 32
    %v3525 = vpop.permute.xlu0 %3524
    %3526 = vrot.lane.b32.xlu0 %v2358, 32
    %v3527 = vpop.permute.xlu0 %3526
    %3528 = vrot.lane.b32.xlu0 %v2363, 32
    %v3529 = vpop.permute.xlu0 %3528
    %3530 = vrot.lane.b32.xlu0 %v2368, 32
    %v3531 = vpop.permute.xlu0 %3530
    %3532 = vrot.lane.b32.xlu0 %v2373, 32
    %v3533 = vpop.permute.xlu0 %3532
    %3550 = vmatprep.subr.bf16.mxu0 0
    %3551 = vmatpush1.bf16.msra.mxu0 %v3463
    %3552 = vmatprep.subr.bf16.mxu0 0
    %3553 = vmatpush1.bf16.msra.mxu0 %v3465
    %3554 = vmatprep.subr.bf16.mxu0 0
    %3555 = vmatpush1.bf16.msra.mxu0 %v3467
    %3556 = vmatprep.subr.bf16.mxu0 0
    %3557 = vmatpush1.bf16.msra.mxu0 %v3469
    %3558 = vmatprep.subr.bf16.mxu0 0
    %3559 = vmatpush1.bf16.msra.mxu0 %v3471
    %3560 = vmatprep.subr.bf16.mxu0 0
    %3561 = vmatpush1.bf16.msra.mxu0 %v3473
    %3562 = vmatprep.subr.bf16.mxu0 0
    %3563 = vmatpush1.bf16.msra.mxu0 %v3475
    %3564 = vmatprep.subr.bf16.mxu0 0
    %3565 = vmatpush1.bf16.msra.mxu0 %v3477
    %3566 = vmatprep.subr.bf16.mxu0 0
    %3567 = vmatpush1.bf16.msra.mxu0 0
    %3568 = vmatprep.subr.bf16.mxu0 0
    %3569 = vmatpush1.bf16.msra.mxu0 0
    %3570 = vmatprep.subr.bf16.mxu0 0
    %3571 = vmatpush1.bf16.msra.mxu0 0
    %3572 = vmatprep.subr.bf16.mxu0 0
    %3573 = vmatpush1.bf16.msra.mxu0 0
    %3574 = vmatprep.subr.bf16.mxu0 0
    %3575 = vmatpush1.bf16.msra.mxu0 0
    %3576 = vmatprep.subr.bf16.mxu0 0
    %3577 = vmatpush1.bf16.msra.mxu0 0
    %3578 = vmatprep.subr.bf16.mxu0 0
    %3579 = vmatpush1.bf16.msra.mxu0 0
    %3580 = vmatprep.subr.bf16.mxu0 0
    %3581 = vmatpush1.bf16.msra.mxu0 0
    %3582 = vmatprep.mubr.bf16.mxu0 0
    %3583 = vmatmul.mubr.bf16.gmra.mrb[0].mxu0 %v241
    %v3584 = vpop.f32.mrb[0].mxu0
    %v3585 = vadd.f32 %v3503, %v3584
    %v3586 = vpop.f32.mrb[0].mxu0
    %v3587 = vpop.f32.mrb[0].mxu0
    %v3588 = vadd.f32 %v3505, %v3587
    %v3589 = vpop.f32.mrb[0].mxu0
    %3590 = vmatprep.mubr.bf16.mxu0 0
    %3591 = vmatmul.mubr.bf16.gmra.mrb[0].mxu0 %v242
    %v3592 = vpop.f32.mrb[0].mxu0
    %v3593 = vadd.f32 %v3507, %v3592
    %v3594 = vpop.f32.mrb[0].mxu0
    %v3595 = vpop.f32.mrb[0].mxu0
    %v3596 = vadd.f32 %v3509, %v3595
    %v3597 = vpop.f32.mrb[0].mxu0
    %3598 = vmatprep.mubr.bf16.mxu0 0
    %3599 = vmatmul.mubr.bf16.gmra.mrb[0].mxu0 %v243
    %v3600 = vpop.f32.mrb[0].mxu0
    %v3601 = vadd.f32 %v3511, %v3600
    %v3602 = vpop.f32.mrb[0].mxu0
    %v3603 = vpop.f32.mrb[0].mxu0
    %v3604 = vadd.f32 %v3513, %v3603
    %v3605 = vpop.f32.mrb[0].mxu0
    %3606 = vmatprep.mubr.bf16.mxu0 0
    %3607 = vmatmul.mubr.bf16.gmra.mrb[0].mxu0 %v244
    %v3608 = vpop.f32.mrb[0].mxu0
    %v3609 = vadd.f32 %v3515, %v3608
    %v3610 = vpop.f32.mrb[0].mxu0
    %v3611 = vpop.f32.mrb[0].mxu0
    %v3612 = vadd.f32 %v3517, %v3611
    %v3613 = vpop.f32.mrb[0].mxu0
    %3614 = vmatprep.mubr.bf16.mxu0 0
    %3615 = vmatmul.mubr.bf16.gmra.mrb[0].mxu0 %v245
    %v3616 = vpop.f32.mrb[0].mxu0
    %v3617 = vadd.f32 %v3519, %v3616
    %v3618 = vpop.f32.mrb[0].mxu0
    %v3619 = vpop.f32.mrb[0].mxu0
    %v3620 = vadd.f32 %v3521, %v3619
    %v3621 = vpop.f32.mrb[0].mxu0
    %3622 = vmatprep.mubr.bf16.mxu0 0
    %3623 = vmatmul.mubr.bf16.gmra.mrb[0].mxu0 %v246
    %v3624 = vpop.f32.mrb[0].mxu0
    %v3625 = vadd.f32 %v3523, %v3624
    %v3626 = vpop.f32.mrb[0].mxu0
    %v3627 = vpop.f32.mrb[0].mxu0
    %v3628 = vadd.f32 %v3525, %v3627
    %v3629 = vpop.f32.mrb[0].mxu0
    %3630 = vmatprep.mubr.bf16.mxu0 0
    %3631 = vmatmul.mubr.bf16.gmra.mrb[0].mxu0 %v247
    %v3632 = vpop.f32.mrb[0].mxu0
    %v3633 = vadd.f32 %v3527, %v3632
    %v3634 = vpop.f32.mrb[0].mxu0
    %v3635 = vpop.f32.mrb[0].mxu0
    %v3636 = vadd.f32 %v3529, %v3635
    %v3637 = vpop.f32.mrb[0].mxu0
    %3638 = vmatprep.mubr.bf16.mxu0 0
    %3639 = vmatmul.mubr.bf16.gmra.mrb[0].mxu0 %v248
    %v3640 = vpop.f32.mrb[0].mxu0
    %v3641 = vadd.f32 %v3531, %v3640
    %v3642 = vpop.f32.mrb[0].mxu0
    %v3643 = vpop.f32.mrb[0].mxu0
    %v3644 = vadd.f32 %v3533, %v3643
    %v3645 = vpop.f32.mrb[0].mxu0
    %3646 = vdwg.mxu0
    %v3647 = vsel %vm906, %v3585, 0.0
    %3648 = vadd.xlane.f32.xlu0 %v3647
    %v3649 = vpop.xlane.xlu0 %3648
    %v3650 = vsel %vm906, %v3588, 0.0
    %3651 = vadd.xlane.f32.xlu0 %v3650
    %v3652 = vpop.xlane.xlu0 %3651
    %v3653 = vsel %vm906, %v3593, 0.0
    %3654 = vadd.xlane.f32.xlu0 %v3653
    %v3655 = vpop.xlane.xlu0 %3654
    %v3656 = vsel %vm906, %v3596, 0.0
    %3657 = vadd.xlane.f32.xlu0 %v3656
    %v3658 = vpop.xlane.xlu0 %3657
    %v3659 = vsel %vm906, %v3601, 0.0
    %3660 = vadd.xlane.f32.xlu0 %v3659
    %v3661 = vpop.xlane.xlu0 %3660
    %v3662 = vsel %vm906, %v3604, 0.0
    %3663 = vadd.xlane.f32.xlu0 %v3662
    %v3664 = vpop.xlane.xlu0 %3663
    %v3665 = vsel %vm906, %v3609, 0.0
    %3666 = vadd.xlane.f32.xlu0 %v3665
    %v3667 = vpop.xlane.xlu0 %3666
    %v3668 = vsel %vm906, %v3612, 0.0
    %3669 = vadd.xlane.f32.xlu0 %v3668
    %v3670 = vpop.xlane.xlu0 %3669
    %v3671 = vsel %vm906, %v3617, 0.0
    %3672 = vadd.xlane.f32.xlu0 %v3671
    %v3673 = vpop.xlane.xlu0 %3672
    %v3674 = vsel %vm906, %v3620, 0.0
    %3675 = vadd.xlane.f32.xlu0 %v3674
    %v3676 = vpop.xlane.xlu0 %3675
    %v3677 = vsel %vm906, %v3625, 0.0
    %3678 = vadd.xlane.f32.xlu0 %v3677
    %v3679 = vpop.xlane.xlu0 %3678
    %v3680 = vsel %vm906, %v3628, 0.0
    %3681 = vadd.xlane.f32.xlu0 %v3680
    %v3682 = vpop.xlane.xlu0 %3681
    %v3683 = vsel %vm906, %v3633, 0.0
    %3684 = vadd.xlane.f32.xlu0 %v3683
    %v3685 = vpop.xlane.xlu0 %3684
    %v3686 = vsel %vm906, %v3636, 0.0
    %3687 = vadd.xlane.f32.xlu0 %v3686
    %v3688 = vpop.xlane.xlu0 %3687
    %v3689 = vsel %vm906, %v3641, 0.0
    %3690 = vadd.xlane.f32.xlu0 %v3689
    %v3691 = vpop.xlane.xlu0 %3690
    %v3692 = vsel %vm906, %v3644, 0.0
    %3693 = vadd.xlane.f32.xlu0 %v3692
    %v3694 = vpop.xlane.xlu0 %3693
    %v3695 = vmul.f32 %v3649, %v1949
    %v3696 = vmul.f32 %v3652, %v1949
    %v3697 = vmul.f32 %v3655, %v1949
    %v3698 = vmul.f32 %v3658, %v1949
    %v3699 = vmul.f32 %v3661, %v1949
    %v3700 = vmul.f32 %v3664, %v1949
    %v3701 = vmul.f32 %v3667, %v1949
    %v3702 = vmul.f32 %v3670, %v1949
    %v3703 = vmul.f32 %v3673, %v1949
    %v3704 = vmul.f32 %v3676, %v1949
    %v3705 = vmul.f32 %v3679, %v1949
    %v3706 = vmul.f32 %v3682, %v1949
    %v3707 = vmul.f32 %v3685, %v1949
    %v3708 = vmul.f32 %v3688, %v1949
    %v3709 = vmul.f32 %v3691, %v1949
    %v3710 = vmul.f32 %v3694, %v1949
    %v3711 = vsub.f32 %v3585, %v3695
    %v3712 = vsub.f32 %v3588, %v3696
    %v3713 = vsub.f32 %v3593, %v3697
    %v3714 = vsub.f32 %v3596, %v3698
    %v3715 = vsub.f32 %v3601, %v3699
    %v3716 = vsub.f32 %v3604, %v3700
    %v3717 = vsub.f32 %v3609, %v3701
    %v3718 = vsub.f32 %v3612, %v3702
    %v3719 = vsub.f32 %v3617, %v3703
    %v3720 = vsub.f32 %v3620, %v3704
    %v3721 = vsub.f32 %v3625, %v3705
    %v3722 = vsub.f32 %v3628, %v3706
    %v3723 = vsub.f32 %v3633, %v3707
    %v3724 = vsub.f32 %v3636, %v3708
    %v3725 = vsub.f32 %v3641, %v3709
    %v3726 = vsub.f32 %v3644, %v3710
    %v3727 = vmul.f32 %v3711, %v3711
    %v3728 = vmul.f32 %v3712, %v3712
    %v3729 = vmul.f32 %v3713, %v3713
    %v3730 = vmul.f32 %v3714, %v3714
    %v3731 = vmul.f32 %v3715, %v3715
    %v3732 = vmul.f32 %v3716, %v3716
    %v3733 = vmul.f32 %v3717, %v3717
    %v3734 = vmul.f32 %v3718, %v3718
    %v3735 = vmul.f32 %v3719, %v3719
    %v3736 = vmul.f32 %v3720, %v3720
    %v3737 = vmul.f32 %v3721, %v3721
    %v3738 = vmul.f32 %v3722, %v3722
    %v3739 = vmul.f32 %v3723, %v3723
    %v3740 = vmul.f32 %v3724, %v3724
    %v3741 = vmul.f32 %v3725, %v3725
    %v3742 = vmul.f32 %v3726, %v3726
    %v3743 = vsel %vm906, %v3727, 0.0
    %3744 = vadd.xlane.f32.xlu0 %v3743
    %v3745 = vpop.xlane.xlu0 %3744
    %v3746 = vsel %vm906, %v3728, 0.0
    %3747 = vadd.xlane.f32.xlu0 %v3746
    %v3748 = vpop.xlane.xlu0 %3747
    %v3749 = vsel %vm906, %v3729, 0.0
    %3750 = vadd.xlane.f32.xlu0 %v3749
    %v3751 = vpop.xlane.xlu0 %3750
    %v3752 = vsel %vm906, %v3730, 0.0
    %3753 = vadd.xlane.f32.xlu0 %v3752
    %v3754 = vpop.xlane.xlu0 %3753
    %v3755 = vsel %vm906, %v3731, 0.0
    %3756 = vadd.xlane.f32.xlu0 %v3755
    %v3757 = vpop.xlane.xlu0 %3756
    %v3758 = vsel %vm906, %v3732, 0.0
    %3759 = vadd.xlane.f32.xlu0 %v3758
    %v3760 = vpop.xlane.xlu0 %3759
    %v3761 = vsel %vm906, %v3733, 0.0
    %3762 = vadd.xlane.f32.xlu0 %v3761
    %v3763 = vpop.xlane.xlu0 %3762
    %v3764 = vsel %vm906, %v3734, 0.0
    %3765 = vadd.xlane.f32.xlu0 %v3764
    %v3766 = vpop.xlane.xlu0 %3765
    %v3767 = vsel %vm906, %v3735, 0.0
    %3768 = vadd.xlane.f32.xlu0 %v3767
    %v3769 = vpop.xlane.xlu0 %3768
    %v3770 = vsel %vm906, %v3736, 0.0
    %3771 = vadd.xlane.f32.xlu0 %v3770
    %v3772 = vpop.xlane.xlu0 %3771
    %v3773 = vsel %vm906, %v3737, 0.0
    %3774 = vadd.xlane.f32.xlu0 %v3773
    %v3775 = vpop.xlane.xlu0 %3774
    %v3776 = vsel %vm906, %v3738, 0.0
    %3777 = vadd.xlane.f32.xlu0 %v3776
    %v3778 = vpop.xlane.xlu0 %3777
    %v3779 = vsel %vm906, %v3739, 0.0
    %3780 = vadd.xlane.f32.xlu0 %v3779
    %v3781 = vpop.xlane.xlu0 %3780
    %v3782 = vsel %vm906, %v3740, 0.0
    %3783 = vadd.xlane.f32.xlu0 %v3782
    %v3784 = vpop.xlane.xlu0 %3783
    %v3785 = vsel %vm906, %v3741, 0.0
    %3786 = vadd.xlane.f32.xlu0 %v3785
    %v3787 = vpop.xlane.xlu0 %3786
    %v3788 = vsel %vm906, %v3742, 0.0
    %3789 = vadd.xlane.f32.xlu0 %v3788
    %v3790 = vpop.xlane.xlu0 %3789
    %v3791 = vmul.f32 %v3745, %v1949
    %v3792 = vmul.f32 %v3748, %v1949
    %v3793 = vmul.f32 %v3751, %v1949
    %v3794 = vmul.f32 %v3754, %v1949
    %v3795 = vmul.f32 %v3757, %v1949
    %v3796 = vmul.f32 %v3760, %v1949
    %v3797 = vmul.f32 %v3763, %v1949
    %v3798 = vmul.f32 %v3766, %v1949
    %v3799 = vmul.f32 %v3769, %v1949
    %v3800 = vmul.f32 %v3772, %v1949
    %v3801 = vmul.f32 %v3775, %v1949
    %v3802 = vmul.f32 %v3778, %v1949
    %v3803 = vmul.f32 %v3781, %v1949
    %v3804 = vmul.f32 %v3784, %v1949
    %v3805 = vmul.f32 %v3787, %v1949
    %v3806 = vmul.f32 %v3790, %v1949
    %v3807 = vadd.f32 %v3791, 1e-05
    %v3808 = vadd.f32 %v3792, 1e-05
    %v3809 = vadd.f32 %v3793, 1e-05
    %v3810 = vadd.f32 %v3794, 1e-05
    %v3811 = vadd.f32 %v3795, 1e-05
    %v3812 = vadd.f32 %v3796, 1e-05
    %v3813 = vadd.f32 %v3797, 1e-05
    %v3814 = vadd.f32 %v3798, 1e-05
    %v3815 = vadd.f32 %v3799, 1e-05
    %v3816 = vadd.f32 %v3800, 1e-05
    %v3817 = vadd.f32 %v3801, 1e-05
    %v3818 = vadd.f32 %v3802, 1e-05
    %v3819 = vadd.f32 %v3803, 1e-05
    %v3820 = vadd.f32 %v3804, 1e-05
    %v3821 = vadd.f32 %v3805, 1e-05
    %v3822 = vadd.f32 %v3806, 1e-05
    %v3823 = vrsqrt.pop %v3807
    %v3824 = vrsqrt.pop %v3808
    %v3825 = vrsqrt.pop %v3809
    %v3826 = vrsqrt.pop %v3810
    %v3827 = vrsqrt.pop %v3811
    %v3828 = vrsqrt.pop %v3812
    %v3829 = vrsqrt.pop %v3813
    %v3830 = vrsqrt.pop %v3814
    %v3831 = vrsqrt.pop %v3815
    %v3832 = vrsqrt.pop %v3816
    %v3833 = vrsqrt.pop %v3817
    %v3834 = vrsqrt.pop %v3818
    %v3835 = vrsqrt.pop %v3819
    %v3836 = vrsqrt.pop %v3820
    %v3837 = vrsqrt.pop %v3821
    %v3838 = vrsqrt.pop %v3822
    %v3839 = vmul.f32 %v3711, %v3823
    %v3840 = vmul.f32 %v3712, %v3824
    %v3841 = vmul.f32 %v3713, %v3825
    %v3842 = vmul.f32 %v3714, %v3826
    %v3843 = vmul.f32 %v3715, %v3827
    %v3844 = vmul.f32 %v3716, %v3828
    %v3845 = vmul.f32 %v3717, %v3829
    %v3846 = vmul.f32 %v3718, %v3830
    %v3847 = vmul.f32 %v3719, %v3831
    %v3848 = vmul.f32 %v3720, %v3832
    %v3849 = vmul.f32 %v3721, %v3833
    %v3850 = vmul.f32 %v3722, %v3834
    %v3851 = vmul.f32 %v3723, %v3835
    %v3852 = vmul.f32 %v3724, %v3836
    %v3853 = vmul.f32 %v3725, %v3837
    %v3854 = vmul.f32 %v3726, %v3838
    %v3855 = vld [vmem:[%s45] sm:$0x1]
    %v3857 = vlaneseq
    %v3858 = vshrl.u32 %v3857, 7
    %v3859 = vsub.s32 0, %v3858
    %v3860 = vrot.slane %v3855, %v3859
    %v3862 = vmul.f32 %v3839, %v3860
    %v3863 = vmul.f32 %v3840, %v3860
    %v3864 = vmul.f32 %v3841, %v3860
    %v3865 = vmul.f32 %v3842, %v3860
    %v3866 = vmul.f32 %v3843, %v3860
    %v3867 = vmul.f32 %v3844, %v3860
    %v3868 = vmul.f32 %v3845, %v3860
    %v3869 = vmul.f32 %v3846, %v3860
    %v3870 = vmul.f32 %v3847, %v3860
    %v3871 = vmul.f32 %v3848, %v3860
    %v3872 = vmul.f32 %v3849, %v3860
    %v3873 = vmul.f32 %v3850, %v3860
    %v3874 = vmul.f32 %v3851, %v3860
    %v3875 = vmul.f32 %v3852, %v3860
    %v3876 = vmul.f32 %v3853, %v3860
    %v3877 = vmul.f32 %v3854, %v3860
    %v3878 = vld [vmem:[%s47] sm:$0x1]
    %v3880 = vlaneseq
    %v3881 = vshrl.u32 %v3880, 7
    %v3882 = vsub.s32 0, %v3881
    %v3883 = vrot.slane %v3878, %v3882
    %v3885 = vadd.f32 %v3862, %v3883
    %v3886 = vadd.f32 %v3863, %v3883
    %v3887 = vadd.f32 %v3864, %v3883
    %v3888 = vadd.f32 %v3865, %v3883
    %v3889 = vadd.f32 %v3866, %v3883
    %v3890 = vadd.f32 %v3867, %v3883
    %v3891 = vadd.f32 %v3868, %v3883
    %v3892 = vadd.f32 %v3869, %v3883
    %v3893 = vadd.f32 %v3870, %v3883
    %v3894 = vadd.f32 %v3871, %v3883
    %v3895 = vadd.f32 %v3872, %v3883
    %v3896 = vadd.f32 %v3873, %v3883
    %v3897 = vadd.f32 %v3874, %v3883
    %v3898 = vadd.f32 %v3875, %v3883
    %v3899 = vadd.f32 %v3876, %v3883
    %v3900 = vadd.f32 %v3877, %v3883
    %v3901 = vmax.f32 %v3885, 0.0
    %v3902 = vmax.f32 %v3886, 0.0
    %v3903 = vmax.f32 %v3887, 0.0
    %v3904 = vmax.f32 %v3888, 0.0
    %v3905 = vmax.f32 %v3889, 0.0
    %v3906 = vmax.f32 %v3890, 0.0
    %v3907 = vmax.f32 %v3891, 0.0
    %v3908 = vmax.f32 %v3892, 0.0
    %v3909 = vmax.f32 %v3893, 0.0
    %v3910 = vmax.f32 %v3894, 0.0
    %v3911 = vmax.f32 %v3895, 0.0
    %v3912 = vmax.f32 %v3896, 0.0
    %v3913 = vmax.f32 %v3897, 0.0
    %v3914 = vmax.f32 %v3898, 0.0
    %v3915 = vmax.f32 %v3899, 0.0
    %v3916 = vmax.f32 %v3900, 0.0
    %v3917 = vld [vmem:[%s31] sm:$0xff]
    %v3918 = vld [vmem:[%s31 + $0x8] sm:$0xff]
    %v3919 = vld [vmem:[%s31 + $0x10] sm:$0xff]
    %v3920 = vld [vmem:[%s31 + $0x18] sm:$0xff]
    %v3921 = vld [vmem:[%s33] sm:$0x1]
    %v3923 = vlaneseq
    %v3924 = vshrl.u32 %v3923, 7
    %v3925 = vsub.s32 0, %v3924
    %v3926 = vrot.slane %v3921, %v3925
    %v3929 = vsel %vm906, %v3901, 0
    %v3932 = vsel %vm906, %v3902, 0
    %v3935 = vsel %vm906, %v3903, 0
    %v3938 = vsel %vm906, %v3904, 0
    %v3941 = vsel %vm906, %v3905, 0
    %v3944 = vsel %vm906, %v3906, 0
    %v3947 = vsel %vm906, %v3907, 0
    %v3950 = vsel %vm906, %v3908, 0
    %v3953 = vsel %vm906, %v3909, 0
    %v3956 = vsel %vm906, %v3910, 0
    %v3959 = vsel %vm906, %v3911, 0
    %v3962 = vsel %vm906, %v3912, 0
    %v3965 = vsel %vm906, %v3913, 0
    %v3968 = vsel %vm906, %v3914, 0
    %v3971 = vsel %vm906, %v3915, 0
    %v3974 = vsel %vm906, %v3916, 0
    %3976 = vmatprep.subr.mxu0 0.0
    %3977 = vmatpush1.msra.mxu0 %v3917
    %3978 = vmatprep.subr.mxu0 0.0
    %3979 = vmatpush1.msra.mxu0 %v3918
    %3980 = vmatprep.subr.mxu0 0.0
    %3981 = vmatpush1.msra.mxu0 %v3919
    %3982 = vmatprep.subr.mxu0 0.0
    %3983 = vmatpush1.msra.mxu0 %v3920
    %3984 = vmatprep.subr.mxu0 0.0
    %3985 = vmatpush1.msra.mxu0 0.0
    %3986 = vmatprep.subr.mxu0 0.0
    %3987 = vmatpush1.msra.mxu0 0.0
    %3988 = vmatprep.subr.mxu0 0.0
    %3989 = vmatpush1.msra.mxu0 0.0
    %3990 = vmatprep.subr.mxu0 0.0
    %3991 = vmatpush1.msra.mxu0 0.0
    %3992 = vmatprep.subr.mxu0 0.0
    %3993 = vmatpush1.msra.mxu0 0.0
    %3994 = vmatprep.subr.mxu0 0.0
    %3995 = vmatpush1.msra.mxu0 0.0
    %3996 = vmatprep.subr.mxu0 0.0
    %3997 = vmatpush1.msra.mxu0 0.0
    %3998 = vmatprep.subr.mxu0 0.0
    %3999 = vmatpush1.msra.mxu0 0.0
    %4000 = vmatprep.subr.mxu0 0.0
    %4001 = vmatpush1.msra.mxu0 0.0
    %4002 = vmatprep.subr.mxu0 0.0
    %4003 = vmatpush1.msra.mxu0 0.0
    %4004 = vmatprep.subr.mxu0 0.0
    %4005 = vmatpush1.msra.mxu0 0.0
    %4006 = vmatprep.subr.mxu0 0.0
    %4007 = vmatpush1.msra.mxu0 0.0
    %4008 = vmatprep.subr.mxu0 0.0
    %4009 = vmatpush1.msra.mxu0 0.0
    %4010 = vmatprep.subr.mxu0 0.0
    %4011 = vmatpush1.msra.mxu0 0.0
    %4012 = vmatprep.subr.mxu0 0.0
    %4013 = vmatpush1.msra.mxu0 0.0
    %4014 = vmatprep.subr.mxu0 0.0
    %4015 = vmatpush1.msra.mxu0 0.0
    %4016 = vmatprep.subr.mxu0 0.0
    %4017 = vmatpush1.msra.mxu0 0.0
    %4018 = vmatprep.subr.mxu0 0.0
    %4019 = vmatpush1.msra.mxu0 0.0
    %4020 = vmatprep.subr.mxu0 0.0
    %4021 = vmatpush1.msra.mxu0 0.0
    %4022 = vmatprep.subr.mxu0 0.0
    %4023 = vmatpush1.msra.mxu0 0.0
    %4024 = vmatprep.subr.mxu0 0.0
    %4025 = vmatpush1.msra.mxu0 0.0
    %4026 = vmatprep.subr.mxu0 0.0
    %4027 = vmatpush1.msra.mxu0 0.0
    %4028 = vmatprep.subr.mxu0 0.0
    %4029 = vmatpush1.msra.mxu0 0.0
    %4030 = vmatprep.subr.mxu0 0.0
    %4031 = vmatpush1.msra.mxu0 0.0
    %4032 = vmatprep.subr.mxu0 0.0
    %4033 = vmatpush1.msra.mxu0 0.0
    %4034 = vmatprep.subr.mxu0 0.0
    %4035 = vmatpush1.msra.mxu0 0.0
    %4036 = vmatprep.subr.mxu0 0.0
    %4037 = vmatpush1.msra.mxu0 0.0
    %4038 = vmatprep.subr.mxu0 0.0
    %4039 = vmatpush1.msra.mxu0 0.0
    %4040 = vmatprep.mubr.f32.mxu0 0.0
    %4041 = vmatmul.mubr.f32.gmra.mrb[0].mxu0 %v3929
    %v4042 = vpop.f32.mrb[0].mxu0
    %v4043 = vadd.f32 %v3926, %v4042
    %v4044 = vpop.f32.mrb[0].mxu0
    %4045 = vmatprep.mubr.f32.mxu0 0.0
    %4046 = vmatmul.mubr.f32.gmra.mrb[0].mxu0 %v3932
    %v4047 = vpop.f32.mrb[0].mxu0
    %v4048 = vadd.f32 %v3926, %v4047
    %v4049 = vpop.f32.mrb[0].mxu0
    %4050 = vmatprep.mubr.f32.mxu0 0.0
    %4051 = vmatmul.mubr.f32.gmra.mrb[0].mxu0 %v3935
    %v4052 = vpop.f32.mrb[0].mxu0
    %v4053 = vadd.f32 %v3926, %v4052
    %v4054 = vpop.f32.mrb[0].mxu0
    %4055 = vmatprep.mubr.f32.mxu0 0.0
    %4056 = vmatmul.mubr.f32.gmra.mrb[0].mxu0 %v3938
    %v4057 = vpop.f32.mrb[0].mxu0
    %v4058 = vadd.f32 %v3926, %v4057
    %v4059 = vpop.f32.mrb[0].mxu0
    %4060 = vmatprep.mubr.f32.mxu0 0.0
    %4061 = vmatmul.mubr.f32.gmra.mrb[0].mxu0 %v3941
    %v4062 = vpop.f32.mrb[0].mxu0
    %v4063 = vadd.f32 %v3926, %v4062
    %v4064 = vpop.f32.mrb[0].mxu0
    %4065 = vmatprep.mubr.f32.mxu0 0.0
    %4066 = vmatmul.mubr.f32.gmra.mrb[0].mxu0 %v3944
    %v4067 = vpop.f32.mrb[0].mxu0
    %v4068 = vadd.f32 %v3926, %v4067
    %v4069 = vpop.f32.mrb[0].mxu0
    %4070 = vmatprep.mubr.f32.mxu0 0.0
    %4071 = vmatmul.mubr.f32.gmra.mrb[0].mxu0 %v3947
    %v4072 = vpop.f32.mrb[0].mxu0
    %v4073 = vadd.f32 %v3926, %v4072
    %v4074 = vpop.f32.mrb[0].mxu0
    %4075 = vmatprep.mubr.f32.mxu0 0.0
    %4076 = vmatmul.mubr.f32.gmra.mrb[0].mxu0 %v3950
    %v4077 = vpop.f32.mrb[0].mxu0
    %v4078 = vadd.f32 %v3926, %v4077
    %v4079 = vpop.f32.mrb[0].mxu0
    %4080 = vmatprep.mubr.f32.mxu0 0.0
    %4081 = vmatmul.mubr.f32.gmra.mrb[0].mxu0 %v3953
    %v4082 = vpop.f32.mrb[0].mxu0
    %v4083 = vadd.f32 %v3926, %v4082
    %v4084 = vpop.f32.mrb[0].mxu0
    %4085 = vmatprep.mubr.f32.mxu0 0.0
    %4086 = vmatmul.mubr.f32.gmra.mrb[0].mxu0 %v3956
    %v4087 = vpop.f32.mrb[0].mxu0
    %v4088 = vadd.f32 %v3926, %v4087
    %v4089 = vpop.f32.mrb[0].mxu0
    %4090 = vmatprep.mubr.f32.mxu0 0.0
    %4091 = vmatmul.mubr.f32.gmra.mrb[0].mxu0 %v3959
    %v4092 = vpop.f32.mrb[0].mxu0
    %v4093 = vadd.f32 %v3926, %v4092
    %v4094 = vpop.f32.mrb[0].mxu0
    %4095 = vmatprep.mubr.f32.mxu0 0.0
    %4096 = vmatmul.mubr.f32.gmra.mrb[0].mxu0 %v3962
    %v4097 = vpop.f32.mrb[0].mxu0
    %v4098 = vadd.f32 %v3926, %v4097
    %v4099 = vpop.f32.mrb[0].mxu0
    %4100 = vmatprep.mubr.f32.mxu0 0.0
    %4101 = vmatmul.mubr.f32.gmra.mrb[0].mxu0 %v3965
    %v4102 = vpop.f32.mrb[0].mxu0
    %v4103 = vadd.f32 %v3926, %v4102
    %v4104 = vpop.f32.mrb[0].mxu0
    %4105 = vmatprep.mubr.f32.mxu0 0.0
    %4106 = vmatmul.mubr.f32.gmra.mrb[0].mxu0 %v3968
    %v4107 = vpop.f32.mrb[0].mxu0
    %v4108 = vadd.f32 %v3926, %v4107
    %v4109 = vpop.f32.mrb[0].mxu0
    %4110 = vmatprep.mubr.f32.mxu0 0.0
    %4111 = vmatmul.mubr.f32.gmra.mrb[0].mxu0 %v3971
    %v4112 = vpop.f32.mrb[0].mxu0
    %v4113 = vadd.f32 %v3926, %v4112
    %v4114 = vpop.f32.mrb[0].mxu0
    %4115 = vmatprep.mubr.f32.mxu0 0.0
    %4116 = vmatmul.mubr.f32.gmra.mrb[0].mxu0 %v3974
    %v4117 = vpop.f32.mrb[0].mxu0
    %v4118 = vadd.f32 %v3926, %v4117
    %v4119 = vpop.f32.mrb[0].mxu0
    %4120 = vdwg.mxu0
    %v4121 = vld [vmem:[%s35] sm:$0x1]
    %v4123 = vlaneseq
    %v4124 = vshrl.u32 %v4123, 7
    %v4125 = vsub.s32 0, %v4124
    %v4126 = vrot.slane %v4121, %v4125
    %v4128 = vmul.f32 %v457, %v4126
    %v4129 = vmul.f32 %v462, %v4126
    %v4130 = vmul.f32 %v467, %v4126
    %v4131 = vmul.f32 %v472, %v4126
    %v4132 = vmul.f32 %v477, %v4126
    %v4133 = vmul.f32 %v482, %v4126
    %v4134 = vmul.f32 %v487, %v4126
    %v4135 = vmul.f32 %v492, %v4126
    %v4136 = vmul.f32 %v497, %v4126
    %v4137 = vmul.f32 %v502, %v4126
    %v4138 = vmul.f32 %v507, %v4126
    %v4139 = vmul.f32 %v512, %v4126
    %v4140 = vmul.f32 %v517, %v4126
    %v4141 = vmul.f32 %v522, %v4126
    %v4142 = vmul.f32 %v527, %v4126
    %v4143 = vmul.f32 %v532, %v4126
    %v4144 = vpack.c.bf16 %v4048, %v4043
    %v4145 = vpack.c.bf16 %v4058, %v4053
    %v4146 = vpack.c.bf16 %v4068, %v4063
    %v4147 = vpack.c.bf16 %v4078, %v4073
    %v4148 = vpack.c.bf16 %v4088, %v4083
    %v4149 = vpack.c.bf16 %v4098, %v4093
    %v4150 = vpack.c.bf16 %v4108, %v4103
    %v4151 = vpack.c.bf16 %v4118, %v4113
    %4152 = vmatprep.subr.bf16.mxu0 0
    %4153 = vmatpush1.bf16.msra.mxu0 %v4144
    %4154 = vmatprep.subr.bf16.mxu0 0
    %4155 = vmatpush1.bf16.msra.mxu0 %v4145
    %4156 = vmatprep.subr.bf16.mxu0 0
    %4157 = vmatpush1.bf16.msra.mxu0 %v4146
    %4158 = vmatprep.subr.bf16.mxu0 0
    %4159 = vmatpush1.bf16.msra.mxu0 %v4147
    %4160 = vmatprep.subr.bf16.mxu0 0
    %4161 = vmatpush1.bf16.msra.mxu0 %v4148
    %4162 = vmatprep.subr.bf16.mxu0 0
    %4163 = vmatpush1.bf16.msra.mxu0 %v4149
    %4164 = vmatprep.subr.bf16.mxu0 0
    %4165 = vmatpush1.bf16.msra.mxu0 %v4150
    %4166 = vmatprep.subr.bf16.mxu0 0
    %4167 = vmatpush1.bf16.msra.mxu0 %v4151
    %4168 = vmatprep.subr.bf16.mxu0 0
    %4169 = vmatpush1.bf16.msra.mxu0 0
    %4170 = vmatprep.subr.bf16.mxu0 0
    %4171 = vmatpush1.bf16.msra.mxu0 0
    %4172 = vmatprep.subr.bf16.mxu0 0
    %4173 = vmatpush1.bf16.msra.mxu0 0
    %4174 = vmatprep.subr.bf16.mxu0 0
    %4175 = vmatpush1.bf16.msra.mxu0 0
    %4176 = vmatprep.subr.bf16.mxu0 0
    %4177 = vmatpush1.bf16.msra.mxu0 0
    %4178 = vmatprep.subr.bf16.mxu0 0
    %4179 = vmatpush1.bf16.msra.mxu0 0
    %4180 = vmatprep.subr.bf16.mxu0 0
    %4181 = vmatpush1.bf16.msra.mxu0 0
    %4182 = vmatprep.subr.bf16.mxu0 0
    %4183 = vmatpush1.bf16.msra.mxu0 0
    %4184 = vmatprep.mubr.bf16.mxu0 0
    %4185 = vmatmul.mubr.bf16.gmra.mrb[0].mxu0 %v596
    %v4186 = vpop.f32.mrb[0].mxu0
    %v4187 = vadd.f32 %v4128, %v4186
    %v4188 = vpop.f32.mrb[0].mxu0
    %v4189 = vpop.f32.mrb[0].mxu0
    %v4190 = vadd.f32 %v4129, %v4189
    %v4191 = vpop.f32.mrb[0].mxu0
    %4192 = vmatprep.mubr.bf16.mxu0 0
    %4193 = vmatmul.mubr.bf16.gmra.mrb[0].mxu0 %v597
    %v4194 = vpop.f32.mrb[0].mxu0
    %v4195 = vadd.f32 %v4130, %v4194
    %v4196 = vpop.f32.mrb[0].mxu0
    %v4197 = vpop.f32.mrb[0].mxu0
    %v4198 = vadd.f32 %v4131, %v4197
    %v4199 = vpop.f32.mrb[0].mxu0
    %4200 = vmatprep.mubr.bf16.mxu0 0
    %4201 = vmatmul.mubr.bf16.gmra.mrb[0].mxu0 %v598
    %v4202 = vpop.f32.mrb[0].mxu0
    %v4203 = vadd.f32 %v4132, %v4202
    %v4204 = vpop.f32.mrb[0].mxu0
    %v4205 = vpop.f32.mrb[0].mxu0
    %v4206 = vadd.f32 %v4133, %v4205
    %v4207 = vpop.f32.mrb[0].mxu0
    %4208 = vmatprep.mubr.bf16.mxu0 0
    %4209 = vmatmul.mubr.bf16.gmra.mrb[0].mxu0 %v599
    %v4210 = vpop.f32.mrb[0].mxu0
    %v4211 = vadd.f32 %v4134, %v4210
    %v4212 = vpop.f32.mrb[0].mxu0
    %v4213 = vpop.f32.mrb[0].mxu0
    %v4214 = vadd.f32 %v4135, %v4213
    %v4215 = vpop.f32.mrb[0].mxu0
    %4216 = vmatprep.mubr.bf16.mxu0 0
    %4217 = vmatmul.mubr.bf16.gmra.mrb[0].mxu0 %v600
    %v4218 = vpop.f32.mrb[0].mxu0
    %v4219 = vadd.f32 %v4136, %v4218
    %v4220 = vpop.f32.mrb[0].mxu0
    %v4221 = vpop.f32.mrb[0].mxu0
    %v4222 = vadd.f32 %v4137, %v4221
    %v4223 = vpop.f32.mrb[0].mxu0
    %4224 = vmatprep.mubr.bf16.mxu0 0
    %4225 = vmatmul.mubr.bf16.gmra.mrb[0].mxu0 %v601
    %v4226 = vpop.f32.mrb[0].mxu0
    %v4227 = vadd.f32 %v4138, %v4226
    %v4228 = vpop.f32.mrb[0].mxu0
    %v4229 = vpop.f32.mrb[0].mxu0
    %v4230 = vadd.f32 %v4139, %v4229
    %v4231 = vpop.f32.mrb[0].mxu0
    %4232 = vmatprep.mubr.bf16.mxu0 0
    %4233 = vmatmul.mubr.bf16.gmra.mrb[0].mxu0 %v602
    %v4234 = vpop.f32.mrb[0].mxu0
    %v4235 = vadd.f32 %v4140, %v4234
    %v4236 = vpop.f32.mrb[0].mxu0
    %v4237 = vpop.f32.mrb[0].mxu0
    %v4238 = vadd.f32 %v4141, %v4237
    %v4239 = vpop.f32.mrb[0].mxu0
    %4240 = vmatprep.mubr.bf16.mxu0 0
    %4241 = vmatmul.mubr.bf16.gmra.mrb[0].mxu0 %v603
    %v4242 = vpop.f32.mrb[0].mxu0
    %v4243 = vadd.f32 %v4142, %v4242
    %v4244 = vpop.f32.mrb[0].mxu0
    %v4245 = vpop.f32.mrb[0].mxu0
    %v4246 = vadd.f32 %v4143, %v4245
    %v4247 = vpop.f32.mrb[0].mxu0
    %4248 = vdwg.mxu0
    %4257 = vrot.lane.b32.xlu0 %v4144, 80
    %v4258 = vpop.permute.xlu0 %4257
    %4259 = vrot.lane.b32.xlu0 %v4145, 80
    %v4260 = vpop.permute.xlu0 %4259
    %4261 = vrot.lane.b32.xlu0 %v4146, 80
    %v4262 = vpop.permute.xlu0 %4261
    %4263 = vrot.lane.b32.xlu0 %v4147, 80
    %v4264 = vpop.permute.xlu0 %4263
    %4265 = vrot.lane.b32.xlu0 %v4148, 80
    %v4266 = vpop.permute.xlu0 %4265
    %4267 = vrot.lane.b32.xlu0 %v4149, 80
    %v4268 = vpop.permute.xlu0 %4267
    %4269 = vrot.lane.b32.xlu0 %v4150, 80
    %v4270 = vpop.permute.xlu0 %4269
    %4271 = vrot.lane.b32.xlu0 %v4151, 80
    %v4272 = vpop.permute.xlu0 %4271
    %4281 = vmatprep.subr.bf16.mxu0 0
    %4282 = vmatpush1.bf16.msra.mxu0 %v4258
    %4283 = vmatprep.subr.bf16.mxu0 0
    %4284 = vmatpush1.bf16.msra.mxu0 %v4260
    %4285 = vmatprep.subr.bf16.mxu0 0
    %4286 = vmatpush1.bf16.msra.mxu0 %v4262
    %4287 = vmatprep.subr.bf16.mxu0 0
    %4288 = vmatpush1.bf16.msra.mxu0 %v4264
    %4289 = vmatprep.subr.bf16.mxu0 0
    %4290 = vmatpush1.bf16.msra.mxu0 %v4266
    %4291 = vmatprep.subr.bf16.mxu0 0
    %4292 = vmatpush1.bf16.msra.mxu0 %v4268
    %4293 = vmatprep.subr.bf16.mxu0 0
    %4294 = vmatpush1.bf16.msra.mxu0 %v4270
    %4295 = vmatprep.subr.bf16.mxu0 0
    %4296 = vmatpush1.bf16.msra.mxu0 %v4272
    %4297 = vmatprep.subr.bf16.mxu0 0
    %4298 = vmatpush1.bf16.msra.mxu0 0
    %4299 = vmatprep.subr.bf16.mxu0 0
    %4300 = vmatpush1.bf16.msra.mxu0 0
    %4301 = vmatprep.subr.bf16.mxu0 0
    %4302 = vmatpush1.bf16.msra.mxu0 0
    %4303 = vmatprep.subr.bf16.mxu0 0
    %4304 = vmatpush1.bf16.msra.mxu0 0
    %4305 = vmatprep.subr.bf16.mxu0 0
    %4306 = vmatpush1.bf16.msra.mxu0 0
    %4307 = vmatprep.subr.bf16.mxu0 0
    %4308 = vmatpush1.bf16.msra.mxu0 0
    %4309 = vmatprep.subr.bf16.mxu0 0
    %4310 = vmatpush1.bf16.msra.mxu0 0
    %4311 = vmatprep.subr.bf16.mxu0 0
    %4312 = vmatpush1.bf16.msra.mxu0 0
    %4313 = vmatprep.mubr.bf16.mxu0 0
    %4314 = vmatmul.mubr.bf16.gmra.mrb[0].mxu0 %v741
    %v4315 = vpop.f32.mrb[0].mxu0
    %v4316 = vadd.f32 0.0, %v4315
    %v4317 = vpop.f32.mrb[0].mxu0
    %v4318 = vpop.f32.mrb[0].mxu0
    %v4319 = vadd.f32 0.0, %v4318
    %v4320 = vpop.f32.mrb[0].mxu0
    %4321 = vmatprep.mubr.bf16.mxu0 0
    %4322 = vmatmul.mubr.bf16.gmra.mrb[0].mxu0 %v742
    %v4323 = vpop.f32.mrb[0].mxu0
    %v4324 = vadd.f32 0.0, %v4323
    %v4325 = vpop.f32.mrb[0].mxu0
    %v4326 = vpop.f32.mrb[0].mxu0
    %v4327 = vadd.f32 0.0, %v4326
    %v4328 = vpop.f32.mrb[0].mxu0
    %4329 = vmatprep.mubr.bf16.mxu0 0
    %4330 = vmatmul.mubr.bf16.gmra.mrb[0].mxu0 %v743
    %v4331 = vpop.f32.mrb[0].mxu0
    %v4332 = vadd.f32 0.0, %v4331
    %v4333 = vpop.f32.mrb[0].mxu0
    %v4334 = vpop.f32.mrb[0].mxu0
    %v4335 = vadd.f32 0.0, %v4334
    %v4336 = vpop.f32.mrb[0].mxu0
    %4337 = vmatprep.mubr.bf16.mxu0 0
    %4338 = vmatmul.mubr.bf16.gmra.mrb[0].mxu0 %v744
    %v4339 = vpop.f32.mrb[0].mxu0
    %v4340 = vadd.f32 0.0, %v4339
    %v4341 = vpop.f32.mrb[0].mxu0
    %v4342 = vpop.f32.mrb[0].mxu0
    %v4343 = vadd.f32 0.0, %v4342
    %v4344 = vpop.f32.mrb[0].mxu0
    %4345 = vmatprep.mubr.bf16.mxu0 0
    %4346 = vmatmul.mubr.bf16.gmra.mrb[0].mxu0 %v745
    %v4347 = vpop.f32.mrb[0].mxu0
    %v4348 = vadd.f32 0.0, %v4347
    %v4349 = vpop.f32.mrb[0].mxu0
    %v4350 = vpop.f32.mrb[0].mxu0
    %v4351 = vadd.f32 0.0, %v4350
    %v4352 = vpop.f32.mrb[0].mxu0
    %4353 = vmatprep.mubr.bf16.mxu0 0
    %4354 = vmatmul.mubr.bf16.gmra.mrb[0].mxu0 %v746
    %v4355 = vpop.f32.mrb[0].mxu0
    %v4356 = vadd.f32 0.0, %v4355
    %v4357 = vpop.f32.mrb[0].mxu0
    %v4358 = vpop.f32.mrb[0].mxu0
    %v4359 = vadd.f32 0.0, %v4358
    %v4360 = vpop.f32.mrb[0].mxu0
    %4361 = vmatprep.mubr.bf16.mxu0 0
    %4362 = vmatmul.mubr.bf16.gmra.mrb[0].mxu0 %v747
    %v4363 = vpop.f32.mrb[0].mxu0
    %v4364 = vadd.f32 0.0, %v4363
    %v4365 = vpop.f32.mrb[0].mxu0
    %v4366 = vpop.f32.mrb[0].mxu0
    %v4367 = vadd.f32 0.0, %v4366
    %v4368 = vpop.f32.mrb[0].mxu0
    %4369 = vmatprep.mubr.bf16.mxu0 0
    %4370 = vmatmul.mubr.bf16.gmra.mrb[0].mxu0 %v748
    %v4371 = vpop.f32.mrb[0].mxu0
    %v4372 = vadd.f32 0.0, %v4371
    %v4373 = vpop.f32.mrb[0].mxu0
    %v4374 = vpop.f32.mrb[0].mxu0
    %v4375 = vadd.f32 0.0, %v4374
    %v4376 = vpop.f32.mrb[0].mxu0
    %4377 = vdwg.mxu0
    %v4378 = vmul.f32 %v4316, %v4187
    %v4379 = vmul.f32 %v4319, %v4190
    %v4380 = vmul.f32 %v4324, %v4195
    %v4381 = vmul.f32 %v4327, %v4198
    %v4382 = vmul.f32 %v4332, %v4203
    %v4383 = vmul.f32 %v4335, %v4206
    %v4384 = vmul.f32 %v4340, %v4211
    %v4385 = vmul.f32 %v4343, %v4214
    %v4386 = vmul.f32 %v4348, %v4219
    %v4387 = vmul.f32 %v4351, %v4222
    %v4388 = vmul.f32 %v4356, %v4227
    %v4389 = vmul.f32 %v4359, %v4230
    %v4390 = vmul.f32 %v4364, %v4235
    %v4391 = vmul.f32 %v4367, %v4238
    %v4392 = vmul.f32 %v4372, %v4243
    %v4393 = vmul.f32 %v4375, %v4246
    %v4394 = vld [vmem:[%s37] sm:$0xff]
    %v4395 = vld [vmem:[%s37 + $0x8] sm:$0xff]
    %v4396 = vld [vmem:[%s37 + $0x10] sm:$0xff]
    %v4398 = vsel %vm259, %v4378, 0
    %v4401 = vsel %vm259, %v4379, 0
    %v4404 = vsel %vm259, %v4380, 0
    %v4407 = vsel %vm259, %v4381, 0
    %v4410 = vsel %vm259, %v4382, 0
    %v4413 = vsel %vm259, %v4383, 0
    %v4416 = vsel %vm259, %v4384, 0
    %v4419 = vsel %vm259, %v4385, 0
    %v4422 = vsel %vm259, %v4386, 0
    %v4425 = vsel %vm259, %v4387, 0
    %v4428 = vsel %vm259, %v4388, 0
    %v4431 = vsel %vm259, %v4389, 0
    %v4434 = vsel %vm259, %v4390, 0
    %v4437 = vsel %vm259, %v4391, 0
    %v4440 = vsel %vm259, %v4392, 0
    %v4443 = vsel %vm259, %v4393, 0
    %4445 = vmatprep.subr.mxu0 0.0
    %4446 = vmatpush1.msra.mxu0 %v4394
    %4447 = vmatprep.subr.mxu0 0.0
    %4448 = vmatpush1.msra.mxu0 %v4395
    %4449 = vmatprep.subr.mxu0 0.0
    %4450 = vmatpush1.msra.mxu0 %v4396
    %4451 = vmatprep.subr.mxu0 0.0
    %4452 = vmatpush1.msra.mxu0 0.0
    %4453 = vmatprep.subr.mxu0 0.0
    %4454 = vmatpush1.msra.mxu0 0.0
    %4455 = vmatprep.subr.mxu0 0.0
    %4456 = vmatpush1.msra.mxu0 0.0
    %4457 = vmatprep.subr.mxu0 0.0
    %4458 = vmatpush1.msra.mxu0 0.0
    %4459 = vmatprep.subr.mxu0 0.0
    %4460 = vmatpush1.msra.mxu0 0.0
    %4461 = vmatprep.subr.mxu0 0.0
    %4462 = vmatpush1.msra.mxu0 0.0
    %4463 = vmatprep.subr.mxu0 0.0
    %4464 = vmatpush1.msra.mxu0 0.0
    %4465 = vmatprep.subr.mxu0 0.0
    %4466 = vmatpush1.msra.mxu0 0.0
    %4467 = vmatprep.subr.mxu0 0.0
    %4468 = vmatpush1.msra.mxu0 0.0
    %4469 = vmatprep.subr.mxu0 0.0
    %4470 = vmatpush1.msra.mxu0 0.0
    %4471 = vmatprep.subr.mxu0 0.0
    %4472 = vmatpush1.msra.mxu0 0.0
    %4473 = vmatprep.subr.mxu0 0.0
    %4474 = vmatpush1.msra.mxu0 0.0
    %4475 = vmatprep.subr.mxu0 0.0
    %4476 = vmatpush1.msra.mxu0 0.0
    %4477 = vmatprep.subr.mxu0 0.0
    %4478 = vmatpush1.msra.mxu0 0.0
    %4479 = vmatprep.subr.mxu0 0.0
    %4480 = vmatpush1.msra.mxu0 0.0
    %4481 = vmatprep.subr.mxu0 0.0
    %4482 = vmatpush1.msra.mxu0 0.0
    %4483 = vmatprep.subr.mxu0 0.0
    %4484 = vmatpush1.msra.mxu0 0.0
    %4485 = vmatprep.subr.mxu0 0.0
    %4486 = vmatpush1.msra.mxu0 0.0
    %4487 = vmatprep.subr.mxu0 0.0
    %4488 = vmatpush1.msra.mxu0 0.0
    %4489 = vmatprep.subr.mxu0 0.0
    %4490 = vmatpush1.msra.mxu0 0.0
    %4491 = vmatprep.subr.mxu0 0.0
    %4492 = vmatpush1.msra.mxu0 0.0
    %4493 = vmatprep.subr.mxu0 0.0
    %4494 = vmatpush1.msra.mxu0 0.0
    %4495 = vmatprep.subr.mxu0 0.0
    %4496 = vmatpush1.msra.mxu0 0.0
    %4497 = vmatprep.subr.mxu0 0.0
    %4498 = vmatpush1.msra.mxu0 0.0
    %4499 = vmatprep.subr.mxu0 0.0
    %4500 = vmatpush1.msra.mxu0 0.0
    %4501 = vmatprep.subr.mxu0 0.0
    %4502 = vmatpush1.msra.mxu0 0.0
    %4503 = vmatprep.subr.mxu0 0.0
    %4504 = vmatpush1.msra.mxu0 0.0
    %4505 = vmatprep.subr.mxu0 0.0
    %4506 = vmatpush1.msra.mxu0 0.0
    %4507 = vmatprep.subr.mxu0 0.0
    %4508 = vmatpush1.msra.mxu0 0.0
    %4509 = vmatprep.mubr.f32.mxu0 0.0
    %4510 = vmatmul.mubr.f32.gmra.mrb[0].mxu0 %v4398
    %v4511 = vpop.f32.mrb[0].mxu0
    %v4512 = vadd.f32 0.0, %v4511
    %v4513 = vpop.f32.mrb[0].mxu0
    %4514 = vmatprep.mubr.f32.mxu0 0.0
    %4515 = vmatmul.mubr.f32.gmra.mrb[0].mxu0 %v4401
    %v4516 = vpop.f32.mrb[0].mxu0
    %v4517 = vadd.f32 0.0, %v4516
    %v4518 = vpop.f32.mrb[0].mxu0
    %4519 = vmatprep.mubr.f32.mxu0 0.0
    %4520 = vmatmul.mubr.f32.gmra.mrb[0].mxu0 %v4404
    %v4521 = vpop.f32.mrb[0].mxu0
    %v4522 = vadd.f32 0.0, %v4521
    %v4523 = vpop.f32.mrb[0].mxu0
    %4524 = vmatprep.mubr.f32.mxu0 0.0
    %4525 = vmatmul.mubr.f32.gmra.mrb[0].mxu0 %v4407
    %v4526 = vpop.f32.mrb[0].mxu0
    %v4527 = vadd.f32 0.0, %v4526
    %v4528 = vpop.f32.mrb[0].mxu0
    %4529 = vmatprep.mubr.f32.mxu0 0.0
    %4530 = vmatmul.mubr.f32.gmra.mrb[0].mxu0 %v4410
    %v4531 = vpop.f32.mrb[0].mxu0
    %v4532 = vadd.f32 0.0, %v4531
    %v4533 = vpop.f32.mrb[0].mxu0
    %4534 = vmatprep.mubr.f32.mxu0 0.0
    %4535 = vmatmul.mubr.f32.gmra.mrb[0].mxu0 %v4413
    %v4536 = vpop.f32.mrb[0].mxu0
    %v4537 = vadd.f32 0.0, %v4536
    %v4538 = vpop.f32.mrb[0].mxu0
    %4539 = vmatprep.mubr.f32.mxu0 0.0
    %4540 = vmatmul.mubr.f32.gmra.mrb[0].mxu0 %v4416
    %v4541 = vpop.f32.mrb[0].mxu0
    %v4542 = vadd.f32 0.0, %v4541
    %v4543 = vpop.f32.mrb[0].mxu0
    %4544 = vmatprep.mubr.f32.mxu0 0.0
    %4545 = vmatmul.mubr.f32.gmra.mrb[0].mxu0 %v4419
    %v4546 = vpop.f32.mrb[0].mxu0
    %v4547 = vadd.f32 0.0, %v4546
    %v4548 = vpop.f32.mrb[0].mxu0
    %4549 = vmatprep.mubr.f32.mxu0 0.0
    %4550 = vmatmul.mubr.f32.gmra.mrb[0].mxu0 %v4422
    %v4551 = vpop.f32.mrb[0].mxu0
    %v4552 = vadd.f32 0.0, %v4551
    %v4553 = vpop.f32.mrb[0].mxu0
    %4554 = vmatprep.mubr.f32.mxu0 0.0
    %4555 = vmatmul.mubr.f32.gmra.mrb[0].mxu0 %v4425
    %v4556 = vpop.f32.mrb[0].mxu0
    %v4557 = vadd.f32 0.0, %v4556
    %v4558 = vpop.f32.mrb[0].mxu0
    %4559 = vmatprep.mubr.f32.mxu0 0.0
    %4560 = vmatmul.mubr.f32.gmra.mrb[0].mxu0 %v4428
    %v4561 = vpop.f32.mrb[0].mxu0
    %v4562 = vadd.f32 0.0, %v4561
    %v4563 = vpop.f32.mrb[0].mxu0
    %4564 = vmatprep.mubr.f32.mxu0 0.0
    %4565 = vmatmul.mubr.f32.gmra.mrb[0].mxu0 %v4431
    %v4566 = vpop.f32.mrb[0].mxu0
    %v4567 = vadd.f32 0.0, %v4566
    %v4568 = vpop.f32.mrb[0].mxu0
    %4569 = vmatprep.mubr.f32.mxu0 0.0
    %4570 = vmatmul.mubr.f32.gmra.mrb[0].mxu0 %v4434
    %v4571 = vpop.f32.mrb[0].mxu0
    %v4572 = vadd.f32 0.0, %v4571
    %v4573 = vpop.f32.mrb[0].mxu0
    %4574 = vmatprep.mubr.f32.mxu0 0.0
    %4575 = vmatmul.mubr.f32.gmra.mrb[0].mxu0 %v4437
    %v4576 = vpop.f32.mrb[0].mxu0
    %v4577 = vadd.f32 0.0, %v4576
    %v4578 = vpop.f32.mrb[0].mxu0
    %4579 = vmatprep.mubr.f32.mxu0 0.0
    %4580 = vmatmul.mubr.f32.gmra.mrb[0].mxu0 %v4440
    %v4581 = vpop.f32.mrb[0].mxu0
    %v4582 = vadd.f32 0.0, %v4581
    %v4583 = vpop.f32.mrb[0].mxu0
    %4584 = vmatprep.mubr.f32.mxu0 0.0
    %4585 = vmatmul.mubr.f32.gmra.mrb[0].mxu0 %v4443
    %v4586 = vpop.f32.mrb[0].mxu0
    %v4587 = vadd.f32 0.0, %v4586
    %v4588 = vpop.f32.mrb[0].mxu0
    %4589 = vdwg.mxu0
    %v4590 = vmul.f32 %v4512, 0.5
    %v4591 = vmul.f32 %v4517, 0.5
    %v4592 = vmul.f32 %v4522, 0.5
    %v4593 = vmul.f32 %v4527, 0.5
    %v4594 = vmul.f32 %v4532, 0.5
    %v4595 = vmul.f32 %v4537, 0.5
    %v4596 = vmul.f32 %v4542, 0.5
    %v4597 = vmul.f32 %v4547, 0.5
    %v4598 = vmul.f32 %v4552, 0.5
    %v4599 = vmul.f32 %v4557, 0.5
    %v4600 = vmul.f32 %v4562, 0.5
    %v4601 = vmul.f32 %v4567, 0.5
    %v4602 = vmul.f32 %v4572, 0.5
    %v4603 = vmul.f32 %v4577, 0.5
    %v4604 = vmul.f32 %v4582, 0.5
    %v4605 = vmul.f32 %v4587, 0.5
    %v4606 = vmax.f32 %v4590, %v4594
    %v4607 = vmax.f32 %v4591, %v4595
    %v4608 = vmax.f32 %v4592, %v4596
    %v4609 = vmax.f32 %v4593, %v4597
    %v4610 = vmax.f32 %v4606, %v4598
    %v4611 = vmax.f32 %v4607, %v4599
    %v4612 = vmax.f32 %v4608, %v4600
    %v4613 = vmax.f32 %v4609, %v4601
    %v4614 = vmax.f32 %v4610, %v4602
    %v4615 = vmax.f32 %v4611, %v4603
    %v4616 = vmax.f32 %v4612, %v4604
    %v4617 = vmax.f32 %v4613, %v4605
    %v4618 = vmax.f32 %v4614, %v4615
    %v4619 = vmax.f32 %v4616, %v4617
    %v4620 = vmax.f32 %v4618, %v4619
    %v4621 = vrot.slane %v4620, 4
    %v4622 = vmax.f32 %v4620, %v4621
    %v4623 = vrot.slane %v4622, 2
    %v4624 = vmax.f32 %v4622, %v4623
    %v4625 = vrot.slane %v4624, 1
    %v4626 = vmax.f32 %v4624, %v4625
    %v4627 = vsub.f32 %v4590, %v4626
    %v4628 = vsub.f32 %v4591, %v4626
    %v4629 = vsub.f32 %v4592, %v4626
    %v4630 = vsub.f32 %v4593, %v4626
    %v4631 = vsub.f32 %v4594, %v4626
    %v4632 = vsub.f32 %v4595, %v4626
    %v4633 = vsub.f32 %v4596, %v4626
    %v4634 = vsub.f32 %v4597, %v4626
    %v4635 = vsub.f32 %v4598, %v4626
    %v4636 = vsub.f32 %v4599, %v4626
    %v4637 = vsub.f32 %v4600, %v4626
    %v4638 = vsub.f32 %v4601, %v4626
    %v4639 = vsub.f32 %v4602, %v4626
    %v4640 = vsub.f32 %v4603, %v4626
    %v4641 = vsub.f32 %v4604, %v4626
    %v4642 = vsub.f32 %v4605, %v4626
    %v4643 = vmul.f32 %v4627, 1.442695
    %v4644 = vpow.pop %v4643
    %v4645 = vmul.f32 %v4628, 1.442695
    %v4646 = vpow.pop %v4645
    %v4647 = vmul.f32 %v4629, 1.442695
    %v4648 = vpow.pop %v4647
    %v4649 = vmul.f32 %v4630, 1.442695
    %v4650 = vpow.pop %v4649
    %v4651 = vmul.f32 %v4631, 1.442695
    %v4652 = vpow.pop %v4651
    %v4653 = vmul.f32 %v4632, 1.442695
    %v4654 = vpow.pop %v4653
    %v4655 = vmul.f32 %v4633, 1.442695
    %v4656 = vpow.pop %v4655
    %v4657 = vmul.f32 %v4634, 1.442695
    %v4658 = vpow.pop %v4657
    %v4659 = vmul.f32 %v4635, 1.442695
    %v4660 = vpow.pop %v4659
    %v4661 = vmul.f32 %v4636, 1.442695
    %v4662 = vpow.pop %v4661
    %v4663 = vmul.f32 %v4637, 1.442695
    %v4664 = vpow.pop %v4663
    %v4665 = vmul.f32 %v4638, 1.442695
    %v4666 = vpow.pop %v4665
    %v4667 = vmul.f32 %v4639, 1.442695
    %v4668 = vpow.pop %v4667
    %v4669 = vmul.f32 %v4640, 1.442695
    %v4670 = vpow.pop %v4669
    %v4671 = vmul.f32 %v4641, 1.442695
    %v4672 = vpow.pop %v4671
    %v4673 = vmul.f32 %v4642, 1.442695
    %v4674 = vpow.pop %v4673
    %v4675 = vpack.c.bf16 %v4646, %v4644
    %v4676 = vpack.c.bf16 %v4650, %v4648
    %v4677 = vpack.c.bf16 %v4654, %v4652
    %v4678 = vpack.c.bf16 %v4658, %v4656
    %v4679 = vpack.c.bf16 %v4662, %v4660
    %v4680 = vpack.c.bf16 %v4666, %v4664
    %v4681 = vpack.c.bf16 %v4670, %v4668
    %v4682 = vpack.c.bf16 %v4674, %v4672
    %4683 = vmatprep.subr.bf16.mxu0 0
    %4684 = vmatpush1.bf16.msra.mxu0 %v4675
    %4685 = vmatprep.subr.bf16.mxu0 0
    %4686 = vmatpush1.bf16.msra.mxu0 %v4676
    %4687 = vmatprep.subr.bf16.mxu0 0
    %4688 = vmatpush1.bf16.msra.mxu0 %v4677
    %4689 = vmatprep.subr.bf16.mxu0 0
    %4690 = vmatpush1.bf16.msra.mxu0 %v4678
    %4691 = vmatprep.subr.bf16.mxu0 0
    %4692 = vmatpush1.bf16.msra.mxu0 %v4679
    %4693 = vmatprep.subr.bf16.mxu0 0
    %4694 = vmatpush1.bf16.msra.mxu0 %v4680
    %4695 = vmatprep.subr.bf16.mxu0 0
    %4696 = vmatpush1.bf16.msra.mxu0 %v4681
    %4697 = vmatprep.subr.bf16.mxu0 0
    %4698 = vmatpush1.bf16.msra.mxu0 %v4682
    %4699 = vmatprep.subr.bf16.mxu0 0
    %4700 = vmatpush1.bf16.msra.mxu0 0
    %4701 = vmatprep.subr.bf16.mxu0 0
    %4702 = vmatpush1.bf16.msra.mxu0 0
    %4703 = vmatprep.subr.bf16.mxu0 0
    %4704 = vmatpush1.bf16.msra.mxu0 0
    %4705 = vmatprep.subr.bf16.mxu0 0
    %4706 = vmatpush1.bf16.msra.mxu0 0
    %4707 = vmatprep.subr.bf16.mxu0 0
    %4708 = vmatpush1.bf16.msra.mxu0 0
    %4709 = vmatprep.subr.bf16.mxu0 0
    %4710 = vmatpush1.bf16.msra.mxu0 0
    %4711 = vmatprep.subr.bf16.mxu0 0
    %4712 = vmatpush1.bf16.msra.mxu0 0
    %4713 = vmatprep.subr.bf16.mxu0 0
    %4714 = vmatpush1.bf16.msra.mxu0 0
    %4715 = vmatprep.mubr.bf16.mxu0 0
    %4716 = vmatmul.mubr.bf16.gmra.mrb[0].mxu0 %v241
    %v4717 = vpop.f32.mrb[0].mxu0
    %v4718 = vadd.f32 0.0, %v4717
    %v4719 = vpop.f32.mrb[0].mxu0
    %v4720 = vpop.f32.mrb[0].mxu0
    %v4721 = vadd.f32 0.0, %v4720
    %v4722 = vpop.f32.mrb[0].mxu0
    %4723 = vmatprep.mubr.bf16.mxu0 0
    %4724 = vmatmul.mubr.bf16.gmra.mrb[0].mxu0 %v242
    %v4725 = vpop.f32.mrb[0].mxu0
    %v4726 = vadd.f32 0.0, %v4725
    %v4727 = vpop.f32.mrb[0].mxu0
    %v4728 = vpop.f32.mrb[0].mxu0
    %v4729 = vadd.f32 0.0, %v4728
    %v4730 = vpop.f32.mrb[0].mxu0
    %4731 = vmatprep.mubr.bf16.mxu0 0
    %4732 = vmatmul.mubr.bf16.gmra.mrb[0].mxu0 %v243
    %v4733 = vpop.f32.mrb[0].mxu0
    %v4734 = vadd.f32 0.0, %v4733
    %v4735 = vpop.f32.mrb[0].mxu0
    %v4736 = vpop.f32.mrb[0].mxu0
    %v4737 = vadd.f32 0.0, %v4736
    %v4738 = vpop.f32.mrb[0].mxu0
    %4739 = vmatprep.mubr.bf16.mxu0 0
    %4740 = vmatmul.mubr.bf16.gmra.mrb[0].mxu0 %v244
    %v4741 = vpop.f32.mrb[0].mxu0
    %v4742 = vadd.f32 0.0, %v4741
    %v4743 = vpop.f32.mrb[0].mxu0
    %v4744 = vpop.f32.mrb[0].mxu0
    %v4745 = vadd.f32 0.0, %v4744
    %v4746 = vpop.f32.mrb[0].mxu0
    %4747 = vmatprep.mubr.bf16.mxu0 0
    %4748 = vmatmul.mubr.bf16.gmra.mrb[0].mxu0 %v245
    %v4749 = vpop.f32.mrb[0].mxu0
    %v4750 = vadd.f32 0.0, %v4749
    %v4751 = vpop.f32.mrb[0].mxu0
    %v4752 = vpop.f32.mrb[0].mxu0
    %v4753 = vadd.f32 0.0, %v4752
    %v4754 = vpop.f32.mrb[0].mxu0
    %4755 = vmatprep.mubr.bf16.mxu0 0
    %4756 = vmatmul.mubr.bf16.gmra.mrb[0].mxu0 %v246
    %v4757 = vpop.f32.mrb[0].mxu0
    %v4758 = vadd.f32 0.0, %v4757
    %v4759 = vpop.f32.mrb[0].mxu0
    %v4760 = vpop.f32.mrb[0].mxu0
    %v4761 = vadd.f32 0.0, %v4760
    %v4762 = vpop.f32.mrb[0].mxu0
    %4763 = vmatprep.mubr.bf16.mxu0 0
    %4764 = vmatmul.mubr.bf16.gmra.mrb[0].mxu0 %v247
    %v4765 = vpop.f32.mrb[0].mxu0
    %v4766 = vadd.f32 0.0, %v4765
    %v4767 = vpop.f32.mrb[0].mxu0
    %v4768 = vpop.f32.mrb[0].mxu0
    %v4769 = vadd.f32 0.0, %v4768
    %v4770 = vpop.f32.mrb[0].mxu0
    %4771 = vmatprep.mubr.bf16.mxu0 0
    %4772 = vmatmul.mubr.bf16.gmra.mrb[0].mxu0 %v248
    %v4773 = vpop.f32.mrb[0].mxu0
    %v4774 = vadd.f32 0.0, %v4773
    %v4775 = vpop.f32.mrb[0].mxu0
    %v4776 = vpop.f32.mrb[0].mxu0
    %v4777 = vadd.f32 0.0, %v4776
    %v4778 = vpop.f32.mrb[0].mxu0
    %4779 = vdwg.mxu0
    %v4780 = vmax.f32 %v4718, 1e-09
    %v4781 = vmax.f32 %v4721, 1e-09
    %v4782 = vmax.f32 %v4726, 1e-09
    %v4783 = vmax.f32 %v4729, 1e-09
    %v4784 = vmax.f32 %v4734, 1e-09
    %v4785 = vmax.f32 %v4737, 1e-09
    %v4786 = vmax.f32 %v4742, 1e-09
    %v4787 = vmax.f32 %v4745, 1e-09
    %v4788 = vmax.f32 %v4750, 1e-09
    %v4789 = vmax.f32 %v4753, 1e-09
    %v4790 = vmax.f32 %v4758, 1e-09
    %v4791 = vmax.f32 %v4761, 1e-09
    %v4792 = vmax.f32 %v4766, 1e-09
    %v4793 = vmax.f32 %v4769, 1e-09
    %v4794 = vmax.f32 %v4774, 1e-09
    %v4795 = vmax.f32 %v4777, 1e-09
    %v4796 = vrcp.pop %v4780
    %v4797 = vrcp.pop %v4781
    %v4798 = vrcp.pop %v4782
    %v4799 = vrcp.pop %v4783
    %v4800 = vrcp.pop %v4784
    %v4801 = vrcp.pop %v4785
    %v4802 = vrcp.pop %v4786
    %v4803 = vrcp.pop %v4787
    %v4804 = vrcp.pop %v4788
    %v4805 = vrcp.pop %v4789
    %v4806 = vrcp.pop %v4790
    %v4807 = vrcp.pop %v4791
    %v4808 = vrcp.pop %v4792
    %v4809 = vrcp.pop %v4793
    %v4810 = vrcp.pop %v4794
    %v4811 = vrcp.pop %v4795
    %v4812 = vpack.c.bf16 %v4797, %v4796
    %v4813 = vpack.c.bf16 %v4799, %v4798
    %v4814 = vpack.c.bf16 %v4801, %v4800
    %v4815 = vpack.c.bf16 %v4803, %v4802
    %v4816 = vpack.c.bf16 %v4805, %v4804
    %v4817 = vpack.c.bf16 %v4807, %v4806
    %v4818 = vpack.c.bf16 %v4809, %v4808
    %v4819 = vpack.c.bf16 %v4811, %v4810
    %4820 = vmatprep.subr.bf16.mxu0 0
    %4821 = vmatpush1.bf16.msra.mxu0 %v4812
    %4822 = vmatprep.subr.bf16.mxu0 0
    %4823 = vmatpush1.bf16.msra.mxu0 %v4813
    %4824 = vmatprep.subr.bf16.mxu0 0
    %4825 = vmatpush1.bf16.msra.mxu0 %v4814
    %4826 = vmatprep.subr.bf16.mxu0 0
    %4827 = vmatpush1.bf16.msra.mxu0 %v4815
    %4828 = vmatprep.subr.bf16.mxu0 0
    %4829 = vmatpush1.bf16.msra.mxu0 %v4816
    %4830 = vmatprep.subr.bf16.mxu0 0
    %4831 = vmatpush1.bf16.msra.mxu0 %v4817
    %4832 = vmatprep.subr.bf16.mxu0 0
    %4833 = vmatpush1.bf16.msra.mxu0 %v4818
    %4834 = vmatprep.subr.bf16.mxu0 0
    %4835 = vmatpush1.bf16.msra.mxu0 %v4819
    %4836 = vmatprep.subr.bf16.mxu0 0
    %4837 = vmatpush1.bf16.msra.mxu0 0
    %4838 = vmatprep.subr.bf16.mxu0 0
    %4839 = vmatpush1.bf16.msra.mxu0 0
    %4840 = vmatprep.subr.bf16.mxu0 0
    %4841 = vmatpush1.bf16.msra.mxu0 0
    %4842 = vmatprep.subr.bf16.mxu0 0
    %4843 = vmatpush1.bf16.msra.mxu0 0
    %4844 = vmatprep.subr.bf16.mxu0 0
    %4845 = vmatpush1.bf16.msra.mxu0 0
    %4846 = vmatprep.subr.bf16.mxu0 0
    %4847 = vmatpush1.bf16.msra.mxu0 0
    %4848 = vmatprep.subr.bf16.mxu0 0
    %4849 = vmatpush1.bf16.msra.mxu0 0
    %4850 = vmatprep.subr.bf16.mxu0 0
    %4851 = vmatpush1.bf16.msra.mxu0 0
    %4852 = vmatprep.mubr.bf16.mxu0 0
    %4853 = vmatmul.mubr.bf16.gmra.mrb[0].mxu0 %v741
    %v4854 = vpop.f32.mrb[0].mxu0
    %v4855 = vadd.f32 0.0, %v4854
    %v4856 = vpop.f32.mrb[0].mxu0
    %v4857 = vpop.f32.mrb[0].mxu0
    %v4858 = vadd.f32 0.0, %v4857
    %v4859 = vpop.f32.mrb[0].mxu0
    %4860 = vmatprep.mubr.bf16.mxu0 0
    %4861 = vmatmul.mubr.bf16.gmra.mrb[0].mxu0 %v742
    %v4862 = vpop.f32.mrb[0].mxu0
    %v4863 = vadd.f32 0.0, %v4862
    %v4864 = vpop.f32.mrb[0].mxu0
    %v4865 = vpop.f32.mrb[0].mxu0
    %v4866 = vadd.f32 0.0, %v4865
    %v4867 = vpop.f32.mrb[0].mxu0
    %4868 = vmatprep.mubr.bf16.mxu0 0
    %4869 = vmatmul.mubr.bf16.gmra.mrb[0].mxu0 %v743
    %v4870 = vpop.f32.mrb[0].mxu0
    %v4871 = vadd.f32 0.0, %v4870
    %v4872 = vpop.f32.mrb[0].mxu0
    %v4873 = vpop.f32.mrb[0].mxu0
    %v4874 = vadd.f32 0.0, %v4873
    %v4875 = vpop.f32.mrb[0].mxu0
    %4876 = vmatprep.mubr.bf16.mxu0 0
    %4877 = vmatmul.mubr.bf16.gmra.mrb[0].mxu0 %v744
    %v4878 = vpop.f32.mrb[0].mxu0
    %v4879 = vadd.f32 0.0, %v4878
    %v4880 = vpop.f32.mrb[0].mxu0
    %v4881 = vpop.f32.mrb[0].mxu0
    %v4882 = vadd.f32 0.0, %v4881
    %v4883 = vpop.f32.mrb[0].mxu0
    %4884 = vmatprep.mubr.bf16.mxu0 0
    %4885 = vmatmul.mubr.bf16.gmra.mrb[0].mxu0 %v745
    %v4886 = vpop.f32.mrb[0].mxu0
    %v4887 = vadd.f32 0.0, %v4886
    %v4888 = vpop.f32.mrb[0].mxu0
    %v4889 = vpop.f32.mrb[0].mxu0
    %v4890 = vadd.f32 0.0, %v4889
    %v4891 = vpop.f32.mrb[0].mxu0
    %4892 = vmatprep.mubr.bf16.mxu0 0
    %4893 = vmatmul.mubr.bf16.gmra.mrb[0].mxu0 %v746
    %v4894 = vpop.f32.mrb[0].mxu0
    %v4895 = vadd.f32 0.0, %v4894
    %v4896 = vpop.f32.mrb[0].mxu0
    %v4897 = vpop.f32.mrb[0].mxu0
    %v4898 = vadd.f32 0.0, %v4897
    %v4899 = vpop.f32.mrb[0].mxu0
    %4900 = vmatprep.mubr.bf16.mxu0 0
    %4901 = vmatmul.mubr.bf16.gmra.mrb[0].mxu0 %v747
    %v4902 = vpop.f32.mrb[0].mxu0
    %v4903 = vadd.f32 0.0, %v4902
    %v4904 = vpop.f32.mrb[0].mxu0
    %v4905 = vpop.f32.mrb[0].mxu0
    %v4906 = vadd.f32 0.0, %v4905
    %v4907 = vpop.f32.mrb[0].mxu0
    %4908 = vmatprep.mubr.bf16.mxu0 0
    %4909 = vmatmul.mubr.bf16.gmra.mrb[0].mxu0 %v748
    %v4910 = vpop.f32.mrb[0].mxu0
    %v4911 = vadd.f32 0.0, %v4910
    %v4912 = vpop.f32.mrb[0].mxu0
    %v4913 = vpop.f32.mrb[0].mxu0
    %v4914 = vadd.f32 0.0, %v4913
    %v4915 = vpop.f32.mrb[0].mxu0
    %4916 = vdwg.mxu0
    %v4917 = vmul.f32 %v4644, %v4855
    %v4918 = vmul.f32 %v4646, %v4858
    %v4919 = vmul.f32 %v4648, %v4863
    %v4920 = vmul.f32 %v4650, %v4866
    %v4921 = vmul.f32 %v4652, %v4871
    %v4922 = vmul.f32 %v4654, %v4874
    %v4923 = vmul.f32 %v4656, %v4879
    %v4924 = vmul.f32 %v4658, %v4882
    %v4925 = vmul.f32 %v4660, %v4887
    %v4926 = vmul.f32 %v4662, %v4890
    %v4927 = vmul.f32 %v4664, %v4895
    %v4928 = vmul.f32 %v4666, %v4898
    %v4929 = vmul.f32 %v4668, %v4903
    %v4930 = vmul.f32 %v4670, %v4906
    %v4931 = vmul.f32 %v4672, %v4911
    %v4932 = vmul.f32 %v4674, %v4914
    %4933 = vst [vmem:[#allocation7] sm:$0xff] %v4917
    %4934 = vst [vmem:[#allocation7 + $0x8] sm:$0xff] %v4918
    %4935 = vst [vmem:[#allocation7 + $0x10] sm:$0xff] %v4919
    %4936 = vst [vmem:[#allocation7 + $0x18] sm:$0xff] %v4920
    %4937 = vst [vmem:[#allocation7 + $0x20] sm:$0xff] %v4921
    %4938 = vst [vmem:[#allocation7 + $0x28] sm:$0xff] %v4922
    %4939 = vst [vmem:[#allocation7 + $0x30] sm:$0xff] %v4923
    %4940 = vst [vmem:[#allocation7 + $0x38] sm:$0xff] %v4924
    %4941 = vst [vmem:[#allocation7 + $0x40] sm:$0xff] %v4925
    %4942 = vst [vmem:[#allocation7 + $0x48] sm:$0xff] %v4926
    %4943 = vst [vmem:[#allocation7 + $0x50] sm:$0xff] %v4927
    %4944 = vst [vmem:[#allocation7 + $0x58] sm:$0xff] %v4928
    %4945 = vst [vmem:[#allocation7 + $0x60] sm:$0xff] %v4929
    %4946 = vst [vmem:[#allocation7 + $0x68] sm:$0xff] %v4930
    %4947 = vst [vmem:[#allocation7 + $0x70] sm:$0xff] %v4931
    %4948 = vst [vmem:[#allocation7 + $0x78] sm:$0xff] %v4932
    %v4949 = vld [vmem:[%s39] sm:$0xff]
    %v4950 = vld [vmem:[%s39 + $0x8] sm:$0xff]
    %v4951 = vld [vmem:[%s39 + $0x10] sm:$0xff]
    %v4952 = vld [vmem:[%s39 + $0x18] sm:$0xff]
    %v4953 = vld [vmem:[%s39 + $0x20] sm:$0xff]
    %v4954 = vld [vmem:[%s39 + $0x28] sm:$0xff]
    %v4955 = vld [vmem:[%s39 + $0x30] sm:$0xff]
    %v4956 = vld [vmem:[%s39 + $0x38] sm:$0xff]
    %v4957 = vld [vmem:[%s39 + $0x40] sm:$0xff]
    %v4958 = vld [vmem:[%s39 + $0x48] sm:$0xff]
    %v4959 = vld [vmem:[%s39 + $0x50] sm:$0xff]
    %v4960 = vld [vmem:[%s39 + $0x58] sm:$0xff]
    %v4961 = vld [vmem:[%s39 + $0x60] sm:$0xff]
    %v4962 = vld [vmem:[%s39 + $0x68] sm:$0xff]
    %v4963 = vld [vmem:[%s39 + $0x70] sm:$0xff]
    %v4964 = vld [vmem:[%s39 + $0x78] sm:$0xff]
    %4965 = vmatprep.subr.mxu0 0.0
    %4966 = vmatpush1.msra.mxu0 %v4949
    %4967 = vmatprep.subr.mxu0 0.0
    %4968 = vmatpush1.msra.mxu0 %v4950
    %4969 = vmatprep.subr.mxu0 0.0
    %4970 = vmatpush1.msra.mxu0 %v4951
    %4971 = vmatprep.subr.mxu0 0.0
    %4972 = vmatpush1.msra.mxu0 %v4952
    %4973 = vmatprep.subr.mxu0 0.0
    %4974 = vmatpush1.msra.mxu0 %v4953
    %4975 = vmatprep.subr.mxu0 0.0
    %4976 = vmatpush1.msra.mxu0 %v4954
    %4977 = vmatprep.subr.mxu0 0.0
    %4978 = vmatpush1.msra.mxu0 %v4955
    %4979 = vmatprep.subr.mxu0 0.0
    %4980 = vmatpush1.msra.mxu0 %v4956
    %4981 = vmatprep.subr.mxu0 0.0
    %4982 = vmatpush1.msra.mxu0 %v4957
    %4983 = vmatprep.subr.mxu0 0.0
    %4984 = vmatpush1.msra.mxu0 %v4958
    %4985 = vmatprep.subr.mxu0 0.0
    %4986 = vmatpush1.msra.mxu0 %v4959
    %4987 = vmatprep.subr.mxu0 0.0
    %4988 = vmatpush1.msra.mxu0 %v4960
    %4989 = vmatprep.subr.mxu0 0.0
    %4990 = vmatpush1.msra.mxu0 %v4961
    %4991 = vmatprep.subr.mxu0 0.0
    %4992 = vmatpush1.msra.mxu0 %v4962
    %4993 = vmatprep.subr.mxu0 0.0
    %4994 = vmatpush1.msra.mxu0 %v4963
    %4995 = vmatprep.subr.mxu0 0.0
    %4996 = vmatpush1.msra.mxu0 %v4964
    %4997 = vmatprep.subr.mxu0 0.0
    %4998 = vmatpush1.msra.mxu0 0.0
    %4999 = vmatprep.subr.mxu0 0.0
    %5000 = vmatpush1.msra.mxu0 0.0
    %5001 = vmatprep.subr.mxu0 0.0
    %5002 = vmatpush1.msra.mxu0 0.0
    %5003 = vmatprep.subr.mxu0 0.0
    %5004 = vmatpush1.msra.mxu0 0.0
    %5005 = vmatprep.subr.mxu0 0.0
    %5006 = vmatpush1.msra.mxu0 0.0
    %5007 = vmatprep.subr.mxu0 0.0
    %5008 = vmatpush1.msra.mxu0 0.0
    %5009 = vmatprep.subr.mxu0 0.0
    %5010 = vmatpush1.msra.mxu0 0.0
    %5011 = vmatprep.subr.mxu0 0.0
    %5012 = vmatpush1.msra.mxu0 0.0
    %5013 = vmatprep.subr.mxu0 0.0
    %5014 = vmatpush1.msra.mxu0 0.0
    %5015 = vmatprep.subr.mxu0 0.0
    %5016 = vmatpush1.msra.mxu0 0.0
    %5017 = vmatprep.subr.mxu0 0.0
    %5018 = vmatpush1.msra.mxu0 0.0
    %5019 = vmatprep.subr.mxu0 0.0
    %5020 = vmatpush1.msra.mxu0 0.0
    %5021 = vmatprep.subr.mxu0 0.0
    %5022 = vmatpush1.msra.mxu0 0.0
    %5023 = vmatprep.subr.mxu0 0.0
    %5024 = vmatpush1.msra.mxu0 0.0
    %5025 = vmatprep.subr.mxu0 0.0
    %5026 = vmatpush1.msra.mxu0 0.0
    %5027 = vmatprep.subr.mxu0 0.0
    %5028 = vmatpush1.msra.mxu0 0.0
    %5029 = vmatprep.mubr.f32.mxu0 0.0
    %5030 = vmatmul.mubr.f32.gmra.mrb[0].mxu0 %v4917
    %v5031 = vpop.f32.mrb[0].mxu0
    %v5032 = vadd.f32 0.0, %v5031
    %v5033 = vpop.f32.mrb[0].mxu0
    %5034 = vmatprep.mubr.f32.mxu0 0.0
    %5035 = vmatmul.mubr.f32.gmra.mrb[0].mxu0 %v4918
    %v5036 = vpop.f32.mrb[0].mxu0
    %v5037 = vadd.f32 0.0, %v5036
    %v5038 = vpop.f32.mrb[0].mxu0
    %5039 = vmatprep.mubr.f32.mxu0 0.0
    %5040 = vmatmul.mubr.f32.gmra.mrb[0].mxu0 %v4919
    %v5041 = vpop.f32.mrb[0].mxu0
    %v5042 = vadd.f32 0.0, %v5041
    %v5043 = vpop.f32.mrb[0].mxu0
    %5044 = vmatprep.mubr.f32.mxu0 0.0
    %5045 = vmatmul.mubr.f32.gmra.mrb[0].mxu0 %v4920
    %v5046 = vpop.f32.mrb[0].mxu0
    %v5047 = vadd.f32 0.0, %v5046
    %v5048 = vpop.f32.mrb[0].mxu0
    %5049 = vmatprep.mubr.f32.mxu0 0.0
    %5050 = vmatmul.mubr.f32.gmra.mrb[0].mxu0 %v4921
    %v5051 = vpop.f32.mrb[0].mxu0
    %v5052 = vadd.f32 0.0, %v5051
    %v5053 = vpop.f32.mrb[0].mxu0
    %5054 = vmatprep.mubr.f32.mxu0 0.0
    %5055 = vmatmul.mubr.f32.gmra.mrb[0].mxu0 %v4922
    %v5056 = vpop.f32.mrb[0].mxu0
    %v5057 = vadd.f32 0.0, %v5056
    %v5058 = vpop.f32.mrb[0].mxu0
    %5059 = vmatprep.mubr.f32.mxu0 0.0
    %5060 = vmatmul.mubr.f32.gmra.mrb[0].mxu0 %v4923
    %v5061 = vpop.f32.mrb[0].mxu0
    %v5062 = vadd.f32 0.0, %v5061
    %v5063 = vpop.f32.mrb[0].mxu0
    %5064 = vmatprep.mubr.f32.mxu0 0.0
    %5065 = vmatmul.mubr.f32.gmra.mrb[0].mxu0 %v4924
    %v5066 = vpop.f32.mrb[0].mxu0
    %v5067 = vadd.f32 0.0, %v5066
    %v5068 = vpop.f32.mrb[0].mxu0
    %5069 = vmatprep.mubr.f32.mxu0 0.0
    %5070 = vmatmul.mubr.f32.gmra.mrb[0].mxu0 %v4925
    %v5071 = vpop.f32.mrb[0].mxu0
    %v5072 = vadd.f32 0.0, %v5071
    %v5073 = vpop.f32.mrb[0].mxu0
    %5074 = vmatprep.mubr.f32.mxu0 0.0
    %5075 = vmatmul.mubr.f32.gmra.mrb[0].mxu0 %v4926
    %v5076 = vpop.f32.mrb[0].mxu0
    %v5077 = vadd.f32 0.0, %v5076
    %v5078 = vpop.f32.mrb[0].mxu0
    %5079 = vmatprep.mubr.f32.mxu0 0.0
    %5080 = vmatmul.mubr.f32.gmra.mrb[0].mxu0 %v4927
    %v5081 = vpop.f32.mrb[0].mxu0
    %v5082 = vadd.f32 0.0, %v5081
    %v5083 = vpop.f32.mrb[0].mxu0
    %5084 = vmatprep.mubr.f32.mxu0 0.0
    %5085 = vmatmul.mubr.f32.gmra.mrb[0].mxu0 %v4928
    %v5086 = vpop.f32.mrb[0].mxu0
    %v5087 = vadd.f32 0.0, %v5086
    %v5088 = vpop.f32.mrb[0].mxu0
    %5089 = vmatprep.mubr.f32.mxu0 0.0
    %5090 = vmatmul.mubr.f32.gmra.mrb[0].mxu0 %v4929
    %v5091 = vpop.f32.mrb[0].mxu0
    %v5092 = vadd.f32 0.0, %v5091
    %v5093 = vpop.f32.mrb[0].mxu0
    %5094 = vmatprep.mubr.f32.mxu0 0.0
    %5095 = vmatmul.mubr.f32.gmra.mrb[0].mxu0 %v4930
    %v5096 = vpop.f32.mrb[0].mxu0
    %v5097 = vadd.f32 0.0, %v5096
    %v5098 = vpop.f32.mrb[0].mxu0
    %5099 = vmatprep.mubr.f32.mxu0 0.0
    %5100 = vmatmul.mubr.f32.gmra.mrb[0].mxu0 %v4931
    %v5101 = vpop.f32.mrb[0].mxu0
    %v5102 = vadd.f32 0.0, %v5101
    %v5103 = vpop.f32.mrb[0].mxu0
    %5104 = vmatprep.mubr.f32.mxu0 0.0
    %5105 = vmatmul.mubr.f32.gmra.mrb[0].mxu0 %v4932
    %v5106 = vpop.f32.mrb[0].mxu0
    %v5107 = vadd.f32 0.0, %v5106
    %v5108 = vpop.f32.mrb[0].mxu0
    %5109 = vdwg.mxu0
    %5126 = vrot.lane.b32.xlu0 %v5032, 24
    %v5127 = vpop.permute.xlu0 %5126
    %5128 = vrot.lane.b32.xlu0 %v5037, 24
    %v5129 = vpop.permute.xlu0 %5128
    %5130 = vrot.lane.b32.xlu0 %v5042, 24
    %v5131 = vpop.permute.xlu0 %5130
    %5132 = vrot.lane.b32.xlu0 %v5047, 24
    %v5133 = vpop.permute.xlu0 %5132
    %5134 = vrot.lane.b32.xlu0 %v5052, 24
    %v5135 = vpop.permute.xlu0 %5134
    %5136 = vrot.lane.b32.xlu0 %v5057, 24
    %v5137 = vpop.permute.xlu0 %5136
    %5138 = vrot.lane.b32.xlu0 %v5062, 24
    %v5139 = vpop.permute.xlu0 %5138
    %5140 = vrot.lane.b32.xlu0 %v5067, 24
    %v5141 = vpop.permute.xlu0 %5140
    %5142 = vrot.lane.b32.xlu0 %v5072, 24
    %v5143 = vpop.permute.xlu0 %5142
    %5144 = vrot.lane.b32.xlu0 %v5077, 24
    %v5145 = vpop.permute.xlu0 %5144
    %5146 = vrot.lane.b32.xlu0 %v5082, 24
    %v5147 = vpop.permute.xlu0 %5146
    %5148 = vrot.lane.b32.xlu0 %v5087, 24
    %v5149 = vpop.permute.xlu0 %5148
    %5150 = vrot.lane.b32.xlu0 %v5092, 24
    %v5151 = vpop.permute.xlu0 %5150
    %5152 = vrot.lane.b32.xlu0 %v5097, 24
    %v5153 = vpop.permute.xlu0 %5152
    %5154 = vrot.lane.b32.xlu0 %v5102, 24
    %v5155 = vpop.permute.xlu0 %5154
    %5156 = vrot.lane.b32.xlu0 %v5107, 24
    %v5157 = vpop.permute.xlu0 %5156
    %v5174 = vmul.f32 %v4187, %v5127
    %v5175 = vmul.f32 %v4190, %v5129
    %v5176 = vmul.f32 %v4195, %v5131
    %v5177 = vmul.f32 %v4198, %v5133
    %v5178 = vmul.f32 %v4203, %v5135
    %v5179 = vmul.f32 %v4206, %v5137
    %v5180 = vmul.f32 %v4211, %v5139
    %v5181 = vmul.f32 %v4214, %v5141
    %v5182 = vmul.f32 %v4219, %v5143
    %v5183 = vmul.f32 %v4222, %v5145
    %v5184 = vmul.f32 %v4227, %v5147
    %v5185 = vmul.f32 %v4230, %v5149
    %v5186 = vmul.f32 %v4235, %v5151
    %v5187 = vmul.f32 %v4238, %v5153
    %v5188 = vmul.f32 %v4243, %v5155
    %v5189 = vmul.f32 %v4246, %v5157
    %v5190 = vpack.c.bf16 %v5175, %v5174
    %v5191 = vpack.c.bf16 %v5177, %v5176
    %v5192 = vpack.c.bf16 %v5179, %v5178
    %v5193 = vpack.c.bf16 %v5181, %v5180
    %v5194 = vpack.c.bf16 %v5183, %v5182
    %v5195 = vpack.c.bf16 %v5185, %v5184
    %v5196 = vpack.c.bf16 %v5187, %v5186
    %v5197 = vpack.c.bf16 %v5189, %v5188
    %5206 = vrot.lane.b32.xlu0 %v5190, 104
    %v5207 = vpop.permute.xlu0 %5206
    %5208 = vrot.lane.b32.xlu0 %v5191, 104
    %v5209 = vpop.permute.xlu0 %5208
    %5210 = vrot.lane.b32.xlu0 %v5192, 104
    %v5211 = vpop.permute.xlu0 %5210
    %5212 = vrot.lane.b32.xlu0 %v5193, 104
    %v5213 = vpop.permute.xlu0 %5212
    %5214 = vrot.lane.b32.xlu0 %v5194, 104
    %v5215 = vpop.permute.xlu0 %5214
    %5216 = vrot.lane.b32.xlu0 %v5195, 104
    %v5217 = vpop.permute.xlu0 %5216
    %5218 = vrot.lane.b32.xlu0 %v5196, 104
    %v5219 = vpop.permute.xlu0 %5218
    %5220 = vrot.lane.b32.xlu0 %v5197, 104
    %v5221 = vpop.permute.xlu0 %5220
    %5246 = vrot.lane.b32.xlu0 %v4043, 56
    %v5247 = vpop.permute.xlu0 %5246
    %5248 = vrot.lane.b32.xlu0 %v4048, 56
    %v5249 = vpop.permute.xlu0 %5248
    %5250 = vrot.lane.b32.xlu0 %v4053, 56
    %v5251 = vpop.permute.xlu0 %5250
    %5252 = vrot.lane.b32.xlu0 %v4058, 56
    %v5253 = vpop.permute.xlu0 %5252
    %5254 = vrot.lane.b32.xlu0 %v4063, 56
    %v5255 = vpop.permute.xlu0 %5254
    %5256 = vrot.lane.b32.xlu0 %v4068, 56
    %v5257 = vpop.permute.xlu0 %5256
    %5258 = vrot.lane.b32.xlu0 %v4073, 56
    %v5259 = vpop.permute.xlu0 %5258
    %5260 = vrot.lane.b32.xlu0 %v4078, 56
    %v5261 = vpop.permute.xlu0 %5260
    %5262 = vrot.lane.b32.xlu0 %v4083, 56
    %v5263 = vpop.permute.xlu0 %5262
    %5264 = vrot.lane.b32.xlu0 %v4088, 56
    %v5265 = vpop.permute.xlu0 %5264
    %5266 = vrot.lane.b32.xlu0 %v4093, 56
    %v5267 = vpop.permute.xlu0 %5266
    %5268 = vrot.lane.b32.xlu0 %v4098, 56
    %v5269 = vpop.permute.xlu0 %5268
    %5270 = vrot.lane.b32.xlu0 %v4103, 56
    %v5271 = vpop.permute.xlu0 %5270
    %5272 = vrot.lane.b32.xlu0 %v4108, 56
    %v5273 = vpop.permute.xlu0 %5272
    %5274 = vrot.lane.b32.xlu0 %v4113, 56
    %v5275 = vpop.permute.xlu0 %5274
    %5276 = vrot.lane.b32.xlu0 %v4118, 56
    %v5277 = vpop.permute.xlu0 %5276
    %5294 = vmatprep.subr.bf16.mxu0 0
    %5295 = vmatpush1.bf16.msra.mxu0 %v5207
    %5296 = vmatprep.subr.bf16.mxu0 0
    %5297 = vmatpush1.bf16.msra.mxu0 %v5209
    %5298 = vmatprep.subr.bf16.mxu0 0
    %5299 = vmatpush1.bf16.msra.mxu0 %v5211
    %5300 = vmatprep.subr.bf16.mxu0 0
    %5301 = vmatpush1.bf16.msra.mxu0 %v5213
    %5302 = vmatprep.subr.bf16.mxu0 0
    %5303 = vmatpush1.bf16.msra.mxu0 %v5215
    %5304 = vmatprep.subr.bf16.mxu0 0
    %5305 = vmatpush1.bf16.msra.mxu0 %v5217
    %5306 = vmatprep.subr.bf16.mxu0 0
    %5307 = vmatpush1.bf16.msra.mxu0 %v5219
    %5308 = vmatprep.subr.bf16.mxu0 0
    %5309 = vmatpush1.bf16.msra.mxu0 %v5221
    %5310 = vmatprep.subr.bf16.mxu0 0
    %5311 = vmatpush1.bf16.msra.mxu0 0
    %5312 = vmatprep.subr.bf16.mxu0 0
    %5313 = vmatpush1.bf16.msra.mxu0 0
    %5314 = vmatprep.subr.bf16.mxu0 0
    %5315 = vmatpush1.bf16.msra.mxu0 0
    %5316 = vmatprep.subr.bf16.mxu0 0
    %5317 = vmatpush1.bf16.msra.mxu0 0
    %5318 = vmatprep.subr.bf16.mxu0 0
    %5319 = vmatpush1.bf16.msra.mxu0 0
    %5320 = vmatprep.subr.bf16.mxu0 0
    %5321 = vmatpush1.bf16.msra.mxu0 0
    %5322 = vmatprep.subr.bf16.mxu0 0
    %5323 = vmatpush1.bf16.msra.mxu0 0
    %5324 = vmatprep.subr.bf16.mxu0 0
    %5325 = vmatpush1.bf16.msra.mxu0 0
    %5326 = vmatprep.mubr.bf16.mxu0 0
    %5327 = vmatmul.mubr.bf16.gmra.mrb[0].mxu0 %v241
    %v5328 = vpop.f32.mrb[0].mxu0
    %v5329 = vadd.f32 %v5247, %v5328
    %v5330 = vpop.f32.mrb[0].mxu0
    %v5331 = vpop.f32.mrb[0].mxu0
    %v5332 = vadd.f32 %v5249, %v5331
    %v5333 = vpop.f32.mrb[0].mxu0
    %5334 = vmatprep.mubr.bf16.mxu0 0
    %5335 = vmatmul.mubr.bf16.gmra.mrb[0].mxu0 %v242
    %v5336 = vpop.f32.mrb[0].mxu0
    %v5337 = vadd.f32 %v5251, %v5336
    %v5338 = vpop.f32.mrb[0].mxu0
    %v5339 = vpop.f32.mrb[0].mxu0
    %v5340 = vadd.f32 %v5253, %v5339
    %v5341 = vpop.f32.mrb[0].mxu0
    %5342 = vmatprep.mubr.bf16.mxu0 0
    %5343 = vmatmul.mubr.bf16.gmra.mrb[0].mxu0 %v243
    %v5344 = vpop.f32.mrb[0].mxu0
    %v5345 = vadd.f32 %v5255, %v5344
    %v5346 = vpop.f32.mrb[0].mxu0
    %v5347 = vpop.f32.mrb[0].mxu0
    %v5348 = vadd.f32 %v5257, %v5347
    %v5349 = vpop.f32.mrb[0].mxu0
    %5350 = vmatprep.mubr.bf16.mxu0 0
    %5351 = vmatmul.mubr.bf16.gmra.mrb[0].mxu0 %v244
    %v5352 = vpop.f32.mrb[0].mxu0
    %v5353 = vadd.f32 %v5259, %v5352
    %v5354 = vpop.f32.mrb[0].mxu0
    %v5355 = vpop.f32.mrb[0].mxu0
    %v5356 = vadd.f32 %v5261, %v5355
    %v5357 = vpop.f32.mrb[0].mxu0
    %5358 = vmatprep.mubr.bf16.mxu0 0
    %5359 = vmatmul.mubr.bf16.gmra.mrb[0].mxu0 %v245
    %v5360 = vpop.f32.mrb[0].mxu0
    %v5361 = vadd.f32 %v5263, %v5360
    %v5362 = vpop.f32.mrb[0].mxu0
    %v5363 = vpop.f32.mrb[0].mxu0
    %v5364 = vadd.f32 %v5265, %v5363
    %v5365 = vpop.f32.mrb[0].mxu0
    %5366 = vmatprep.mubr.bf16.mxu0 0
    %5367 = vmatmul.mubr.bf16.gmra.mrb[0].mxu0 %v246
    %v5368 = vpop.f32.mrb[0].mxu0
    %v5369 = vadd.f32 %v5267, %v5368
    %v5370 = vpop.f32.mrb[0].mxu0
    %v5371 = vpop.f32.mrb[0].mxu0
    %v5372 = vadd.f32 %v5269, %v5371
    %v5373 = vpop.f32.mrb[0].mxu0
    %5374 = vmatprep.mubr.bf16.mxu0 0
    %5375 = vmatmul.mubr.bf16.gmra.mrb[0].mxu0 %v247
    %v5376 = vpop.f32.mrb[0].mxu0
    %v5377 = vadd.f32 %v5271, %v5376
    %v5378 = vpop.f32.mrb[0].mxu0
    %v5379 = vpop.f32.mrb[0].mxu0
    %v5380 = vadd.f32 %v5273, %v5379
    %v5381 = vpop.f32.mrb[0].mxu0
    %5382 = vmatprep.mubr.bf16.mxu0 0
    %5383 = vmatmul.mubr.bf16.gmra.mrb[0].mxu0 %v248
    %v5384 = vpop.f32.mrb[0].mxu0
    %v5385 = vadd.f32 %v5275, %v5384
    %v5386 = vpop.f32.mrb[0].mxu0
    %v5387 = vpop.f32.mrb[0].mxu0
    %v5388 = vadd.f32 %v5277, %v5387
    %v5389 = vpop.f32.mrb[0].mxu0
    %5390 = vdwg.mxu0
    %v5391 = vmax.f32 %v5329, 0.0
    %v5392 = vmax.f32 %v5332, 0.0
    %v5393 = vmax.f32 %v5337, 0.0
    %v5394 = vmax.f32 %v5340, 0.0
    %v5395 = vmax.f32 %v5345, 0.0
    %v5396 = vmax.f32 %v5348, 0.0
    %v5397 = vmax.f32 %v5353, 0.0
    %v5398 = vmax.f32 %v5356, 0.0
    %v5399 = vmax.f32 %v5361, 0.0
    %v5400 = vmax.f32 %v5364, 0.0
    %v5401 = vmax.f32 %v5369, 0.0
    %v5402 = vmax.f32 %v5372, 0.0
    %v5403 = vmax.f32 %v5377, 0.0
    %v5404 = vmax.f32 %v5380, 0.0
    %v5405 = vmax.f32 %v5385, 0.0
    %v5406 = vmax.f32 %v5388, 0.0
    %v5407 = vadd.f32 %v129, %v5391
    %v5408 = vadd.f32 %v130, %v5392
    %v5409 = vadd.f32 %v131, %v5393
    %v5410 = vadd.f32 %v132, %v5394
    %v5411 = vadd.f32 %v133, %v5395
    %v5412 = vadd.f32 %v134, %v5396
    %v5413 = vadd.f32 %v135, %v5397
    %v5414 = vadd.f32 %v136, %v5398
    %v5415 = vadd.f32 %v137, %v5399
    %v5416 = vadd.f32 %v138, %v5400
    %v5417 = vadd.f32 %v139, %v5401
    %v5418 = vadd.f32 %v140, %v5402
    %v5419 = vadd.f32 %v141, %v5403
    %v5420 = vadd.f32 %v142, %v5404
    %v5421 = vadd.f32 %v143, %v5405
    %v5422 = vadd.f32 %v144, %v5406
    %v5423 = vld [vmem:[%s9] sm:$0xff]
    %5424 = vmatprep.subr.mxu0 0.0
    %5425 = vmatpush1.msra.mxu0 %v5407
    %5426 = vmatprep.subr.mxu0 0.0
    %5427 = vmatpush1.msra.mxu0 %v5408
    %5428 = vmatprep.subr.mxu0 0.0
    %5429 = vmatpush1.msra.mxu0 %v5409
    %5430 = vmatprep.subr.mxu0 0.0
    %5431 = vmatpush1.msra.mxu0 %v5410
    %5432 = vmatprep.subr.mxu0 0.0
    %5433 = vmatpush1.msra.mxu0 %v5411
    %5434 = vmatprep.subr.mxu0 0.0
    %5435 = vmatpush1.msra.mxu0 %v5412
    %5436 = vmatprep.subr.mxu0 0.0
    %5437 = vmatpush1.msra.mxu0 %v5413
    %5438 = vmatprep.subr.mxu0 0.0
    %5439 = vmatpush1.msra.mxu0 %v5414
    %5440 = vmatprep.subr.mxu0 0.0
    %5441 = vmatpush1.msra.mxu0 %v5415
    %5442 = vmatprep.subr.mxu0 0.0
    %5443 = vmatpush1.msra.mxu0 %v5416
    %5444 = vmatprep.subr.mxu0 0.0
    %5445 = vmatpush1.msra.mxu0 %v5417
    %5446 = vmatprep.subr.mxu0 0.0
    %5447 = vmatpush1.msra.mxu0 %v5418
    %5448 = vmatprep.subr.mxu0 0.0
    %5449 = vmatpush1.msra.mxu0 %v5419
    %5450 = vmatprep.subr.mxu0 0.0
    %5451 = vmatpush1.msra.mxu0 %v5420
    %5452 = vmatprep.subr.mxu0 0.0
    %5453 = vmatpush1.msra.mxu0 %v5421
    %5454 = vmatprep.subr.mxu0 0.0
    %5455 = vmatpush1.msra.mxu0 %v5422
    %5456 = vmatprep.subr.mxu0 0.0
    %5457 = vmatpush1.msra.mxu0 0.0
    %5458 = vmatprep.subr.mxu0 0.0
    %5459 = vmatpush1.msra.mxu0 0.0
    %5460 = vmatprep.subr.mxu0 0.0
    %5461 = vmatpush1.msra.mxu0 0.0
    %5462 = vmatprep.subr.mxu0 0.0
    %5463 = vmatpush1.msra.mxu0 0.0
    %5464 = vmatprep.subr.mxu0 0.0
    %5465 = vmatpush1.msra.mxu0 0.0
    %5466 = vmatprep.subr.mxu0 0.0
    %5467 = vmatpush1.msra.mxu0 0.0
    %5468 = vmatprep.subr.mxu0 0.0
    %5469 = vmatpush1.msra.mxu0 0.0
    %5470 = vmatprep.subr.mxu0 0.0
    %5471 = vmatpush1.msra.mxu0 0.0
    %5472 = vmatprep.subr.mxu0 0.0
    %5473 = vmatpush1.msra.mxu0 0.0
    %5474 = vmatprep.subr.mxu0 0.0
    %5475 = vmatpush1.msra.mxu0 0.0
    %5476 = vmatprep.subr.mxu0 0.0
    %5477 = vmatpush1.msra.mxu0 0.0
    %5478 = vmatprep.subr.mxu0 0.0
    %5479 = vmatpush1.msra.mxu0 0.0
    %5480 = vmatprep.subr.mxu0 0.0
    %5481 = vmatpush1.msra.mxu0 0.0
    %5482 = vmatprep.subr.mxu0 0.0
    %5483 = vmatpush1.msra.mxu0 0.0
    %5484 = vmatprep.subr.mxu0 0.0
    %5485 = vmatpush1.msra.mxu0 0.0
    %5486 = vmatprep.subr.mxu0 0.0
    %5487 = vmatpush1.msra.mxu0 0.0
    %5488 = vmatprep.mubr.f32.mxu0 0.0
    %5489 = vmatmul.mubr.f32.gmra.mrb[0].mxu0 %v5423
    %v5490 = vpop.f32.mrb[0].mxu0
    %v5491 = vadd.f32 0.0, %v5490
    %v5492 = vpop.f32.mrb[0].mxu0
    %5493 = vdwg.mxu0
    %v5494 = vld [vmem:[%s49] sm:$0xff]
    %v5495 = vld [vmem:[%s49 + $0x8] sm:$0xff]
    %v5496 = vld [vmem:[%s49 + $0x10] sm:$0xff]
    %v5497 = vld [vmem:[%s51] sm:$0x1]
    %v5499 = vlaneseq
    %v5500 = vshrl.u32 %v5499, 7
    %v5501 = vsub.s32 0, %v5500
    %v5502 = vrot.slane %v5497, %v5501
    %v5505 = vsel %vm259, %v5491, 0
    %5507 = vmatprep.subr.mxu0 0.0
    %5508 = vmatpush1.msra.mxu0 %v5494
    %5509 = vmatprep.subr.mxu0 0.0
    %5510 = vmatpush1.msra.mxu0 %v5495
    %5511 = vmatprep.subr.mxu0 0.0
    %5512 = vmatpush1.msra.mxu0 %v5496
    %5513 = vmatprep.subr.mxu0 0.0
    %5514 = vmatpush1.msra.mxu0 0.0
    %5515 = vmatprep.subr.mxu0 0.0
    %5516 = vmatpush1.msra.mxu0 0.0
    %5517 = vmatprep.subr.mxu0 0.0
    %5518 = vmatpush1.msra.mxu0 0.0
    %5519 = vmatprep.subr.mxu0 0.0
    %5520 = vmatpush1.msra.mxu0 0.0
    %5521 = vmatprep.subr.mxu0 0.0
    %5522 = vmatpush1.msra.mxu0 0.0
    %5523 = vmatprep.subr.mxu0 0.0
    %5524 = vmatpush1.msra.mxu0 0.0
    %5525 = vmatprep.subr.mxu0 0.0
    %5526 = vmatpush1.msra.mxu0 0.0
    %5527 = vmatprep.subr.mxu0 0.0
    %5528 = vmatpush1.msra.mxu0 0.0
    %5529 = vmatprep.subr.mxu0 0.0
    %5530 = vmatpush1.msra.mxu0 0.0
    %5531 = vmatprep.subr.mxu0 0.0
    %5532 = vmatpush1.msra.mxu0 0.0
    %5533 = vmatprep.subr.mxu0 0.0
    %5534 = vmatpush1.msra.mxu0 0.0
    %5535 = vmatprep.subr.mxu0 0.0
    %5536 = vmatpush1.msra.mxu0 0.0
    %5537 = vmatprep.subr.mxu0 0.0
    %5538 = vmatpush1.msra.mxu0 0.0
    %5539 = vmatprep.subr.mxu0 0.0
    %5540 = vmatpush1.msra.mxu0 0.0
    %5541 = vmatprep.subr.mxu0 0.0
    %5542 = vmatpush1.msra.mxu0 0.0
    %5543 = vmatprep.subr.mxu0 0.0
    %5544 = vmatpush1.msra.mxu0 0.0
    %5545 = vmatprep.subr.mxu0 0.0
    %5546 = vmatpush1.msra.mxu0 0.0
    %5547 = vmatprep.subr.mxu0 0.0
    %5548 = vmatpush1.msra.mxu0 0.0
    %5549 = vmatprep.subr.mxu0 0.0
    %5550 = vmatpush1.msra.mxu0 0.0
    %5551 = vmatprep.subr.mxu0 0.0
    %5552 = vmatpush1.msra.mxu0 0.0
    %5553 = vmatprep.subr.mxu0 0.0
    %5554 = vmatpush1.msra.mxu0 0.0
    %5555 = vmatprep.subr.mxu0 0.0
    %5556 = vmatpush1.msra.mxu0 0.0
    %5557 = vmatprep.subr.mxu0 0.0
    %5558 = vmatpush1.msra.mxu0 0.0
    %5559 = vmatprep.subr.mxu0 0.0
    %5560 = vmatpush1.msra.mxu0 0.0
    %5561 = vmatprep.subr.mxu0 0.0
    %5562 = vmatpush1.msra.mxu0 0.0
    %5563 = vmatprep.subr.mxu0 0.0
    %5564 = vmatpush1.msra.mxu0 0.0
    %5565 = vmatprep.subr.mxu0 0.0
    %5566 = vmatpush1.msra.mxu0 0.0
    %5567 = vmatprep.subr.mxu0 0.0
    %5568 = vmatpush1.msra.mxu0 0.0
    %5569 = vmatprep.subr.mxu0 0.0
    %5570 = vmatpush1.msra.mxu0 0.0
    %5571 = vmatprep.mubr.f32.mxu0 0.0
    %5572 = vmatmul.mubr.f32.gmra.mrb[0].mxu0 %v5505
    %v5573 = vpop.f32.mrb[0].mxu0
    %v5574 = vadd.f32 %v5502, %v5573
    %v5575 = vpop.f32.mrb[0].mxu0
    %5576 = vdwg.mxu0
    %v5577 = vmax.f32 %v5574, 0.0
    %v5578 = vld [vmem:[%s53] sm:$0xff]
    %v5579 = vld [vmem:[%s53 + $0x8] sm:$0xff]
    %v5580 = vld [vmem:[%s53 + $0x10] sm:$0xff]
    %v5581 = vld [vmem:[%s53 + $0x18] sm:$0xff]
    %v5582 = vld [vmem:[%s55] sm:$0x1]
    %v5584 = vlaneseq
    %v5585 = vshrl.u32 %v5584, 7
    %v5586 = vsub.s32 0, %v5585
    %v5587 = vrot.slane %v5582, %v5586
    %v5590 = vsel %vm906, %v5577, 0
    %5592 = vmatprep.subr.mxu0 0.0
    %5593 = vmatpush1.msra.mxu0 %v5578
    %5594 = vmatprep.subr.mxu0 0.0
    %5595 = vmatpush1.msra.mxu0 %v5579
    %5596 = vmatprep.subr.mxu0 0.0
    %5597 = vmatpush1.msra.mxu0 %v5580
    %5598 = vmatprep.subr.mxu0 0.0
    %5599 = vmatpush1.msra.mxu0 %v5581
    %5600 = vmatprep.subr.mxu0 0.0
    %5601 = vmatpush1.msra.mxu0 0.0
    %5602 = vmatprep.subr.mxu0 0.0
    %5603 = vmatpush1.msra.mxu0 0.0
    %5604 = vmatprep.subr.mxu0 0.0
    %5605 = vmatpush1.msra.mxu0 0.0
    %5606 = vmatprep.subr.mxu0 0.0
    %5607 = vmatpush1.msra.mxu0 0.0
    %5608 = vmatprep.subr.mxu0 0.0
    %5609 = vmatpush1.msra.mxu0 0.0
    %5610 = vmatprep.subr.mxu0 0.0
    %5611 = vmatpush1.msra.mxu0 0.0
    %5612 = vmatprep.subr.mxu0 0.0
    %5613 = vmatpush1.msra.mxu0 0.0
    %5614 = vmatprep.subr.mxu0 0.0
    %5615 = vmatpush1.msra.mxu0 0.0
    %5616 = vmatprep.subr.mxu0 0.0
    %5617 = vmatpush1.msra.mxu0 0.0
    %5618 = vmatprep.subr.mxu0 0.0
    %5619 = vmatpush1.msra.mxu0 0.0
    %5620 = vmatprep.subr.mxu0 0.0
    %5621 = vmatpush1.msra.mxu0 0.0
    %5622 = vmatprep.subr.mxu0 0.0
    %5623 = vmatpush1.msra.mxu0 0.0
    %5624 = vmatprep.subr.mxu0 0.0
    %5625 = vmatpush1.msra.mxu0 0.0
    %5626 = vmatprep.subr.mxu0 0.0
    %5627 = vmatpush1.msra.mxu0 0.0
    %5628 = vmatprep.subr.mxu0 0.0
    %5629 = vmatpush1.msra.mxu0 0.0
    %5630 = vmatprep.subr.mxu0 0.0
    %5631 = vmatpush1.msra.mxu0 0.0
    %5632 = vmatprep.subr.mxu0 0.0
    %5633 = vmatpush1.msra.mxu0 0.0
    %5634 = vmatprep.subr.mxu0 0.0
    %5635 = vmatpush1.msra.mxu0 0.0
    %5636 = vmatprep.subr.mxu0 0.0
    %5637 = vmatpush1.msra.mxu0 0.0
    %5638 = vmatprep.subr.mxu0 0.0
    %5639 = vmatpush1.msra.mxu0 0.0
    %5640 = vmatprep.subr.mxu0 0.0
    %5641 = vmatpush1.msra.mxu0 0.0
    %5642 = vmatprep.subr.mxu0 0.0
    %5643 = vmatpush1.msra.mxu0 0.0
    %5644 = vmatprep.subr.mxu0 0.0
    %5645 = vmatpush1.msra.mxu0 0.0
    %5646 = vmatprep.subr.mxu0 0.0
    %5647 = vmatpush1.msra.mxu0 0.0
    %5648 = vmatprep.subr.mxu0 0.0
    %5649 = vmatpush1.msra.mxu0 0.0
    %5650 = vmatprep.subr.mxu0 0.0
    %5651 = vmatpush1.msra.mxu0 0.0
    %5652 = vmatprep.subr.mxu0 0.0
    %5653 = vmatpush1.msra.mxu0 0.0
    %5654 = vmatprep.subr.mxu0 0.0
    %5655 = vmatpush1.msra.mxu0 0.0
    %5656 = vmatprep.mubr.f32.mxu0 0.0
    %5657 = vmatmul.mubr.f32.gmra.mrb[0].mxu0 %v5590
    %v5658 = vpop.f32.mrb[0].mxu0
    %v5659 = vadd.f32 %v5587, %v5658
    %v5660 = vpop.f32.mrb[0].mxu0
    %5661 = vdwg.mxu0
    %5662 = vst [vmem:[#allocation2] sm:$0xff] %v5659
    // Predicated region
    $region114: #{tpu_custom_call.1} parent=1 // pred_check
      _
    $region115: #{tpu_custom_call.1} parent=1 // pred_check_branch
      %5664 = sbr.rel (0) target = $region117
    $region116: #{tpu_custom_call.1} parent=1 // pred_region
      %s5666 = ssub.s32 128, 128
      %5667 = vsyncadd [#allocation3], %s5666
      %s5669 = sshll.u32 [#allocation2], 4
      %s5670 = int_to_ptr.vmem [resolvable:$true] %s5669
      %5672 = dma.vmem_to_hbm [thread:$0]  %s5670, 128, %s57, [#allocation3]
    $region117: #{tpu_custom_call.1} parent=1 // pred_fallthru
      _
    // Predicated region
    $region118: #{tpu_custom_call.1} parent=1 // pred_check
      _
    $region119: #{tpu_custom_call.1} parent=1 // pred_check_branch
      %5674 = sbr.rel (0) target = $region121
    $region120: #{tpu_custom_call.1} parent=1 // pred_region
      %s5676 = ssub.s32 2048, 2048
      %5677 = vsyncadd [#allocation5], %s5676
      %s5678 = sshll.u32 [#allocation4], 4
      %s5679 = int_to_ptr.vmem [resolvable:$true] %s5678
      %5684 = dma.vmem_to_hbm [thread:$0]  %s5679, 2048, %s59, [#allocation5], 128, 128, 8
    $region121: #{tpu_custom_call.1} parent=1 // pred_fallthru
      _
    // Predicated region
    $region122: #{tpu_custom_call.1} parent=1 // pred_check
      _
    $region123: #{tpu_custom_call.1} parent=1 // pred_check_branch
      %5686 = sbr.rel (0) target = $region125
    $region124: #{tpu_custom_call.1} parent=1 // pred_region
      %s5688 = ssub.s32 2048, 2048
      %5689 = vsyncadd [#allocation5], %s5688
      %s5690 = sshll.u32 [#allocation6], 4
      %s5691 = int_to_ptr.vmem [resolvable:$true] %s5690
      %5696 = dma.vmem_to_hbm [thread:$0]  %s5691, 2048, %s61, [#allocation5], 128, 128, 8
    $region125: #{tpu_custom_call.1} parent=1 // pred_fallthru
      _
    // Predicated region
    $region126: #{tpu_custom_call.1} parent=1 // pred_check
      _
    $region127: #{tpu_custom_call.1} parent=1 // pred_check_branch
      %5698 = sbr.rel (0) target = $region129
    $region128: #{tpu_custom_call.1} parent=1 // pred_region
      %s5700 = ssub.s32 2048, 2048
      %5701 = vsyncadd [#allocation8], %s5700
      %s5702 = sshll.u32 [#allocation7], 4
      %s5703 = int_to_ptr.vmem [resolvable:$true] %s5702
      %5708 = dma.vmem_to_hbm [thread:$0]  %s5703, 2048, %s63, [#allocation8], 128, 128, 8
    $region129: #{tpu_custom_call.1} parent=1 // pred_fallthru
      _
    // Predicated region
    $region130: #{tpu_custom_call.1} parent=1 // pred_check
      _
    $region131: #{tpu_custom_call.1} parent=1 // pred_check_branch
      %5710 = sbr.rel (0) target = $region133
    $region132: #{tpu_custom_call.1} parent=1 // pred_region
      %5711 = dma.done [#allocation3], 128
    $region133: #{tpu_custom_call.1} parent=1 // pred_fallthru
      _
    // Predicated region
    $region134: #{tpu_custom_call.1} parent=1 // pred_check
      _
    $region135: #{tpu_custom_call.1} parent=1 // pred_check_branch
      %5713 = sbr.rel (0) target = $region137
    $region136: #{tpu_custom_call.1} parent=1 // pred_region
      %5714 = dma.done [#allocation5], 2048
    $region137: #{tpu_custom_call.1} parent=1 // pred_fallthru
      _
    // Predicated region
    $region138: #{tpu_custom_call.1} parent=1 // pred_check
      _
    $region139: #{tpu_custom_call.1} parent=1 // pred_check_branch
      %5716 = sbr.rel (0) target = $region141
    $region140: #{tpu_custom_call.1} parent=1 // pred_region
      %5717 = dma.done [#allocation5], 2048
    $region141: #{tpu_custom_call.1} parent=1 // pred_fallthru
      _
    // Predicated region
    $region142: #{tpu_custom_call.1} parent=1 // pred_check
      _
    $region143: #{tpu_custom_call.1} parent=1 // pred_check_branch
      %5719 = sbr.rel (0) target = $region145
    $region144: #{tpu_custom_call.1} parent=1 // pred_region
      %5720 = dma.done [#allocation8], 2048
    $region145: #{tpu_custom_call.1} parent=1 // pred_fallthru
      _
    %5721 = vsyncpa [#allocation3], 1
    %5722 = vsyncpa [#allocation5], 1
    %5723 = vsyncpa [#allocation8], 1

</llo_original>
